<compile_context>
chip_gen: v7x
topology: tpu7x:2x2x1
jax: 0.10.0
libtpu: 0.0.40
codegen_flags: <defaults>
</compile_context>

<pallas_src>
import functools

import jax
import jax.numpy as jnp
import numpy as np
from jax.experimental import pallas as pl
from jax.experimental.pallas import tpu as pltpu

_TM_CAP = 512                     # row-tile cap (sublane dim), multiple of 16
_TN_CAP = 256                     # out-channel tile cap (lane dim), x128
_TK_CAP = 1024                    # reduction tile cap, x128
_VMEM_LIMIT = 32 * 1024 * 1024    # safe scoped-VMEM budget across v5e..v7x
# TODO(synk): per-generation tuning (larger tiles / 64 MiB limit on 128-MiB
# v5e/v6e, >=2 parallel row tiles + fp8 weights on v7x) is not plumbed here.


# ----------------------------- Pallas kernels ------------------------------ #

def _conv_bn_kernel(x_ref, w_ref, b_ref, o_ref, acc_ref, *, relu):
    """Tiled (tm,tk)@(tk,tn) matmul, f32 accumulator, bias(+relu) epilogue."""
    k = pl.program_id(2)
    prod = jnp.dot(x_ref[...], w_ref[...], preferred_element_type=jnp.float32)

    @pl.when(k == 0)
    def _():                       # init with first partial product (no zero-fill)
        acc_ref[...] = prod

    @pl.when(k > 0)
    def _():
        acc_ref[...] += prod

    @pl.when(k == pl.num_programs(2) - 1)
    def _():
        out = acc_ref[...] + b_ref[...]
        if relu:
            out = jnp.maximum(out, 0.0)
        o_ref[...] = out.astype(o_ref.dtype)


def _conv_bn_res_relu_kernel(x_ref, w_ref, b_ref, xd_ref, wd_ref, o_ref, acc_ref):
    """conv3+bn3 fused with downsample(1x1 conv+bn) + residual add + relu."""
    k = pl.program_id(2)
    prod = jnp.dot(x_ref[...], w_ref[...], preferred_element_type=jnp.float32)

    @pl.when(k == 0)
    def _():
        # Identity/downsample matmul folded into the accumulator init so it
        # overlaps with the k reduction loop instead of the final epilogue.
        acc_ref[...] = prod + jnp.dot(xd_ref[...], wd_ref[...],
                                      preferred_element_type=jnp.float32)

    @pl.when(k > 0)
    def _():
        acc_ref[...] += prod

    @pl.when(k == pl.num_programs(2) - 1)
    def _():
        o_ref[...] = jnp.maximum(acc_ref[...] + b_ref[...], 0.0).astype(o_ref.dtype)


def _conv2_3x3_kernel(x_ref, w_ref, b_ref, o_ref, *, rows, wp, dilation):
    """3x3 conv (stride 1) as 9 shifted 1x1 matmuls over a flattened slab.

    x_ref: (1, Hp*Wp + 2*dil, Cb) padded, W-flattened slab for one image.
    w_ref: (9, Cb, Cb) taps ordered (kh, kw), BN scale folded into columns.
    b_ref: (1, Cb).  o_ref: (1, rows, Cb) with rows = H*Wp (W-halo junk
    columns are stripped by the wrapper).
    """
    acc = None
    for kh in range(3):
        for kw in range(3):
            t = kh * 3 + kw
            off = (kh * wp + kw) * dilation
            xt = x_ref[0, off:off + rows, :]                    # (rows, Cb)
            c = jnp.dot(xt, w_ref[t], preferred_element_type=jnp.float32)
            acc = c if acc is None else acc + c
    o_ref[0] = jnp.maximum(acc + b_ref[...], 0.0).astype(o_ref.dtype)


# --------------------------- tiling / call wrappers ------------------------- #

def _block_rows(m, dtype):
    """Row (M) tile: one big tile up to the cap; bf16 rows align to 16 sublanes."""
    sub = 16 if jnp.dtype(dtype).itemsize == 2 else 8
    # TODO(synk): on v7x (2 TCs) prefer >=2 row tiles when Cout gives only one
    # j tile so both cores get work; single-TC v5e/v6e want one big tile.
    return min(-(-m // sub) * sub, _TM_CAP)


def _pick_tile(dim, cap, align=128):
    """Largest multiple of `align` that divides `dim`, at most `cap`; else dim."""
    if dim <= cap:
        return dim
    t = (cap // align) * align
    while t >= align:
        if dim % t == 0:
            return t
        t -= align
    return dim


def _pad_rows(a, rows):
    return a if a.shape[0] == rows else jnp.pad(a, ((0, rows - a.shape[0]), (0, 0)))


def conv_bn(x, w, bias, *, relu, out_dtype):
    """y = relu?(x @ w + bias); x:(M,K), w:(K,N) (BN scale pre-folded)."""
    M, K = x.shape
    N = w.shape[1]
    tm = _block_rows(M, x.dtype)
    mp = pl.cdiv(M, tm) * tm
    tn = _pick_tile(N, _TN_CAP)
    tk = _pick_tile(K, _TK_CAP)
    xp = _pad_rows(x, mp)
    n_i = mp // tm

    cost = pl.CostEstimate(
        flops=2 * mp * K * N, transcendentals=0,
        bytes_accessed=(xp.size * xp.dtype.itemsize
                        + n_i * w.size * w.dtype.itemsize       # w refetched per M tile
                        + n_i * bias.size * bias.dtype.itemsize
                        + mp * N * jnp.dtype(out_dtype).itemsize))

    out = pl.pallas_call(
        functools.partial(_conv_bn_kernel, relu=relu),
        out_shape=jax.ShapeDtypeStruct((mp, N), out_dtype),
        grid=(mp // tm, N // tn, K // tk),
        in_specs=[
            pl.BlockSpec((tm, tk), lambda i, j, k: (i, k)),
            pl.BlockSpec((tk, tn), lambda i, j, k: (k, j)),
            pl.BlockSpec((1, tn), lambda i, j, k: (0, j)),
        ],
        out_specs=pl.BlockSpec((tm, tn), lambda i, j, k: (i, j)),
        scratch_shapes=[pltpu.VMEM((tm, tn), jnp.float32)],
        compiler_params=pltpu.CompilerParams(
            dimension_semantics=("parallel", "parallel", "arbitrary"),
            vmem_limit_bytes=_VMEM_LIMIT),
        cost_estimate=cost,
    )(xp, w, bias)
    return out if mp == M else out[:M]


def conv_bn_residual_relu(x, w, bias, xd, wd, *, out_dtype):
    """y = relu(x @ w + bias + xd @ wd); fused conv3+bn3+downsample+add+relu."""
    M, K = x.shape
    N = w.shape[1]
    Kd = xd.shape[1]
    tm = _block_rows(M, x.dtype)
    mp = pl.cdiv(M, tm) * tm
    tn = _pick_tile(N, _TN_CAP)
    tk = _pick_tile(K, _TK_CAP)
    xp = _pad_rows(x, mp)
    xdp = _pad_rows(xd, mp)
    n_i = mp // tm

    cost = pl.CostEstimate(
        flops=2 * mp * K * N + 2 * mp * Kd * N, transcendentals=0,
        bytes_accessed=(xp.size * xp.dtype.itemsize
                        + n_i * w.size * w.dtype.itemsize
                        + xdp.size * xdp.dtype.itemsize
                        + n_i * wd.size * wd.dtype.itemsize
                        + n_i * bias.size * bias.dtype.itemsize
                        + mp * N * jnp.dtype(out_dtype).itemsize))

    out = pl.pallas_call(
        _conv_bn_res_relu_kernel,
        out_shape=jax.ShapeDtypeStruct((mp, N), out_dtype),
        grid=(mp // tm, N // tn, K // tk),
        in_specs=[
            pl.BlockSpec((tm, tk), lambda i, j, k: (i, k)),
            pl.BlockSpec((tk, tn), lambda i, j, k: (k, j)),
            pl.BlockSpec((1, tn), lambda i, j, k: (0, j)),
            pl.BlockSpec((tm, Kd), lambda i, j, k: (i, 0)),
            pl.BlockSpec((Kd, tn), lambda i, j, k: (0, j)),
        ],
        out_specs=pl.BlockSpec((tm, tn), lambda i, j, k: (i, j)),
        scratch_shapes=[pltpu.VMEM((tm, tn), jnp.float32)],
        compiler_params=pltpu.CompilerParams(
            dimension_semantics=("parallel", "parallel", "arbitrary"),
            vmem_limit_bytes=_VMEM_LIMIT),
        cost_estimate=cost,
    )(xp, w, bias, xdp, wd)
    return out if mp == M else out[:M]


def conv2_3x3_bn_relu(x_nhwc, w9, bias, *, dilation, out_dtype):
    """3x3 conv (stride 1, padding=dilation, dilation) + BN(folded) + relu.

    No HBM im2col: the padded input is flattened to (Hp*Wp, Cb) per image and
    each of the 9 taps is a constant row-offset into that slab, so the kernel
    accumulates 9 shifted 1x1 matmuls in an f32 register accumulator.  Output
    rows include the W-halo junk columns (Wp/W extra compute), stripped here.
    Returns (N*H*W, Cb), i.e. the conv3 matmul operand.
    """
    Nb, H, W, Cb = x_nhwc.shape
    d = dilation
    xp = jnp.pad(x_nhwc, ((0, 0), (d, d), (d, d), (0, 0)))
    Hp, Wp = H + 2 * d, W + 2 * d
    rows = H * Wp                       # per-image output rows (incl. junk cols)
    flat_len = Hp * Wp + 2 * d          # tail pad keeps the last tap in-bounds
    xf = jnp.pad(xp.reshape(Nb, Hp * Wp, Cb), ((0, 0), (0, 2 * d), (0, 0)))

    cost = pl.CostEstimate(
        flops=2 * Nb * rows * 9 * Cb * Cb, transcendentals=0,
        bytes_accessed=(xf.size * xf.dtype.itemsize
                        + Nb * w9.size * w9.dtype.itemsize
                        + Nb * bias.size * bias.dtype.itemsize
                        + Nb * rows * Cb * jnp.dtype(out_dtype).itemsize))

    # TODO(synk): one full image slab per grid step; large feature maps (C2
    # stage on v7x's 64 MiB VMEM) would need manual-DMA row tiling with halos.
    out = pl.pallas_call(
        functools.partial(_conv2_3x3_kernel, rows=rows, wp=Wp, dilation=d),
        out_shape=jax.ShapeDtypeStruct((Nb, rows, Cb), out_dtype),
        grid=(Nb,),
        in_specs=[
            pl.BlockSpec((1, flat_len, Cb), lambda n: (n, 0, 0)),
            pl.BlockSpec((9, Cb, Cb), lambda n: (0, 0, 0)),
            pl.BlockSpec((1, Cb), lambda n: (0, 0)),
        ],
        out_specs=pl.BlockSpec((1, rows, Cb), lambda n: (n, 0, 0)),
        compiler_params=pltpu.CompilerParams(
            dimension_semantics=("parallel",),
            vmem_limit_bytes=_VMEM_LIMIT),
        cost_estimate=cost,
    )(xf, w9, bias)
    # Drop the W-halo junk columns and flatten to the conv3 matmul operand.
    return out.reshape(Nb, H, Wp, Cb)[:, :, :W, :].reshape(Nb * H * W, Cb)


# ------------------------------- JAX glue ---------------------------------- #

def im2col_3x3(x_nhwc, dilation=1):
    """3x3 patches, padding=dilation, stride 1; taps ordered (kh, kw, cin)."""
    N, H, W, C = x_nhwc.shape
    pad = dilation
    xp = jnp.pad(x_nhwc, ((0, 0), (pad, pad), (pad, pad), (0, 0)))
    cols = []
    for kh in range(3):
        for kw in range(3):
            h0 = kh * dilation
            w0 = kw * dilation
            cols.append(xp[:, h0:h0 + H, w0:w0 + W, :])
    return jnp.concatenate(cols, axis=-1)


@functools.partial(jax.jit,
                   static_argnames=("stride", "stride_in_1x1", "dilation",
                                    "compute_dtype"))
def bottleneck_forward(x_nchw, p, *, stride=1, stride_in_1x1=True, dilation=1,
                       compute_dtype=jnp.bfloat16):
    # TODO(synk): DFConv2d (deformable) branch and num_groups>1 are not implemented.
    # TODO(synk): identity path without a downsample (in_channels == out_channels)
    # is not implemented; this covers the downsample configuration.
    x = jnp.transpose(x_nchw, (0, 2, 3, 1)).astype(compute_dtype)  # NHWC
    Nb, H, W, Cin = x.shape
    if dilation > 1:
        stride = 1
    s1, s3 = (stride, 1) if stride_in_1x1 else (1, stride)

    # conv1 (1x1, stride s1) + bn1 + relu
    x1 = x[:, ::s1, ::s1, :]
    n1, h1, w1_, _ = x1.shape
    Cb = p["w1"].shape[1]
    out = conv_bn(x1.reshape(n1 * h1 * w1_, Cin), p["w1"], p["b1"],
                  relu=True, out_dtype=compute_dtype)
    out = out.reshape(n1, h1, w1_, Cb)

    # conv2 (3x3, stride s3, padding=dilation, dilation) + bn2 + relu
    if s3 == 1:
        out2 = conv2_3x3_bn_relu(out, p["w2"], p["b2"], dilation=dilation,
                                 out_dtype=compute_dtype)
        n2, h2, w2_ = n1, h1, w1_
    else:
        # TODO(synk): stride_in_1x1=False with stride>1 falls back to an
        # HBM-materialized im2col; the fused 9-tap kernel handles stride 1 only.
        patches = im2col_3x3(out, dilation)[:, ::s3, ::s3, :]
        n2, h2, w2_, K2 = patches.shape
        out2 = conv_bn(patches.reshape(n2 * h2 * w2_, K2),
                       p["w2"].reshape(9 * Cb, Cb), p["b2"],
                       relu=True, out_dtype=compute_dtype)

    # conv3 (1x1) + bn3 + downsample(1x1 conv, stride) + bn + add + relu, fused.
    xd = x[:, ::stride, ::stride, :].reshape(n2 * h2 * w2_, Cin)
    Cout = p["w3"].shape[1]
    out3 = conv_bn_residual_relu(out2, p["w3"], p["b3d"], xd, p["wd"],
                                 out_dtype=jnp.float32)
    out3 = out3.reshape(n2, h2, w2_, Cout)
    # TODO(synk): final NHWC->NCHW f32 transpose kept for PyTorch-layout parity;
    # returning NHWC would save one extra f32 HBM read+write of the output.
    return jnp.transpose(out3, (0, 3, 1, 2))  # NCHW, f32


# --------------------------- parameter construction ------------------------- #

def kaiming_uniform(key, shape_oihw, a=1.0):
    o, i, kh, kw = shape_oihw
    fan_in = i * kh * kw
    bound = np.sqrt(6.0 / ((1.0 + a * a) * fan_in))
    return jax.random.uniform(key, shape_oihw, jnp.float32, -bound, bound)


def frozen_bn(key, c, eps=1e-5):
    k1, k2, k3, k4 = jax.random.split(key, 4)
    weight = jax.random.uniform(k1, (c,), jnp.float32, 0.5, 1.5)
    bias = jax.random.uniform(k2, (c,), jnp.float32, -0.5, 0.5)
    mean = jax.random.uniform(k3, (c,), jnp.float32, -0.5, 0.5)
    var = jax.random.uniform(k4, (c,), jnp.float32, 0.5, 1.5)
    scale = weight / jnp.sqrt(var + eps)
    shift = bias - mean * scale
    return scale, shift


def make_torch_weights(key, cin, cb, cout):
    ks = jax.random.split(key, 8)
    return {
        "w1": kaiming_uniform(ks[0], (cb, cin, 1, 1)),     # torch OIHW
        "w2": kaiming_uniform(ks[1], (cb, cb, 3, 3)),
        "w3": kaiming_uniform(ks[2], (cout, cb, 1, 1)),
        "wd": kaiming_uniform(ks[3], (cout, cin, 1, 1)),
        "bn1": frozen_bn(ks[4], cb),
        "bn2": frozen_bn(ks[5], cb),
        "bn3": frozen_bn(ks[6], cout),
        "bnd": frozen_bn(ks[7], cout),
    }


def pack_params(tw, dtype):
    """Fold FrozenBN scale into matmul-form weights; biases stay f32."""
    cb = tw["w1"].shape[0]
    s1, b1 = tw["bn1"]
    s2, b2 = tw["bn2"]
    s3, b3 = tw["bn3"]
    sd, bd = tw["bnd"]
    w1 = jnp.transpose(tw["w1"][:, :, 0, 0], (1, 0)) * s1[None, :]            # (Cin, Cb)
    w2 = (jnp.transpose(tw["w2"], (2, 3, 1, 0)).reshape(9, cb, cb)            # (9, Cb, Cb)
          * s2[None, None, :])
    w3 = jnp.transpose(tw["w3"][:, :, 0, 0], (1, 0)) * s3[None, :]            # (Cb, Cout)
    wd = jnp.transpose(tw["wd"][:, :, 0, 0], (1, 0)) * sd[None, :]            # (Cin, Cout)
    return {
        "w1": w1.astype(dtype), "w2": w2.astype(dtype),
        "w3": w3.astype(dtype), "wd": wd.astype(dtype),
        "b1": b1.reshape(1, -1).astype(jnp.float32),
        "b2": b2.reshape(1, -1).astype(jnp.float32),
        "b3d": (b3 + bd).reshape(1, -1).astype(jnp.float32),
    }


# ------------------------------ pure-JAX reference -------------------------- #

def reference_forward(x, tw, *, stride=1, stride_in_1x1=True, dilation=1):
    def conv(x, w, s, pad, dil=1):
        return jax.lax.conv_general_dilated(
            x, w, (s, s), [(pad, pad), (pad, pad)], rhs_dilation=(dil, dil),
            dimension_numbers=("NCHW", "OIHW", "NCHW"),
            precision=jax.lax.Precision.HIGHEST)

    def bn(x, sb):
        s, b = sb
        return x * s[None, :, None, None] + b[None, :, None, None]

    down_stride = stride if dilation == 1 else 1
    if dilation > 1:
        stride = 1
    s1, s3 = (stride, 1) if stride_in_1x1 else (1, stride)

    identity = bn(conv(x, tw["wd"], down_stride, 0), tw["bnd"])
    out = jax.nn.relu(bn(conv(x, tw["w1"], s1, 0), tw["bn1"]))
    out = jax.nn.relu(bn(conv(out, tw["w2"], s3, dilation, dilation), tw["bn2"]))
    out = bn(conv(out, tw["w3"], 1, 0), tw["bn3"])
    return jax.nn.relu(out + identity)


# ----------------------------------- main ----------------------------------- #

if __name__ == "__main__":
    key = jax.random.PRNGKey(0)
    kx, kp = jax.random.split(key)

    # Bottleneck(in_channels=16, bottleneck_channels=8, out_channels=32,
    #            num_groups=1, stride_in_1x1=True, stride=1, dilation=1,
    #            norm_func=FrozenBatchNorm2d, dcn_config={})
    N, Cin, H, W = 2, 16, 8, 8
    Cb, Cout = 8, 32

    x = jax.random.normal(kx, (N, Cin, H, W), jnp.float32)
    tw = make_torch_weights(kp, Cin, Cb, Cout)

    ref = jax.block_until_ready(
        reference_forward(x, tw, stride=1, stride_in_1x1=True, dilation=1))

    # f32-operand run: tight check of kernel logic / BN-fold / 9-tap conv2 /
    # residual fusion.
    p32 = pack_params(tw, jnp.float32)
    out32 = jax.block_until_ready(
        bottleneck_forward(x, p32, stride=1, stride_in_1x1=True, dilation=1,
                           compute_dtype=jnp.float32))
    assert out32.shape == (N, Cout, H, W), out32.shape
    np.testing.assert_allclose(np.asarray(out32), np.asarray(ref),
                               rtol=1e-2, atol=1e-2)

    # bf16-operand run (production path for v6e/v7x): looser bf16 tolerance.
    p16 = pack_params(tw, jnp.bfloat16)
    out16 = jax.block_until_ready(
        bottleneck_forward(x, p16, stride=1, stride_in_1x1=True, dilation=1,
                           compute_dtype=jnp.bfloat16))
    assert out16.shape == (N, Cout, H, W), out16.shape
    np.testing.assert_allclose(np.asarray(out16), np.asarray(ref),
                               rtol=5e-2, atol=5e-2)

    print("KERNEL_OK")
</pallas_src>

<mosaic_0001>
module attributes {stable_mosaic.version = 11 : i64} {
  func.func @_conv_bn_kernel(%arg0: i32, %arg1: i32, %arg2: i32, %arg3: memref<128x16xf32, #tpu.memory_space<vmem>>, %arg4: memref<16x8xf32, #tpu.memory_space<vmem>>, %arg5: memref<1x8xf32, #tpu.memory_space<vmem>>, %arg6: memref<128x8xf32, #tpu.memory_space<vmem>>, %arg7: memref<128x8xf32, #tpu.memory_space<vmem>>) attributes {dimension_semantics = [#tpu.dimension_semantics<parallel>, #tpu.dimension_semantics<parallel>, #tpu.dimension_semantics<arbitrary>], iteration_bounds = array<i64: 1, 1, 1>, scalar_prefetch = 0 : i64, scratch_operands = 1 : i64, tpu.core_type = #tpu.core_type<tc>, window_params = [{transform_indices = @transform_0, window_bounds = array<i64: 128, 16>}, {transform_indices = @transform_1, window_bounds = array<i64: 16, 8>}, {transform_indices = @transform_2, window_bounds = array<i64: 1, 8>}, {transform_indices = @transform_3, window_bounds = array<i64: 128, 8>}]} {
    %c0 = arith.constant 0 : index
    %c0_0 = arith.constant 0 : index
    %0 = vector.load %arg3[%c0, %c0_0] : memref<128x16xf32, #tpu.memory_space<vmem>>, vector<128x16xf32>
    %c0_1 = arith.constant 0 : index
    %c0_2 = arith.constant 0 : index
    %1 = vector.load %arg4[%c0_1, %c0_2] : memref<16x8xf32, #tpu.memory_space<vmem>>, vector<16x8xf32>
    %cst = arith.constant dense<0.000000e+00> : vector<128x8xf32>
    %2 = tpu.matmul %0, %1, %cst {dimension_numbers = #tpu.dot_dimension_numbers<[1], [0], [0], [1], [0, 0, 1, 1], [], []>} : vector<128x16xf32>, vector<16x8xf32>, vector<128x8xf32> -> vector<128x8xf32>
    %c0_i32 = arith.constant 0 : i32
    %3 = arith.cmpi eq, %arg2, %c0_i32 : i32
    %4 = arith.extui %3 : i1 to i32
    %c0_i32_3 = arith.constant 0 : i32
    %5 = arith.cmpi ne, %4, %c0_i32_3 : i32
    scf.if %5 {
      %c0_8 = arith.constant 0 : index
      %c0_9 = arith.constant 0 : index
      %12 = vector.load %arg7[%c0_8, %c0_9] : memref<128x8xf32, #tpu.memory_space<vmem>>, vector<128x8xf32>
      tpu.vector_store %arg7[%c0_8, %c0_9], %2 {strides = array<i32>} : memref<128x8xf32, #tpu.memory_space<vmem>>, vector<128x8xf32>,
    } else {
    }
    %c0_i32_4 = arith.constant 0 : i32
    %6 = arith.cmpi sgt, %arg2, %c0_i32_4 : i32
    %7 = arith.extui %6 : i1 to i32
    %c0_i32_5 = arith.constant 0 : i32
    %8 = arith.cmpi ne, %7, %c0_i32_5 : i32
    scf.if %8 {
      %c0_8 = arith.constant 0 : index
      %c0_9 = arith.constant 0 : index
      %12 = vector.load %arg7[%c0_8, %c0_9] : memref<128x8xf32, #tpu.memory_space<vmem>>, vector<128x8xf32>
      %13 = arith.addf %12, %2 : vector<128x8xf32>
      %c0_10 = arith.constant 0 : index
      %c0_11 = arith.constant 0 : index
      %14 = vector.load %arg7[%c0_10, %c0_11] : memref<128x8xf32, #tpu.memory_space<vmem>>, vector<128x8xf32>
      tpu.vector_store %arg7[%c0_10, %c0_11], %13 {strides = array<i32>} : memref<128x8xf32, #tpu.memory_space<vmem>>, vector<128x8xf32>,
    } else {
    }
    %c0_i32_6 = arith.constant 0 : i32
    %9 = arith.cmpi eq, %arg2, %c0_i32_6 : i32
    %10 = arith.extui %9 : i1 to i32
    %c0_i32_7 = arith.constant 0 : i32
    %11 = arith.cmpi ne, %10, %c0_i32_7 : i32
    scf.if %11 {
      %c0_8 = arith.constant 0 : index
      %c0_9 = arith.constant 0 : index
      %12 = vector.load %arg7[%c0_8, %c0_9] : memref<128x8xf32, #tpu.memory_space<vmem>>, vector<128x8xf32>
      %c0_10 = arith.constant 0 : index
      %c0_11 = arith.constant 0 : index
      %13 = vector.load %arg5[%c0_10, %c0_11] : memref<1x8xf32, #tpu.memory_space<vmem>>, vector<1x8xf32>
      %14 = vector.broadcast %13 : vector<1x8xf32> to vector<128x8xf32>
      %15 = arith.addf %12, %14 : vector<128x8xf32>
      %cst_12 = arith.constant 0.000000e+00 : f32
      %16 = vector.broadcast %cst_12 : f32 to vector<128x8xf32>
      %17 = arith.maximumf %15, %16 : vector<128x8xf32>
      %c0_13 = arith.constant 0 : index
      %c0_14 = arith.constant 0 : index
      %18 = vector.load %arg6[%c0_13, %c0_14] : memref<128x8xf32, #tpu.memory_space<vmem>>, vector<128x8xf32>
      tpu.vector_store %arg6[%c0_13, %c0_14], %17 {strides = array<i32>} : memref<128x8xf32, #tpu.memory_space<vmem>>, vector<128x8xf32>,
    } else {
    }
    return
  }
  func.func @transform_0(%arg0: i32, %arg1: i32, %arg2: i32) -> (i32, i32) {
    %c0_i32 = arith.constant 0 : i32
    return %arg0, %arg2 : i32, i32
  }
  func.func @transform_1(%arg0: i32, %arg1: i32, %arg2: i32) -> (i32, i32) {
    %c0_i32 = arith.constant 0 : i32
    return %arg2, %arg1 : i32, i32
  }
  func.func @transform_2(%arg0: i32, %arg1: i32, %arg2: i32) -> (i32, i32) {
    %c0_i32 = arith.constant 0 : i32
    %c0_i32_0 = arith.constant 0 : i32
    return %c0_i32, %arg1 : i32, i32
  }
  func.func @transform_3(%arg0: i32, %arg1: i32, %arg2: i32) -> (i32, i32) {
    %c0_i32 = arith.constant 0 : i32
    return %arg0, %arg1 : i32, i32
  }
}

module attributes {stable_mosaic.version = 11 : i64} {
  func.func @_conv2_3x3_kernel(%arg0: i32, %arg1: memref<1x102x8xf32, #tpu.memory_space<vmem>>, %arg2: memref<9x8x8xf32, #tpu.memory_space<vmem>>, %arg3: memref<1x8xf32, #tpu.memory_space<vmem>>, %arg4: memref<1x80x8xf32, #tpu.memory_space<vmem>>) attributes {dimension_semantics = [#tpu.dimension_semantics<parallel>], iteration_bounds = array<i64: 2>, scalar_prefetch = 0 : i64, scratch_operands = 0 : i64, tpu.core_type = #tpu.core_type<tc>, window_params = [{transform_indices = @transform_0, window_bounds = array<i64: 1, 102, 8>}, {pipeline_mode = #tpu.pipeline_mode<synchronous>, transform_indices = @transform_1, window_bounds = array<i64: 9, 8, 8>}, {pipeline_mode = #tpu.pipeline_mode<synchronous>, transform_indices = @transform_2, window_bounds = array<i64: 1, 8>}, {transform_indices = @transform_3, window_bounds = array<i64: 1, 80, 8>}]} {
    %c0 = arith.constant 0 : index
    %c0_0 = arith.constant 0 : index
    %c0_1 = arith.constant 0 : index
    %0 = vector.load %arg1[%c0, %c0_0, %c0_1] : memref<1x102x8xf32, #tpu.memory_space<vmem>>, vector<1x80x8xf32>
    %1 = vector.shape_cast %0 : vector<1x80x8xf32> to vector<80x8xf32>
    %c0_2 = arith.constant 0 : index
    %c0_3 = arith.constant 0 : index
    %c0_4 = arith.constant 0 : index
    %2 = vector.load %arg2[%c0_2, %c0_3, %c0_4] : memref<9x8x8xf32, #tpu.memory_space<vmem>>, vector<1x8x8xf32>
    %3 = vector.shape_cast %2 : vector<1x8x8xf32> to vector<8x8xf32>
    %cst = arith.constant dense<0.000000e+00> : vector<80x8xf32>
    %4 = tpu.matmul %1, %3, %cst {dimension_numbers = #tpu.dot_dimension_numbers<[1], [0], [0], [1], [0, 0, 1, 1], [], []>} : vector<80x8xf32>, vector<8x8xf32>, vector<80x8xf32> -> vector<80x8xf32>
    %c0_5 = arith.constant 0 : index
    %c1 = arith.constant 1 : index
    %c0_6 = arith.constant 0 : index
    %5 = vector.load %arg1[%c0_5, %c1, %c0_6] : memref<1x102x8xf32, #tpu.memory_space<vmem>>, vector<1x80x8xf32>
    %6 = vector.shape_cast %5 : vector<1x80x8xf32> to vector<80x8xf32>
    %c1_7 = arith.constant 1 : index
    %c0_8 = arith.constant 0 : index
    %c0_9 = arith.constant 0 : index
    %7 = vector.load %arg2[%c1_7, %c0_8, %c0_9] : memref<9x8x8xf32, #tpu.memory_space<vmem>>, vector<1x8x8xf32>
    %8 = vector.shape_cast %7 : vector<1x8x8xf32> to vector<8x8xf32>
    %cst_10 = arith.constant dense<0.000000e+00> : vector<80x8xf32>
    %9 = tpu.matmul %6, %8, %cst_10 {dimension_numbers = #tpu.dot_dimension_numbers<[1], [0], [0], [1], [0, 0, 1, 1], [], []>} : vector<80x8xf32>, vector<8x8xf32>, vector<80x8xf32> -> vector<80x8xf32>
    %10 = arith.addf %4, %9 : vector<80x8xf32>
    %c0_11 = arith.constant 0 : index
    %c2 = arith.constant 2 : index
    %c0_12 = arith.constant 0 : index
    %11 = vector.load %arg1[%c0_11, %c2, %c0_12] : memref<1x102x8xf32, #tpu.memory_space<vmem>>, vector<1x80x8xf32>
    %12 = vector.shape_cast %11 : vector<1x80x8xf32> to vector<80x8xf32>
    %c2_13 = arith.constant 2 : index
    %c0_14 = arith.constant 0 : index
    %c0_15 = arith.constant 0 : index
    %13 = vector.load %arg2[%c2_13, %c0_14, %c0_15] : memref<9x8x8xf32, #tpu.memory_space<vmem>>, vector<1x8x8xf32>
    %14 = vector.shape_cast %13 : vector<1x8x8xf32> to vector<8x8xf32>
    %cst_16 = arith.constant dense<0.000000e+00> : vector<80x8xf32>
    %15 = tpu.matmul %12, %14, %cst_16 {dimension_numbers = #tpu.dot_dimension_numbers<[1], [0], [0], [1], [0, 0, 1, 1], [], []>} : vector<80x8xf32>, vector<8x8xf32>, vector<80x8xf32> -> vector<80x8xf32>
    %16 = arith.addf %10, %15 : vector<80x8xf32>
    %c0_17 = arith.constant 0 : index
    %c10 = arith.constant 10 : index
    %c0_18 = arith.constant 0 : index
    %17 = vector.load %arg1[%c0_17, %c10, %c0_18] : memref<1x102x8xf32, #tpu.memory_space<vmem>>, vector<1x80x8xf32>
    %18 = vector.shape_cast %17 : vector<1x80x8xf32> to vector<80x8xf32>
    %c3 = arith.constant 3 : index
    %c0_19 = arith.constant 0 : index
    %c0_20 = arith.constant 0 : index
    %19 = vector.load %arg2[%c3, %c0_19, %c0_20] : memref<9x8x8xf32, #tpu.memory_space<vmem>>, vector<1x8x8xf32>
    %20 = vector.shape_cast %19 : vector<1x8x8xf32> to vector<8x8xf32>
    %cst_21 = arith.constant dense<0.000000e+00> : vector<80x8xf32>
    %21 = tpu.matmul %18, %20, %cst_21 {dimension_numbers = #tpu.dot_dimension_numbers<[1], [0], [0], [1], [0, 0, 1, 1], [], []>} : vector<80x8xf32>, vector<8x8xf32>, vector<80x8xf32> -> vector<80x8xf32>
    %22 = arith.addf %16, %21 : vector<80x8xf32>
    %c0_22 = arith.constant 0 : index
    %c11 = arith.constant 11 : index
    %c0_23 = arith.constant 0 : index
    %23 = vector.load %arg1[%c0_22, %c11, %c0_23] : memref<1x102x8xf32, #tpu.memory_space<vmem>>, vector<1x80x8xf32>
    %24 = vector.shape_cast %23 : vector<1x80x8xf32> to vector<80x8xf32>
    %c4 = arith.constant 4 : index
    %c0_24 = arith.constant 0 : index
    %c0_25 = arith.constant 0 : index
    %25 = vector.load %arg2[%c4, %c0_24, %c0_25] : memref<9x8x8xf32, #tpu.memory_space<vmem>>, vector<1x8x8xf32>
    %26 = vector.shape_cast %25 : vector<1x8x8xf32> to vector<8x8xf32>
    %cst_26 = arith.constant dense<0.000000e+00> : vector<80x8xf32>
    %27 = tpu.matmul %24, %26, %cst_26 {dimension_numbers = #tpu.dot_dimension_numbers<[1], [0], [0], [1], [0, 0, 1, 1], [], []>} : vector<80x8xf32>, vector<8x8xf32>, vector<80x8xf32> -> vector<80x8xf32>
    %28 = arith.addf %22, %27 : vector<80x8xf32>
    %c0_27 = arith.constant 0 : index
    %c12 = arith.constant 12 : index
    %c0_28 = arith.constant 0 : index
    %29 = vector.load %arg1[%c0_27, %c12, %c0_28] : memref<1x102x8xf32, #tpu.memory_space<vmem>>, vector<1x80x8xf32>
    %30 = vector.shape_cast %29 : vector<1x80x8xf32> to vector<80x8xf32>
    %c5 = arith.constant 5 : index
    %c0_29 = arith.constant 0 : index
    %c0_30 = arith.constant 0 : index
    %31 = vector.load %arg2[%c5, %c0_29, %c0_30] : memref<9x8x8xf32, #tpu.memory_space<vmem>>, vector<1x8x8xf32>
    %32 = vector.shape_cast %31 : vector<1x8x8xf32> to vector<8x8xf32>
    %cst_31 = arith.constant dense<0.000000e+00> : vector<80x8xf32>
    %33 = tpu.matmul %30, %32, %cst_31 {dimension_numbers = #tpu.dot_dimension_numbers<[1], [0], [0], [1], [0, 0, 1, 1], [], []>} : vector<80x8xf32>, vector<8x8xf32>, vector<80x8xf32> -> vector<80x8xf32>
    %34 = arith.addf %28, %33 : vector<80x8xf32>
    %c0_32 = arith.constant 0 : index
    %c20 = arith.constant 20 : index
    %c0_33 = arith.constant 0 : index
    %35 = vector.load %arg1[%c0_32, %c20, %c0_33] : memref<1x102x8xf32, #tpu.memory_space<vmem>>, vector<1x80x8xf32>
    %36 = vector.shape_cast %35 : vector<1x80x8xf32> to vector<80x8xf32>
    %c6 = arith.constant 6 : index
    %c0_34 = arith.constant 0 : index
    %c0_35 = arith.constant 0 : index
    %37 = vector.load %arg2[%c6, %c0_34, %c0_35] : memref<9x8x8xf32, #tpu.memory_space<vmem>>, vector<1x8x8xf32>
    %38 = vector.shape_cast %37 : vector<1x8x8xf32> to vector<8x8xf32>
    %cst_36 = arith.constant dense<0.000000e+00> : vector<80x8xf32>
    %39 = tpu.matmul %36, %38, %cst_36 {dimension_numbers = #tpu.dot_dimension_numbers<[1], [0], [0], [1], [0, 0, 1, 1], [], []>} : vector<80x8xf32>, vector<8x8xf32>, vector<80x8xf32> -> vector<80x8xf32>
    %40 = arith.addf %34, %39 : vector<80x8xf32>
    %c0_37 = arith.constant 0 : index
    %c21 = arith.constant 21 : index
    %c0_38 = arith.constant 0 : index
    %41 = vector.load %arg1[%c0_37, %c21, %c0_38] : memref<1x102x8xf32, #tpu.memory_space<vmem>>, vector<1x80x8xf32>
    %42 = vector.shape_cast %41 : vector<1x80x8xf32> to vector<80x8xf32>
    %c7 = arith.constant 7 : index
    %c0_39 = arith.constant 0 : index
    %c0_40 = arith.constant 0 : index
    %43 = vector.load %arg2[%c7, %c0_39, %c0_40] : memref<9x8x8xf32, #tpu.memory_space<vmem>>, vector<1x8x8xf32>
    %44 = vector.shape_cast %43 : vector<1x8x8xf32> to vector<8x8xf32>
    %cst_41 = arith.constant dense<0.000000e+00> : vector<80x8xf32>
    %45 = tpu.matmul %42, %44, %cst_41 {dimension_numbers = #tpu.dot_dimension_numbers<[1], [0], [0], [1], [0, 0, 1, 1], [], []>} : vector<80x8xf32>, vector<8x8xf32>, vector<80x8xf32> -> vector<80x8xf32>
    %46 = arith.addf %40, %45 : vector<80x8xf32>
    %c0_42 = arith.constant 0 : index
    %c22 = arith.constant 22 : index
    %c0_43 = arith.constant 0 : index
    %47 = vector.load %arg1[%c0_42, %c22, %c0_43] : memref<1x102x8xf32, #tpu.memory_space<vmem>>, vector<1x80x8xf32>
    %48 = vector.shape_cast %47 : vector<1x80x8xf32> to vector<80x8xf32>
    %c8 = arith.constant 8 : index
    %c0_44 = arith.constant 0 : index
    %c0_45 = arith.constant 0 : index
    %49 = vector.load %arg2[%c8, %c0_44, %c0_45] : memref<9x8x8xf32, #tpu.memory_space<vmem>>, vector<1x8x8xf32>
    %50 = vector.shape_cast %49 : vector<1x8x8xf32> to vector<8x8xf32>
    %cst_46 = arith.constant dense<0.000000e+00> : vector<80x8xf32>
    %51 = tpu.matmul %48, %50, %cst_46 {dimension_numbers = #tpu.dot_dimension_numbers<[1], [0], [0], [1], [0, 0, 1, 1], [], []>} : vector<80x8xf32>, vector<8x8xf32>, vector<80x8xf32> -> vector<80x8xf32>
    %52 = arith.addf %46, %51 : vector<80x8xf32>
    %c0_47 = arith.constant 0 : index
    %c0_48 = arith.constant 0 : index
    %53 = vector.load %arg3[%c0_47, %c0_48] : memref<1x8xf32, #tpu.memory_space<vmem>>, vector<1x8xf32>
    %54 = vector.broadcast %53 : vector<1x8xf32> to vector<80x8xf32>
    %55 = arith.addf %52, %54 : vector<80x8xf32>
    %cst_49 = arith.constant 0.000000e+00 : f32
    %56 = vector.broadcast %cst_49 : f32 to vector<80x8xf32>
    %57 = arith.maximumf %55, %56 : vector<80x8xf32>
    %c0_50 = arith.constant 0 : index
    %c0_51 = arith.constant 0 : index
    %c0_52 = arith.constant 0 : index
    %58 = vector.load %arg4[%c0_50, %c0_51, %c0_52] : memref<1x80x8xf32, #tpu.memory_space<vmem>>, vector<1x80x8xf32>
    %59 = vector.shape_cast %58 : vector<1x80x8xf32> to vector<80x8xf32>
    %60 = vector.shape_cast %57 : vector<80x8xf32> to vector<1x80x8xf32>
    tpu.vector_store %arg4[%c0_50, %c0_51, %c0_52], %60 {strides = array<i32>} : memref<1x80x8xf32, #tpu.memory_space<vmem>>, vector<1x80x8xf32>,
    return
  }
  func.func @transform_0(%arg0: i32) -> (i32, i32, i32) {
    %c0_i32 = arith.constant 0 : i32
    %c0_i32_0 = arith.constant 0 : i32
    %c0_i32_1 = arith.constant 0 : i32
    return %arg0, %c0_i32, %c0_i32_0 : i32, i32, i32
  }
  func.func @transform_1(%arg0: i32) -> (i32, i32, i32) {
    %c0_i32 = arith.constant 0 : i32
    %c0_i32_0 = arith.constant 0 : i32
    %c0_i32_1 = arith.constant 0 : i32
    %c0_i32_2 = arith.constant 0 : i32
    return %c0_i32, %c0_i32_0, %c0_i32_1 : i32, i32, i32
  }
  func.func @transform_2(%arg0: i32) -> (i32, i32) {
    %c0_i32 = arith.constant 0 : i32
    %c0_i32_0 = arith.constant 0 : i32
    %c0_i32_1 = arith.constant 0 : i32
    return %c0_i32, %c0_i32_0 : i32, i32
  }
  func.func @transform_3(%arg0: i32) -> (i32, i32, i32) {
    %c0_i32 = arith.constant 0 : i32
    %c0_i32_0 = arith.constant 0 : i32
    %c0_i32_1 = arith.constant 0 : i32
    return %arg0, %c0_i32, %c0_i32_0 : i32, i32, i32
  }
}

module attributes {stable_mosaic.version = 11 : i64} {
  func.func @_conv_bn_res_relu_kernel(%arg0: i32, %arg1: i32, %arg2: i32, %arg3: memref<128x8xf32, #tpu.memory_space<vmem>>, %arg4: memref<8x32xf32, #tpu.memory_space<vmem>>, %arg5: memref<1x32xf32, #tpu.memory_space<vmem>>, %arg6: memref<128x16xf32, #tpu.memory_space<vmem>>, %arg7: memref<16x32xf32, #tpu.memory_space<vmem>>, %arg8: memref<128x32xf32, #tpu.memory_space<vmem>>, %arg9: memref<128x32xf32, #tpu.memory_space<vmem>>) attributes {dimension_semantics = [#tpu.dimension_semantics<parallel>, #tpu.dimension_semantics<parallel>, #tpu.dimension_semantics<arbitrary>], iteration_bounds = array<i64: 1, 1, 1>, scalar_prefetch = 0 : i64, scratch_operands = 1 : i64, tpu.core_type = #tpu.core_type<tc>, window_params = [{transform_indices = @transform_0, window_bounds = array<i64: 128, 8>}, {transform_indices = @transform_1, window_bounds = array<i64: 8, 32>}, {transform_indices = @transform_2, window_bounds = array<i64: 1, 32>}, {transform_indices = @transform_3, window_bounds = array<i64: 128, 16>}, {transform_indices = @transform_4, window_bounds = array<i64: 16, 32>}, {transform_indices = @transform_5, window_bounds = array<i64: 128, 32>}]} {
    %c0 = arith.constant 0 : index
    %c0_0 = arith.constant 0 : index
    %0 = vector.load %arg3[%c0, %c0_0] : memref<128x8xf32, #tpu.memory_space<vmem>>, vector<128x8xf32>
    %c0_1 = arith.constant 0 : index
    %c0_2 = arith.constant 0 : index
    %1 = vector.load %arg4[%c0_1, %c0_2] : memref<8x32xf32, #tpu.memory_space<vmem>>, vector<8x32xf32>
    %cst = arith.constant dense<0.000000e+00> : vector<128x32xf32>
    %2 = tpu.matmul %0, %1, %cst {dimension_numbers = #tpu.dot_dimension_numbers<[1], [0], [0], [1], [0, 0, 1, 1], [], []>} : vector<128x8xf32>, vector<8x32xf32>, vector<128x32xf32> -> vector<128x32xf32>
    %c0_i32 = arith.constant 0 : i32
    %3 = arith.cmpi eq, %arg2, %c0_i32 : i32
    %4 = arith.extui %3 : i1 to i32
    %c0_i32_3 = arith.constant 0 : i32
    %5 = arith.cmpi ne, %4, %c0_i32_3 : i32
    scf.if %5 {
      %c0_8 = arith.constant 0 : index
      %c0_9 = arith.constant 0 : index
      %12 = vector.load %arg6[%c0_8, %c0_9] : memref<128x16xf32, #tpu.memory_space<vmem>>, vector<128x16xf32>
      %c0_10 = arith.constant 0 : index
      %c0_11 = arith.constant 0 : index
      %13 = vector.load %arg7[%c0_10, %c0_11] : memref<16x32xf32, #tpu.memory_space<vmem>>, vector<16x32xf32>
      %cst_12 = arith.constant dense<0.000000e+00> : vector<128x32xf32>
      %14 = tpu.matmul %12, %13, %cst_12 {dimension_numbers = #tpu.dot_dimension_numbers<[1], [0], [0], [1], [0, 0, 1, 1], [], []>} : vector<128x16xf32>, vector<16x32xf32>, vector<128x32xf32> -> vector<128x32xf32>
      %15 = arith.addf %2, %14 : vector<128x32xf32>
      %c0_13 = arith.constant 0 : index
      %c0_14 = arith.constant 0 : index
      %16 = vector.load %arg9[%c0_13, %c0_14] : memref<128x32xf32, #tpu.memory_space<vmem>>, vector<128x32xf32>
      tpu.vector_store %arg9[%c0_13, %c0_14], %15 {strides = array<i32>} : memref<128x32xf32, #tpu.memory_space<vmem>>, vector<128x32xf32>,
    } else {
    }
    %c0_i32_4 = arith.constant 0 : i32
    %6 = arith.cmpi sgt, %arg2, %c0_i32_4 : i32
    %7 = arith.extui %6 : i1 to i32
    %c0_i32_5 = arith.constant 0 : i32
    %8 = arith.cmpi ne, %7, %c0_i32_5 : i32
    scf.if %8 {
      %c0_8 = arith.constant 0 : index
      %c0_9 = arith.constant 0 : index
      %12 = vector.load %arg9[%c0_8, %c0_9] : memref<128x32xf32, #tpu.memory_space<vmem>>, vector<128x32xf32>
      %13 = arith.addf %12, %2 : vector<128x32xf32>
      %c0_10 = arith.constant 0 : index
      %c0_11 = arith.constant 0 : index
      %14 = vector.load %arg9[%c0_10, %c0_11] : memref<128x32xf32, #tpu.memory_space<vmem>>, vector<128x32xf32>
      tpu.vector_store %arg9[%c0_10, %c0_11], %13 {strides = array<i32>} : memref<128x32xf32, #tpu.memory_space<vmem>>, vector<128x32xf32>,
    } else {
    }
    %c0_i32_6 = arith.constant 0 : i32
    %9 = arith.cmpi eq, %arg2, %c0_i32_6 : i32
    %10 = arith.extui %9 : i1 to i32
    %c0_i32_7 = arith.constant 0 : i32
    %11 = arith.cmpi ne, %10, %c0_i32_7 : i32
    scf.if %11 {
      %c0_8 = arith.constant 0 : index
      %c0_9 = arith.constant 0 : index
      %12 = vector.load %arg9[%c0_8, %c0_9] : memref<128x32xf32, #tpu.memory_space<vmem>>, vector<128x32xf32>
      %c0_10 = arith.constant 0 : index
      %c0_11 = arith.constant 0 : index
      %13 = vector.load %arg5[%c0_10, %c0_11] : memref<1x32xf32, #tpu.memory_space<vmem>>, vector<1x32xf32>
      %14 = vector.broadcast %13 : vector<1x32xf32> to vector<128x32xf32>
      %15 = arith.addf %12, %14 : vector<128x32xf32>
      %cst_12 = arith.constant 0.000000e+00 : f32
      %16 = vector.broadcast %cst_12 : f32 to vector<128x32xf32>
      %17 = arith.maximumf %15, %16 : vector<128x32xf32>
      %c0_13 = arith.constant 0 : index
      %c0_14 = arith.constant 0 : index
      %18 = vector.load %arg8[%c0_13, %c0_14] : memref<128x32xf32, #tpu.memory_space<vmem>>, vector<128x32xf32>
      tpu.vector_store %arg8[%c0_13, %c0_14], %17 {strides = array<i32>} : memref<128x32xf32, #tpu.memory_space<vmem>>, vector<128x32xf32>,
    } else {
    }
    return
  }
  func.func @transform_0(%arg0: i32, %arg1: i32, %arg2: i32) -> (i32, i32) {
    %c0_i32 = arith.constant 0 : i32
    return %arg0, %arg2 : i32, i32
  }
  func.func @transform_1(%arg0: i32, %arg1: i32, %arg2: i32) -> (i32, i32) {
    %c0_i32 = arith.constant 0 : i32
    return %arg2, %arg1 : i32, i32
  }
  func.func @transform_2(%arg0: i32, %arg1: i32, %arg2: i32) -> (i32, i32) {
    %c0_i32 = arith.constant 0 : i32
    %c0_i32_0 = arith.constant 0 : i32
    return %c0_i32, %arg1 : i32, i32
  }
  func.func @transform_3(%arg0: i32, %arg1: i32, %arg2: i32) -> (i32, i32) {
    %c0_i32 = arith.constant 0 : i32
    %c0_i32_0 = arith.constant 0 : i32
    return %arg0, %c0_i32 : i32, i32
  }
  func.func @transform_4(%arg0: i32, %arg1: i32, %arg2: i32) -> (i32, i32) {
    %c0_i32 = arith.constant 0 : i32
    %c0_i32_0 = arith.constant 0 : i32
    return %c0_i32, %arg1 : i32, i32
  }
  func.func @transform_5(%arg0: i32, %arg1: i32, %arg2: i32) -> (i32, i32) {
    %c0_i32 = arith.constant 0 : i32
    return %arg0, %arg1 : i32, i32
  }
}

</mosaic_0001>

<llo_original>
// kernel: bottleneck_forward.3
$region0: #{bottleneck_forward.3}
  #allocation0 [shape = 'u32[]', space=smem, size = 0x4, offset = 0x4, fixed_abs, tag = 'smem constant byte address 0x4 - core index']
  #allocation1 [shape = 'u32[144,128]{1,0:T(1,128)}', space=vmem, size = 0x12000, scoped, tag = 'internal scratch']
  #allocation2 [shape = 'f32[128,8]{1,0:T(8,128)}', space=vmem, size = 0x10000, scoped, tag = 'scratch operand']
  %s0 = inlined_call_operand.hbm [shape: f32[128,16], index: 0, kind: input, shape index: {}]
  %s1 = inlined_call_operand.vmem [shape: f32[16,8], index: 1, kind: input, shape index: {}]
  %s2 = inlined_call_operand.vmem [shape: f32[1,8], index: 2, kind: input, shape index: {}]
  %s3 = inlined_call_operand.vmem [shape: f32[128,8], index: 3, kind: output, shape index: {}]
  %s4 = sld [smem:[#allocation0]]
  $region38: #{bottleneck_forward.3} parent=0
    _
  %s6 = ssub.s32 1, %s4
  %s7 = scalar_select 0, %s6, %s4
  $region1: #{bottleneck_forward.3} parent=0
    #allocation3 [shape = 'u8[65536]{0}', space=vmem, size = 0x10000, scoped, tag = 'input window, operand 0, single buffered']
    #allocation4 [shape = 's32[1]{0}', space=sflag, size = 0x4, scoped, tag = 'scoped memory for bottleneck_forward.3']
    %8 = vsyncpa [#allocation4], 0
    // Predicated region
    $region2: #{bottleneck_forward.3} parent=1 // pred_check
      _
    $region3: #{bottleneck_forward.3} parent=1 // pred_check_branch
      %10 = sbr.rel (0) target = $region5
    $region4: #{bottleneck_forward.3} parent=1 // pred_region
      %s12 = ssub.s32 2048, 2048
      %13 = vsyncadd [#allocation4], %s12
      %s14 = sshll.u32 [#allocation3], 4
      %s15 = int_to_ptr.vmem [resolvable:$true] %s14
      %20 = dma.hbm_to_vmem [thread:$0]  %s0, 2048, %s15, [#allocation4], 128, 128, 8
    $region5: #{bottleneck_forward.3} parent=1 // pred_fallthru
      _
    // Predicated region
    $region6: #{bottleneck_forward.3} parent=1 // pred_check
      _
    $region7: #{bottleneck_forward.3} parent=1 // pred_check_branch
      %22 = sbr.rel (0) target = $region9
    $region8: #{bottleneck_forward.3} parent=1 // pred_region
      _
    $region9: #{bottleneck_forward.3} parent=1 // pred_fallthru
      _
    // Predicated region
    $region10: #{bottleneck_forward.3} parent=1 // pred_check
      _
    $region11: #{bottleneck_forward.3} parent=1 // pred_check_branch
      %24 = sbr.rel (0) target = $region13
    $region12: #{bottleneck_forward.3} parent=1 // pred_region
      _
    $region13: #{bottleneck_forward.3} parent=1 // pred_fallthru
      _
    // Predicated region
    $region14: #{bottleneck_forward.3} parent=1 // pred_check
      _
    $region15: #{bottleneck_forward.3} parent=1 // pred_check_branch
      %26 = sbr.rel (0) target = $region17
    $region16: #{bottleneck_forward.3} parent=1 // pred_region
      %27 = dma.done [#allocation4], 2048
    $region17: #{bottleneck_forward.3} parent=1 // pred_fallthru
      _
    %v28 = vld [vmem:[#allocation3] sm:$0xff]
    %v29 = vld [vmem:[#allocation3 + $0x8] sm:$0xff]
    %v30 = vld [vmem:[#allocation3 + $0x10] sm:$0xff]
    %v31 = vld [vmem:[#allocation3 + $0x18] sm:$0xff]
    %v32 = vld [vmem:[#allocation3 + $0x20] sm:$0xff]
    %v33 = vld [vmem:[#allocation3 + $0x28] sm:$0xff]
    %v34 = vld [vmem:[#allocation3 + $0x30] sm:$0xff]
    %v35 = vld [vmem:[#allocation3 + $0x38] sm:$0xff]
    %v36 = vld [vmem:[#allocation3 + $0x40] sm:$0xff]
    %v37 = vld [vmem:[#allocation3 + $0x48] sm:$0xff]
    %v38 = vld [vmem:[#allocation3 + $0x50] sm:$0xff]
    %v39 = vld [vmem:[#allocation3 + $0x58] sm:$0xff]
    %v40 = vld [vmem:[#allocation3 + $0x60] sm:$0xff]
    %v41 = vld [vmem:[#allocation3 + $0x68] sm:$0xff]
    %v42 = vld [vmem:[#allocation3 + $0x70] sm:$0xff]
    %v43 = vld [vmem:[#allocation3 + $0x78] sm:$0xff]
    %v44 = vld [vmem:[%s1] sm:$0xff]
    %v45 = vld [vmem:[%s1 + $0x8] sm:$0xff]
    %vm46 = vcmask 130048
    %v48 = vsel %vm46, %v28, 0
    %v51 = vsel %vm46, %v29, 0
    %v54 = vsel %vm46, %v30, 0
    %v57 = vsel %vm46, %v31, 0
    %v60 = vsel %vm46, %v32, 0
    %v63 = vsel %vm46, %v33, 0
    %v66 = vsel %vm46, %v34, 0
    %v69 = vsel %vm46, %v35, 0
    %v72 = vsel %vm46, %v36, 0
    %v75 = vsel %vm46, %v37, 0
    %v78 = vsel %vm46, %v38, 0
    %v81 = vsel %vm46, %v39, 0
    %v84 = vsel %vm46, %v40, 0
    %v87 = vsel %vm46, %v41, 0
    %v90 = vsel %vm46, %v42, 0
    %v93 = vsel %vm46, %v43, 0
    %95 = vmatprep.subr.mxu0 0.0
    %96 = vmatpush1.msra.mxu0 %v44
    %97 = vmatprep.subr.mxu0 0.0
    %98 = vmatpush1.msra.mxu0 %v45
    %99 = vmatprep.subr.mxu0 0.0
    %100 = vmatpush1.msra.mxu0 0.0
    %101 = vmatprep.subr.mxu0 0.0
    %102 = vmatpush1.msra.mxu0 0.0
    %103 = vmatprep.subr.mxu0 0.0
    %104 = vmatpush1.msra.mxu0 0.0
    %105 = vmatprep.subr.mxu0 0.0
    %106 = vmatpush1.msra.mxu0 0.0
    %107 = vmatprep.subr.mxu0 0.0
    %108 = vmatpush1.msra.mxu0 0.0
    %109 = vmatprep.subr.mxu0 0.0
    %110 = vmatpush1.msra.mxu0 0.0
    %111 = vmatprep.subr.mxu0 0.0
    %112 = vmatpush1.msra.mxu0 0.0
    %113 = vmatprep.subr.mxu0 0.0
    %114 = vmatpush1.msra.mxu0 0.0
    %115 = vmatprep.subr.mxu0 0.0
    %116 = vmatpush1.msra.mxu0 0.0
    %117 = vmatprep.subr.mxu0 0.0
    %118 = vmatpush1.msra.mxu0 0.0
    %119 = vmatprep.subr.mxu0 0.0
    %120 = vmatpush1.msra.mxu0 0.0
    %121 = vmatprep.subr.mxu0 0.0
    %122 = vmatpush1.msra.mxu0 0.0
    %123 = vmatprep.subr.mxu0 0.0
    %124 = vmatpush1.msra.mxu0 0.0
    %125 = vmatprep.subr.mxu0 0.0
    %126 = vmatpush1.msra.mxu0 0.0
    %127 = vmatprep.subr.mxu0 0.0
    %128 = vmatpush1.msra.mxu0 0.0
    %129 = vmatprep.subr.mxu0 0.0
    %130 = vmatpush1.msra.mxu0 0.0
    %131 = vmatprep.subr.mxu0 0.0
    %132 = vmatpush1.msra.mxu0 0.0
    %133 = vmatprep.subr.mxu0 0.0
    %134 = vmatpush1.msra.mxu0 0.0
    %135 = vmatprep.subr.mxu0 0.0
    %136 = vmatpush1.msra.mxu0 0.0
    %137 = vmatprep.subr.mxu0 0.0
    %138 = vmatpush1.msra.mxu0 0.0
    %139 = vmatprep.subr.mxu0 0.0
    %140 = vmatpush1.msra.mxu0 0.0
    %141 = vmatprep.subr.mxu0 0.0
    %142 = vmatpush1.msra.mxu0 0.0
    %143 = vmatprep.subr.mxu0 0.0
    %144 = vmatpush1.msra.mxu0 0.0
    %145 = vmatprep.subr.mxu0 0.0
    %146 = vmatpush1.msra.mxu0 0.0
    %147 = vmatprep.subr.mxu0 0.0
    %148 = vmatpush1.msra.mxu0 0.0
    %149 = vmatprep.subr.mxu0 0.0
    %150 = vmatpush1.msra.mxu0 0.0
    %151 = vmatprep.subr.mxu0 0.0
    %152 = vmatpush1.msra.mxu0 0.0
    %153 = vmatprep.subr.mxu0 0.0
    %154 = vmatpush1.msra.mxu0 0.0
    %155 = vmatprep.subr.mxu0 0.0
    %156 = vmatpush1.msra.mxu0 0.0
    %157 = vmatprep.subr.mxu0 0.0
    %158 = vmatpush1.msra.mxu0 0.0
    %159 = vmatprep.mubr.f32.mxu0 0.0
    %160 = vmatmul.mubr.f32.gmra.mrb[0].mxu0 %v48
    %v161 = vpop.f32.mrb[0].mxu0
    %v162 = vadd.f32 0.0, %v161
    %v163 = vpop.f32.mrb[0].mxu0
    %164 = vmatprep.mubr.f32.mxu0 0.0
    %165 = vmatmul.mubr.f32.gmra.mrb[0].mxu0 %v51
    %v166 = vpop.f32.mrb[0].mxu0
    %v167 = vadd.f32 0.0, %v166
    %v168 = vpop.f32.mrb[0].mxu0
    %169 = vmatprep.mubr.f32.mxu0 0.0
    %170 = vmatmul.mubr.f32.gmra.mrb[0].mxu0 %v54
    %v171 = vpop.f32.mrb[0].mxu0
    %v172 = vadd.f32 0.0, %v171
    %v173 = vpop.f32.mrb[0].mxu0
    %174 = vmatprep.mubr.f32.mxu0 0.0
    %175 = vmatmul.mubr.f32.gmra.mrb[0].mxu0 %v57
    %v176 = vpop.f32.mrb[0].mxu0
    %v177 = vadd.f32 0.0, %v176
    %v178 = vpop.f32.mrb[0].mxu0
    %179 = vmatprep.mubr.f32.mxu0 0.0
    %180 = vmatmul.mubr.f32.gmra.mrb[0].mxu0 %v60
    %v181 = vpop.f32.mrb[0].mxu0
    %v182 = vadd.f32 0.0, %v181
    %v183 = vpop.f32.mrb[0].mxu0
    %184 = vmatprep.mubr.f32.mxu0 0.0
    %185 = vmatmul.mubr.f32.gmra.mrb[0].mxu0 %v63
    %v186 = vpop.f32.mrb[0].mxu0
    %v187 = vadd.f32 0.0, %v186
    %v188 = vpop.f32.mrb[0].mxu0
    %189 = vmatprep.mubr.f32.mxu0 0.0
    %190 = vmatmul.mubr.f32.gmra.mrb[0].mxu0 %v66
    %v191 = vpop.f32.mrb[0].mxu0
    %v192 = vadd.f32 0.0, %v191
    %v193 = vpop.f32.mrb[0].mxu0
    %194 = vmatprep.mubr.f32.mxu0 0.0
    %195 = vmatmul.mubr.f32.gmra.mrb[0].mxu0 %v69
    %v196 = vpop.f32.mrb[0].mxu0
    %v197 = vadd.f32 0.0, %v196
    %v198 = vpop.f32.mrb[0].mxu0
    %199 = vmatprep.mubr.f32.mxu0 0.0
    %200 = vmatmul.mubr.f32.gmra.mrb[0].mxu0 %v72
    %v201 = vpop.f32.mrb[0].mxu0
    %v202 = vadd.f32 0.0, %v201
    %v203 = vpop.f32.mrb[0].mxu0
    %204 = vmatprep.mubr.f32.mxu0 0.0
    %205 = vmatmul.mubr.f32.gmra.mrb[0].mxu0 %v75
    %v206 = vpop.f32.mrb[0].mxu0
    %v207 = vadd.f32 0.0, %v206
    %v208 = vpop.f32.mrb[0].mxu0
    %209 = vmatprep.mubr.f32.mxu0 0.0
    %210 = vmatmul.mubr.f32.gmra.mrb[0].mxu0 %v78
    %v211 = vpop.f32.mrb[0].mxu0
    %v212 = vadd.f32 0.0, %v211
    %v213 = vpop.f32.mrb[0].mxu0
    %214 = vmatprep.mubr.f32.mxu0 0.0
    %215 = vmatmul.mubr.f32.gmra.mrb[0].mxu0 %v81
    %v216 = vpop.f32.mrb[0].mxu0
    %v217 = vadd.f32 0.0, %v216
    %v218 = vpop.f32.mrb[0].mxu0
    %219 = vmatprep.mubr.f32.mxu0 0.0
    %220 = vmatmul.mubr.f32.gmra.mrb[0].mxu0 %v84
    %v221 = vpop.f32.mrb[0].mxu0
    %v222 = vadd.f32 0.0, %v221
    %v223 = vpop.f32.mrb[0].mxu0
    %224 = vmatprep.mubr.f32.mxu0 0.0
    %225 = vmatmul.mubr.f32.gmra.mrb[0].mxu0 %v87
    %v226 = vpop.f32.mrb[0].mxu0
    %v227 = vadd.f32 0.0, %v226
    %v228 = vpop.f32.mrb[0].mxu0
    %229 = vmatprep.mubr.f32.mxu0 0.0
    %230 = vmatmul.mubr.f32.gmra.mrb[0].mxu0 %v90
    %v231 = vpop.f32.mrb[0].mxu0
    %v232 = vadd.f32 0.0, %v231
    %v233 = vpop.f32.mrb[0].mxu0
    %234 = vmatprep.mubr.f32.mxu0 0.0
    %235 = vmatmul.mubr.f32.gmra.mrb[0].mxu0 %v93
    %v236 = vpop.f32.mrb[0].mxu0
    %v237 = vadd.f32 0.0, %v236
    %v238 = vpop.f32.mrb[0].mxu0
    %239 = vdwg.mxu0
    %p240 = scmp.eq.s32.totalorder 0, 0
    // Predicated region
    $region18: #{bottleneck_forward.3} parent=1 // pred_check
      %p241 = pneg %p240
    $region19: #{bottleneck_forward.3} parent=1 // pred_check_branch
      %243 = sbr.rel (%p241) target = $region21
    $region20: #{bottleneck_forward.3} parent=1 // pred_region
      %vm244 = vcmask 64512
      %245 = vst.msk [vmem:[#allocation2] sm:$0xff] %vm244, %v162
      %246 = vst.msk [vmem:[#allocation2 + $0x8] sm:$0xff] %vm244, %v167
      %247 = vst.msk [vmem:[#allocation2 + $0x10] sm:$0xff] %vm244, %v172
      %248 = vst.msk [vmem:[#allocation2 + $0x18] sm:$0xff] %vm244, %v177
      %249 = vst.msk [vmem:[#allocation2 + $0x20] sm:$0xff] %vm244, %v182
      %250 = vst.msk [vmem:[#allocation2 + $0x28] sm:$0xff] %vm244, %v187
      %251 = vst.msk [vmem:[#allocation2 + $0x30] sm:$0xff] %vm244, %v192
      %252 = vst.msk [vmem:[#allocation2 + $0x38] sm:$0xff] %vm244, %v197
      %253 = vst.msk [vmem:[#allocation2 + $0x40] sm:$0xff] %vm244, %v202
      %254 = vst.msk [vmem:[#allocation2 + $0x48] sm:$0xff] %vm244, %v207
      %255 = vst.msk [vmem:[#allocation2 + $0x50] sm:$0xff] %vm244, %v212
      %256 = vst.msk [vmem:[#allocation2 + $0x58] sm:$0xff] %vm244, %v217
      %257 = vst.msk [vmem:[#allocation2 + $0x60] sm:$0xff] %vm244, %v222
      %258 = vst.msk [vmem:[#allocation2 + $0x68] sm:$0xff] %vm244, %v227
      %259 = vst.msk [vmem:[#allocation2 + $0x70] sm:$0xff] %vm244, %v232
      %260 = vst.msk [vmem:[#allocation2 + $0x78] sm:$0xff] %vm244, %v237
    $region21: #{bottleneck_forward.3} parent=1 // pred_fallthru
      _
    %p261 = scmp.gt.s32.totalorder 0, 0
    // Predicated region
    $region22: #{bottleneck_forward.3} parent=1 // pred_check
      %p262 = pneg %p261
    $region23: #{bottleneck_forward.3} parent=1 // pred_check_branch
      %264 = sbr.rel (%p262) target = $region25
    $region24: #{bottleneck_forward.3} parent=1 // pred_region
      %v265 = vld [vmem:[#allocation2] sm:$0xff]
      %v266 = vld [vmem:[#allocation2 + $0x8] sm:$0xff]
      %v267 = vld [vmem:[#allocation2 + $0x10] sm:$0xff]
      %v268 = vld [vmem:[#allocation2 + $0x18] sm:$0xff]
      %v269 = vld [vmem:[#allocation2 + $0x20] sm:$0xff]
      %v270 = vld [vmem:[#allocation2 + $0x28] sm:$0xff]
      %v271 = vld [vmem:[#allocation2 + $0x30] sm:$0xff]
      %v272 = vld [vmem:[#allocation2 + $0x38] sm:$0xff]
      %v273 = vld [vmem:[#allocation2 + $0x40] sm:$0xff]
      %v274 = vld [vmem:[#allocation2 + $0x48] sm:$0xff]
      %v275 = vld [vmem:[#allocation2 + $0x50] sm:$0xff]
      %v276 = vld [vmem:[#allocation2 + $0x58] sm:$0xff]
      %v277 = vld [vmem:[#allocation2 + $0x60] sm:$0xff]
      %v278 = vld [vmem:[#allocation2 + $0x68] sm:$0xff]
      %v279 = vld [vmem:[#allocation2 + $0x70] sm:$0xff]
      %v280 = vld [vmem:[#allocation2 + $0x78] sm:$0xff]
      %v281 = vadd.f32 %v265, %v162
      %v282 = vadd.f32 %v266, %v167
      %v283 = vadd.f32 %v267, %v172
      %v284 = vadd.f32 %v268, %v177
      %v285 = vadd.f32 %v269, %v182
      %v286 = vadd.f32 %v270, %v187
      %v287 = vadd.f32 %v271, %v192
      %v288 = vadd.f32 %v272, %v197
      %v289 = vadd.f32 %v273, %v202
      %v290 = vadd.f32 %v274, %v207
      %v291 = vadd.f32 %v275, %v212
      %v292 = vadd.f32 %v276, %v217
      %v293 = vadd.f32 %v277, %v222
      %v294 = vadd.f32 %v278, %v227
      %v295 = vadd.f32 %v279, %v232
      %v296 = vadd.f32 %v280, %v237
      %vm297 = vcmask 64512
      %298 = vst.msk [vmem:[#allocation2] sm:$0xff] %vm297, %v281
      %299 = vst.msk [vmem:[#allocation2 + $0x8] sm:$0xff] %vm297, %v282
      %300 = vst.msk [vmem:[#allocation2 + $0x10] sm:$0xff] %vm297, %v283
      %301 = vst.msk [vmem:[#allocation2 + $0x18] sm:$0xff] %vm297, %v284
      %302 = vst.msk [vmem:[#allocation2 + $0x20] sm:$0xff] %vm297, %v285
      %303 = vst.msk [vmem:[#allocation2 + $0x28] sm:$0xff] %vm297, %v286
      %304 = vst.msk [vmem:[#allocation2 + $0x30] sm:$0xff] %vm297, %v287
      %305 = vst.msk [vmem:[#allocation2 + $0x38] sm:$0xff] %vm297, %v288
      %306 = vst.msk [vmem:[#allocation2 + $0x40] sm:$0xff] %vm297, %v289
      %307 = vst.msk [vmem:[#allocation2 + $0x48] sm:$0xff] %vm297, %v290
      %308 = vst.msk [vmem:[#allocation2 + $0x50] sm:$0xff] %vm297, %v291
      %309 = vst.msk [vmem:[#allocation2 + $0x58] sm:$0xff] %vm297, %v292
      %310 = vst.msk [vmem:[#allocation2 + $0x60] sm:$0xff] %vm297, %v293
      %311 = vst.msk [vmem:[#allocation2 + $0x68] sm:$0xff] %vm297, %v294
      %312 = vst.msk [vmem:[#allocation2 + $0x70] sm:$0xff] %vm297, %v295
      %313 = vst.msk [vmem:[#allocation2 + $0x78] sm:$0xff] %vm297, %v296
    $region25: #{bottleneck_forward.3} parent=1 // pred_fallthru
      _
    // Predicated region
    $region26: #{bottleneck_forward.3} parent=1 // pred_check
      %p314 = pneg %p240
    $region27: #{bottleneck_forward.3} parent=1 // pred_check_branch
      %316 = sbr.rel (%p314) target = $region29
    $region28: #{bottleneck_forward.3} parent=1 // pred_region
      %v317 = vld [vmem:[#allocation2] sm:$0xff]
      %v318 = vld [vmem:[#allocation2 + $0x8] sm:$0xff]
      %v319 = vld [vmem:[#allocation2 + $0x10] sm:$0xff]
      %v320 = vld [vmem:[#allocation2 + $0x18] sm:$0xff]
      %v321 = vld [vmem:[#allocation2 + $0x20] sm:$0xff]
      %v322 = vld [vmem:[#allocation2 + $0x28] sm:$0xff]
      %v323 = vld [vmem:[#allocation2 + $0x30] sm:$0xff]
      %v324 = vld [vmem:[#allocation2 + $0x38] sm:$0xff]
      %v325 = vld [vmem:[#allocation2 + $0x40] sm:$0xff]
      %v326 = vld [vmem:[#allocation2 + $0x48] sm:$0xff]
      %v327 = vld [vmem:[#allocation2 + $0x50] sm:$0xff]
      %v328 = vld [vmem:[#allocation2 + $0x58] sm:$0xff]
      %v329 = vld [vmem:[#allocation2 + $0x60] sm:$0xff]
      %v330 = vld [vmem:[#allocation2 + $0x68] sm:$0xff]
      %v331 = vld [vmem:[#allocation2 + $0x70] sm:$0xff]
      %v332 = vld [vmem:[#allocation2 + $0x78] sm:$0xff]
      %v333 = vld [vmem:[%s2] sm:$0x1]
      %v335 = vlaneseq
      %v336 = vshrl.u32 %v335, 7
      %v337 = vsub.s32 0, %v336
      %v338 = vrot.slane %v333, %v337
      %v340 = vadd.f32 %v317, %v338
      %v341 = vadd.f32 %v318, %v338
      %v342 = vadd.f32 %v319, %v338
      %v343 = vadd.f32 %v320, %v338
      %v344 = vadd.f32 %v321, %v338
      %v345 = vadd.f32 %v322, %v338
      %v346 = vadd.f32 %v323, %v338
      %v347 = vadd.f32 %v324, %v338
      %v348 = vadd.f32 %v325, %v338
      %v349 = vadd.f32 %v326, %v338
      %v350 = vadd.f32 %v327, %v338
      %v351 = vadd.f32 %v328, %v338
      %v352 = vadd.f32 %v329, %v338
      %v353 = vadd.f32 %v330, %v338
      %v354 = vadd.f32 %v331, %v338
      %v355 = vadd.f32 %v332, %v338
      %v356 = vmax.f32 %v340, 0.0
      %v357 = vmax.f32 %v341, 0.0
      %v358 = vmax.f32 %v342, 0.0
      %v359 = vmax.f32 %v343, 0.0
      %v360 = vmax.f32 %v344, 0.0
      %v361 = vmax.f32 %v345, 0.0
      %v362 = vmax.f32 %v346, 0.0
      %v363 = vmax.f32 %v347, 0.0
      %v364 = vmax.f32 %v348, 0.0
      %v365 = vmax.f32 %v349, 0.0
      %v366 = vmax.f32 %v350, 0.0
      %v367 = vmax.f32 %v351, 0.0
      %v368 = vmax.f32 %v352, 0.0
      %v369 = vmax.f32 %v353, 0.0
      %v370 = vmax.f32 %v354, 0.0
      %v371 = vmax.f32 %v355, 0.0
      %vm372 = vcmask 64512
      %373 = vst.msk [vmem:[%s3] sm:$0xff] %vm372, %v356
      %374 = vst.msk [vmem:[%s3 + $0x8] sm:$0xff] %vm372, %v357
      %375 = vst.msk [vmem:[%s3 + $0x10] sm:$0xff] %vm372, %v358
      %376 = vst.msk [vmem:[%s3 + $0x18] sm:$0xff] %vm372, %v359
      %377 = vst.msk [vmem:[%s3 + $0x20] sm:$0xff] %vm372, %v360
      %378 = vst.msk [vmem:[%s3 + $0x28] sm:$0xff] %vm372, %v361
      %379 = vst.msk [vmem:[%s3 + $0x30] sm:$0xff] %vm372, %v362
      %380 = vst.msk [vmem:[%s3 + $0x38] sm:$0xff] %vm372, %v363
      %381 = vst.msk [vmem:[%s3 + $0x40] sm:$0xff] %vm372, %v364
      %382 = vst.msk [vmem:[%s3 + $0x48] sm:$0xff] %vm372, %v365
      %383 = vst.msk [vmem:[%s3 + $0x50] sm:$0xff] %vm372, %v366
      %384 = vst.msk [vmem:[%s3 + $0x58] sm:$0xff] %vm372, %v367
      %385 = vst.msk [vmem:[%s3 + $0x60] sm:$0xff] %vm372, %v368
      %386 = vst.msk [vmem:[%s3 + $0x68] sm:$0xff] %vm372, %v369
      %387 = vst.msk [vmem:[%s3 + $0x70] sm:$0xff] %vm372, %v370
      %388 = vst.msk [vmem:[%s3 + $0x78] sm:$0xff] %vm372, %v371
    $region29: #{bottleneck_forward.3} parent=1 // pred_fallthru
      _
    // Predicated region
    $region30: #{bottleneck_forward.3} parent=1 // pred_check
      _
    $region31: #{bottleneck_forward.3} parent=1 // pred_check_branch
      %390 = sbr.rel (0) target = $region33
    $region32: #{bottleneck_forward.3} parent=1 // pred_region
      _
    $region33: #{bottleneck_forward.3} parent=1 // pred_fallthru
      _
    // Predicated region
    $region34: #{bottleneck_forward.3} parent=1 // pred_check
      _
    $region35: #{bottleneck_forward.3} parent=1 // pred_check_branch
      %392 = sbr.rel (0) target = $region37
    $region36: #{bottleneck_forward.3} parent=1 // pred_region
      _
    $region37: #{bottleneck_forward.3} parent=1 // pred_fallthru
      _
    %393 = vsyncpa [#allocation4], 1

// kernel: bottleneck_forward.5
$region0: #{bottleneck_forward.5}
  #allocation0 [shape = 'u32[]', space=smem, size = 0x4, offset = 0x4, fixed_abs, tag = 'smem constant byte address 0x4 - core index']
  #allocation1 [shape = 'u32[144,128]{1,0:T(1,128)}', space=vmem, size = 0x12000, scoped, tag = 'internal scratch']
  #allocation2 [shape = 'f32[128,32]{1,0:T(8,128)}', space=vmem, size = 0x10000, scoped, tag = 'scratch operand']
  %s0 = inlined_call_operand.vmem [shape: f32[128,8], index: 0, kind: input, shape index: {}]
  %s1 = inlined_call_operand.vmem [shape: f32[8,32], index: 1, kind: input, shape index: {}]
  %s2 = inlined_call_operand.vmem [shape: f32[1,32], index: 2, kind: input, shape index: {}]
  %s3 = inlined_call_operand.vmem [shape: f32[128,16], index: 3, kind: input, shape index: {}]
  %s4 = inlined_call_operand.vmem [shape: f32[16,32], index: 4, kind: input, shape index: {}]
  %s5 = inlined_call_operand.hbm [shape: f32[128,32], index: 5, kind: output, shape index: {}]
  %s6 = sld [smem:[#allocation0]]
  $region42: #{bottleneck_forward.5} parent=0
    _
  %s8 = ssub.s32 1, %s6
  %s9 = scalar_select 0, %s8, %s6
  $region1: #{bottleneck_forward.5} parent=0
    #allocation3 [shape = 'u8[65536]{0}', space=vmem, size = 0x10000, scoped, tag = 'output window, operand 0, single buffered']
    #allocation4 [shape = 's32[1]{0}', space=sflag, size = 0x4, scoped, tag = 'scoped memory for bottleneck_forward.5']
    %10 = vsyncpa [#allocation4], 0
    // Predicated region
    $region2: #{bottleneck_forward.5} parent=1 // pred_check
      _
    $region3: #{bottleneck_forward.5} parent=1 // pred_check_branch
      %12 = sbr.rel (0) target = $region5
    $region4: #{bottleneck_forward.5} parent=1 // pred_region
      _
    $region5: #{bottleneck_forward.5} parent=1 // pred_fallthru
      _
    // Predicated region
    $region6: #{bottleneck_forward.5} parent=1 // pred_check
      _
    $region7: #{bottleneck_forward.5} parent=1 // pred_check_branch
      %14 = sbr.rel (0) target = $region9
    $region8: #{bottleneck_forward.5} parent=1 // pred_region
      _
    $region9: #{bottleneck_forward.5} parent=1 // pred_fallthru
      _
    // Predicated region
    $region10: #{bottleneck_forward.5} parent=1 // pred_check
      _
    $region11: #{bottleneck_forward.5} parent=1 // pred_check_branch
      %16 = sbr.rel (0) target = $region13
    $region12: #{bottleneck_forward.5} parent=1 // pred_region
      _
    $region13: #{bottleneck_forward.5} parent=1 // pred_fallthru
      _
    // Predicated region
    $region14: #{bottleneck_forward.5} parent=1 // pred_check
      _
    $region15: #{bottleneck_forward.5} parent=1 // pred_check_branch
      %18 = sbr.rel (0) target = $region17
    $region16: #{bottleneck_forward.5} parent=1 // pred_region
      _
    $region17: #{bottleneck_forward.5} parent=1 // pred_fallthru
      _
    // Predicated region
    $region18: #{bottleneck_forward.5} parent=1 // pred_check
      _
    $region19: #{bottleneck_forward.5} parent=1 // pred_check_branch
      %20 = sbr.rel (0) target = $region21
    $region20: #{bottleneck_forward.5} parent=1 // pred_region
      _
    $region21: #{bottleneck_forward.5} parent=1 // pred_fallthru
      _
    %v21 = vld [vmem:[%s0] sm:$0xff]
    %v22 = vld [vmem:[%s0 + $0x8] sm:$0xff]
    %v23 = vld [vmem:[%s0 + $0x10] sm:$0xff]
    %v24 = vld [vmem:[%s0 + $0x18] sm:$0xff]
    %v25 = vld [vmem:[%s0 + $0x20] sm:$0xff]
    %v26 = vld [vmem:[%s0 + $0x28] sm:$0xff]
    %v27 = vld [vmem:[%s0 + $0x30] sm:$0xff]
    %v28 = vld [vmem:[%s0 + $0x38] sm:$0xff]
    %v29 = vld [vmem:[%s0 + $0x40] sm:$0xff]
    %v30 = vld [vmem:[%s0 + $0x48] sm:$0xff]
    %v31 = vld [vmem:[%s0 + $0x50] sm:$0xff]
    %v32 = vld [vmem:[%s0 + $0x58] sm:$0xff]
    %v33 = vld [vmem:[%s0 + $0x60] sm:$0xff]
    %v34 = vld [vmem:[%s0 + $0x68] sm:$0xff]
    %v35 = vld [vmem:[%s0 + $0x70] sm:$0xff]
    %v36 = vld [vmem:[%s0 + $0x78] sm:$0xff]
    %v37 = vld [vmem:[%s1] sm:$0xff]
    %vm38 = vcmask 64512
    %v40 = vsel %vm38, %v21, 0
    %v43 = vsel %vm38, %v22, 0
    %v46 = vsel %vm38, %v23, 0
    %v49 = vsel %vm38, %v24, 0
    %v52 = vsel %vm38, %v25, 0
    %v55 = vsel %vm38, %v26, 0
    %v58 = vsel %vm38, %v27, 0
    %v61 = vsel %vm38, %v28, 0
    %v64 = vsel %vm38, %v29, 0
    %v67 = vsel %vm38, %v30, 0
    %v70 = vsel %vm38, %v31, 0
    %v73 = vsel %vm38, %v32, 0
    %v76 = vsel %vm38, %v33, 0
    %v79 = vsel %vm38, %v34, 0
    %v82 = vsel %vm38, %v35, 0
    %v85 = vsel %vm38, %v36, 0
    %87 = vmatprep.subr.mxu0 0.0
    %88 = vmatpush1.msra.mxu0 %v37
    %89 = vmatprep.subr.mxu0 0.0
    %90 = vmatpush1.msra.mxu0 0.0
    %91 = vmatprep.subr.mxu0 0.0
    %92 = vmatpush1.msra.mxu0 0.0
    %93 = vmatprep.subr.mxu0 0.0
    %94 = vmatpush1.msra.mxu0 0.0
    %95 = vmatprep.subr.mxu0 0.0
    %96 = vmatpush1.msra.mxu0 0.0
    %97 = vmatprep.subr.mxu0 0.0
    %98 = vmatpush1.msra.mxu0 0.0
    %99 = vmatprep.subr.mxu0 0.0
    %100 = vmatpush1.msra.mxu0 0.0
    %101 = vmatprep.subr.mxu0 0.0
    %102 = vmatpush1.msra.mxu0 0.0
    %103 = vmatprep.subr.mxu0 0.0
    %104 = vmatpush1.msra.mxu0 0.0
    %105 = vmatprep.subr.mxu0 0.0
    %106 = vmatpush1.msra.mxu0 0.0
    %107 = vmatprep.subr.mxu0 0.0
    %108 = vmatpush1.msra.mxu0 0.0
    %109 = vmatprep.subr.mxu0 0.0
    %110 = vmatpush1.msra.mxu0 0.0
    %111 = vmatprep.subr.mxu0 0.0
    %112 = vmatpush1.msra.mxu0 0.0
    %113 = vmatprep.subr.mxu0 0.0
    %114 = vmatpush1.msra.mxu0 0.0
    %115 = vmatprep.subr.mxu0 0.0
    %116 = vmatpush1.msra.mxu0 0.0
    %117 = vmatprep.subr.mxu0 0.0
    %118 = vmatpush1.msra.mxu0 0.0
    %119 = vmatprep.subr.mxu0 0.0
    %120 = vmatpush1.msra.mxu0 0.0
    %121 = vmatprep.subr.mxu0 0.0
    %122 = vmatpush1.msra.mxu0 0.0
    %123 = vmatprep.subr.mxu0 0.0
    %124 = vmatpush1.msra.mxu0 0.0
    %125 = vmatprep.subr.mxu0 0.0
    %126 = vmatpush1.msra.mxu0 0.0
    %127 = vmatprep.subr.mxu0 0.0
    %128 = vmatpush1.msra.mxu0 0.0
    %129 = vmatprep.subr.mxu0 0.0
    %130 = vmatpush1.msra.mxu0 0.0
    %131 = vmatprep.subr.mxu0 0.0
    %132 = vmatpush1.msra.mxu0 0.0
    %133 = vmatprep.subr.mxu0 0.0
    %134 = vmatpush1.msra.mxu0 0.0
    %135 = vmatprep.subr.mxu0 0.0
    %136 = vmatpush1.msra.mxu0 0.0
    %137 = vmatprep.subr.mxu0 0.0
    %138 = vmatpush1.msra.mxu0 0.0
    %139 = vmatprep.subr.mxu0 0.0
    %140 = vmatpush1.msra.mxu0 0.0
    %141 = vmatprep.subr.mxu0 0.0
    %142 = vmatpush1.msra.mxu0 0.0
    %143 = vmatprep.subr.mxu0 0.0
    %144 = vmatpush1.msra.mxu0 0.0
    %145 = vmatprep.subr.mxu0 0.0
    %146 = vmatpush1.msra.mxu0 0.0
    %147 = vmatprep.subr.mxu0 0.0
    %148 = vmatpush1.msra.mxu0 0.0
    %149 = vmatprep.subr.mxu0 0.0
    %150 = vmatpush1.msra.mxu0 0.0
    %151 = vmatprep.mubr.f32.mxu0 0.0
    %152 = vmatmul.mubr.f32.gmra.mrb[0].mxu0 %v40
    %v153 = vpop.f32.mrb[0].mxu0
    %v154 = vadd.f32 0.0, %v153
    %v155 = vpop.f32.mrb[0].mxu0
    %156 = vmatprep.mubr.f32.mxu0 0.0
    %157 = vmatmul.mubr.f32.gmra.mrb[0].mxu0 %v43
    %v158 = vpop.f32.mrb[0].mxu0
    %v159 = vadd.f32 0.0, %v158
    %v160 = vpop.f32.mrb[0].mxu0
    %161 = vmatprep.mubr.f32.mxu0 0.0
    %162 = vmatmul.mubr.f32.gmra.mrb[0].mxu0 %v46
    %v163 = vpop.f32.mrb[0].mxu0
    %v164 = vadd.f32 0.0, %v163
    %v165 = vpop.f32.mrb[0].mxu0
    %166 = vmatprep.mubr.f32.mxu0 0.0
    %167 = vmatmul.mubr.f32.gmra.mrb[0].mxu0 %v49
    %v168 = vpop.f32.mrb[0].mxu0
    %v169 = vadd.f32 0.0, %v168
    %v170 = vpop.f32.mrb[0].mxu0
    %171 = vmatprep.mubr.f32.mxu0 0.0
    %172 = vmatmul.mubr.f32.gmra.mrb[0].mxu0 %v52
    %v173 = vpop.f32.mrb[0].mxu0
    %v174 = vadd.f32 0.0, %v173
    %v175 = vpop.f32.mrb[0].mxu0
    %176 = vmatprep.mubr.f32.mxu0 0.0
    %177 = vmatmul.mubr.f32.gmra.mrb[0].mxu0 %v55
    %v178 = vpop.f32.mrb[0].mxu0
    %v179 = vadd.f32 0.0, %v178
    %v180 = vpop.f32.mrb[0].mxu0
    %181 = vmatprep.mubr.f32.mxu0 0.0
    %182 = vmatmul.mubr.f32.gmra.mrb[0].mxu0 %v58
    %v183 = vpop.f32.mrb[0].mxu0
    %v184 = vadd.f32 0.0, %v183
    %v185 = vpop.f32.mrb[0].mxu0
    %186 = vmatprep.mubr.f32.mxu0 0.0
    %187 = vmatmul.mubr.f32.gmra.mrb[0].mxu0 %v61
    %v188 = vpop.f32.mrb[0].mxu0
    %v189 = vadd.f32 0.0, %v188
    %v190 = vpop.f32.mrb[0].mxu0
    %191 = vmatprep.mubr.f32.mxu0 0.0
    %192 = vmatmul.mubr.f32.gmra.mrb[0].mxu0 %v64
    %v193 = vpop.f32.mrb[0].mxu0
    %v194 = vadd.f32 0.0, %v193
    %v195 = vpop.f32.mrb[0].mxu0
    %196 = vmatprep.mubr.f32.mxu0 0.0
    %197 = vmatmul.mubr.f32.gmra.mrb[0].mxu0 %v67
    %v198 = vpop.f32.mrb[0].mxu0
    %v199 = vadd.f32 0.0, %v198
    %v200 = vpop.f32.mrb[0].mxu0
    %201 = vmatprep.mubr.f32.mxu0 0.0
    %202 = vmatmul.mubr.f32.gmra.mrb[0].mxu0 %v70
    %v203 = vpop.f32.mrb[0].mxu0
    %v204 = vadd.f32 0.0, %v203
    %v205 = vpop.f32.mrb[0].mxu0
    %206 = vmatprep.mubr.f32.mxu0 0.0
    %207 = vmatmul.mubr.f32.gmra.mrb[0].mxu0 %v73
    %v208 = vpop.f32.mrb[0].mxu0
    %v209 = vadd.f32 0.0, %v208
    %v210 = vpop.f32.mrb[0].mxu0
    %211 = vmatprep.mubr.f32.mxu0 0.0
    %212 = vmatmul.mubr.f32.gmra.mrb[0].mxu0 %v76
    %v213 = vpop.f32.mrb[0].mxu0
    %v214 = vadd.f32 0.0, %v213
    %v215 = vpop.f32.mrb[0].mxu0
    %216 = vmatprep.mubr.f32.mxu0 0.0
    %217 = vmatmul.mubr.f32.gmra.mrb[0].mxu0 %v79
    %v218 = vpop.f32.mrb[0].mxu0
    %v219 = vadd.f32 0.0, %v218
    %v220 = vpop.f32.mrb[0].mxu0
    %221 = vmatprep.mubr.f32.mxu0 0.0
    %222 = vmatmul.mubr.f32.gmra.mrb[0].mxu0 %v82
    %v223 = vpop.f32.mrb[0].mxu0
    %v224 = vadd.f32 0.0, %v223
    %v225 = vpop.f32.mrb[0].mxu0
    %226 = vmatprep.mubr.f32.mxu0 0.0
    %227 = vmatmul.mubr.f32.gmra.mrb[0].mxu0 %v85
    %v228 = vpop.f32.mrb[0].mxu0
    %v229 = vadd.f32 0.0, %v228
    %v230 = vpop.f32.mrb[0].mxu0
    %231 = vdwg.mxu0
    %p232 = scmp.eq.s32.totalorder 0, 0
    // Predicated region
    $region22: #{bottleneck_forward.5} parent=1 // pred_check
      %p233 = pneg %p232
    $region23: #{bottleneck_forward.5} parent=1 // pred_check_branch
      %235 = sbr.rel (%p233) target = $region25
    $region24: #{bottleneck_forward.5} parent=1 // pred_region
      %v236 = vld [vmem:[%s3] sm:$0xff]
      %v237 = vld [vmem:[%s3 + $0x8] sm:$0xff]
      %v238 = vld [vmem:[%s3 + $0x10] sm:$0xff]
      %v239 = vld [vmem:[%s3 + $0x18] sm:$0xff]
      %v240 = vld [vmem:[%s3 + $0x20] sm:$0xff]
      %v241 = vld [vmem:[%s3 + $0x28] sm:$0xff]
      %v242 = vld [vmem:[%s3 + $0x30] sm:$0xff]
      %v243 = vld [vmem:[%s3 + $0x38] sm:$0xff]
      %v244 = vld [vmem:[%s3 + $0x40] sm:$0xff]
      %v245 = vld [vmem:[%s3 + $0x48] sm:$0xff]
      %v246 = vld [vmem:[%s3 + $0x50] sm:$0xff]
      %v247 = vld [vmem:[%s3 + $0x58] sm:$0xff]
      %v248 = vld [vmem:[%s3 + $0x60] sm:$0xff]
      %v249 = vld [vmem:[%s3 + $0x68] sm:$0xff]
      %v250 = vld [vmem:[%s3 + $0x70] sm:$0xff]
      %v251 = vld [vmem:[%s3 + $0x78] sm:$0xff]
      %v252 = vld [vmem:[%s4] sm:$0xff]
      %v253 = vld [vmem:[%s4 + $0x8] sm:$0xff]
      %vm254 = vcmask 130048
      %v256 = vsel %vm254, %v236, 0
      %v259 = vsel %vm254, %v237, 0
      %v262 = vsel %vm254, %v238, 0
      %v265 = vsel %vm254, %v239, 0
      %v268 = vsel %vm254, %v240, 0
      %v271 = vsel %vm254, %v241, 0
      %v274 = vsel %vm254, %v242, 0
      %v277 = vsel %vm254, %v243, 0
      %v280 = vsel %vm254, %v244, 0
      %v283 = vsel %vm254, %v245, 0
      %v286 = vsel %vm254, %v246, 0
      %v289 = vsel %vm254, %v247, 0
      %v292 = vsel %vm254, %v248, 0
      %v295 = vsel %vm254, %v249, 0
      %v298 = vsel %vm254, %v250, 0
      %v301 = vsel %vm254, %v251, 0
      %303 = vmatprep.subr.mxu0 0.0
      %304 = vmatpush1.msra.mxu0 %v252
      %305 = vmatprep.subr.mxu0 0.0
      %306 = vmatpush1.msra.mxu0 %v253
      %307 = vmatprep.subr.mxu0 0.0
      %308 = vmatpush1.msra.mxu0 0.0
      %309 = vmatprep.subr.mxu0 0.0
      %310 = vmatpush1.msra.mxu0 0.0
      %311 = vmatprep.subr.mxu0 0.0
      %312 = vmatpush1.msra.mxu0 0.0
      %313 = vmatprep.subr.mxu0 0.0
      %314 = vmatpush1.msra.mxu0 0.0
      %315 = vmatprep.subr.mxu0 0.0
      %316 = vmatpush1.msra.mxu0 0.0
      %317 = vmatprep.subr.mxu0 0.0
      %318 = vmatpush1.msra.mxu0 0.0
      %319 = vmatprep.subr.mxu0 0.0
      %320 = vmatpush1.msra.mxu0 0.0
      %321 = vmatprep.subr.mxu0 0.0
      %322 = vmatpush1.msra.mxu0 0.0
      %323 = vmatprep.subr.mxu0 0.0
      %324 = vmatpush1.msra.mxu0 0.0
      %325 = vmatprep.subr.mxu0 0.0
      %326 = vmatpush1.msra.mxu0 0.0
      %327 = vmatprep.subr.mxu0 0.0
      %328 = vmatpush1.msra.mxu0 0.0
      %329 = vmatprep.subr.mxu0 0.0
      %330 = vmatpush1.msra.mxu0 0.0
      %331 = vmatprep.subr.mxu0 0.0
      %332 = vmatpush1.msra.mxu0 0.0
      %333 = vmatprep.subr.mxu0 0.0
      %334 = vmatpush1.msra.mxu0 0.0
      %335 = vmatprep.subr.mxu0 0.0
      %336 = vmatpush1.msra.mxu0 0.0
      %337 = vmatprep.subr.mxu0 0.0
      %338 = vmatpush1.msra.mxu0 0.0
      %339 = vmatprep.subr.mxu0 0.0
      %340 = vmatpush1.msra.mxu0 0.0
      %341 = vmatprep.subr.mxu0 0.0
      %342 = vmatpush1.msra.mxu0 0.0
      %343 = vmatprep.subr.mxu0 0.0
      %344 = vmatpush1.msra.mxu0 0.0
      %345 = vmatprep.subr.mxu0 0.0
      %346 = vmatpush1.msra.mxu0 0.0
      %347 = vmatprep.subr.mxu0 0.0
      %348 = vmatpush1.msra.mxu0 0.0
      %349 = vmatprep.subr.mxu0 0.0
      %350 = vmatpush1.msra.mxu0 0.0
      %351 = vmatprep.subr.mxu0 0.0
      %352 = vmatpush1.msra.mxu0 0.0
      %353 = vmatprep.subr.mxu0 0.0
      %354 = vmatpush1.msra.mxu0 0.0
      %355 = vmatprep.subr.mxu0 0.0
      %356 = vmatpush1.msra.mxu0 0.0
      %357 = vmatprep.subr.mxu0 0.0
      %358 = vmatpush1.msra.mxu0 0.0
      %359 = vmatprep.subr.mxu0 0.0
      %360 = vmatpush1.msra.mxu0 0.0
      %361 = vmatprep.subr.mxu0 0.0
      %362 = vmatpush1.msra.mxu0 0.0
      %363 = vmatprep.subr.mxu0 0.0
      %364 = vmatpush1.msra.mxu0 0.0
      %365 = vmatprep.subr.mxu0 0.0
      %366 = vmatpush1.msra.mxu0 0.0
      %367 = vmatprep.mubr.f32.mxu0 0.0
      %368 = vmatmul.mubr.f32.gmra.mrb[0].mxu0 %v256
      %v369 = vpop.f32.mrb[0].mxu0
      %v370 = vadd.f32 0.0, %v369
      %v371 = vpop.f32.mrb[0].mxu0
      %372 = vmatprep.mubr.f32.mxu0 0.0
      %373 = vmatmul.mubr.f32.gmra.mrb[0].mxu0 %v259
      %v374 = vpop.f32.mrb[0].mxu0
      %v375 = vadd.f32 0.0, %v374
      %v376 = vpop.f32.mrb[0].mxu0
      %377 = vmatprep.mubr.f32.mxu0 0.0
      %378 = vmatmul.mubr.f32.gmra.mrb[0].mxu0 %v262
      %v379 = vpop.f32.mrb[0].mxu0
      %v380 = vadd.f32 0.0, %v379
      %v381 = vpop.f32.mrb[0].mxu0
      %382 = vmatprep.mubr.f32.mxu0 0.0
      %383 = vmatmul.mubr.f32.gmra.mrb[0].mxu0 %v265
      %v384 = vpop.f32.mrb[0].mxu0
      %v385 = vadd.f32 0.0, %v384
      %v386 = vpop.f32.mrb[0].mxu0
      %387 = vmatprep.mubr.f32.mxu0 0.0
      %388 = vmatmul.mubr.f32.gmra.mrb[0].mxu0 %v268
      %v389 = vpop.f32.mrb[0].mxu0
      %v390 = vadd.f32 0.0, %v389
      %v391 = vpop.f32.mrb[0].mxu0
      %392 = vmatprep.mubr.f32.mxu0 0.0
      %393 = vmatmul.mubr.f32.gmra.mrb[0].mxu0 %v271
      %v394 = vpop.f32.mrb[0].mxu0
      %v395 = vadd.f32 0.0, %v394
      %v396 = vpop.f32.mrb[0].mxu0
      %397 = vmatprep.mubr.f32.mxu0 0.0
      %398 = vmatmul.mubr.f32.gmra.mrb[0].mxu0 %v274
      %v399 = vpop.f32.mrb[0].mxu0
      %v400 = vadd.f32 0.0, %v399
      %v401 = vpop.f32.mrb[0].mxu0
      %402 = vmatprep.mubr.f32.mxu0 0.0
      %403 = vmatmul.mubr.f32.gmra.mrb[0].mxu0 %v277
      %v404 = vpop.f32.mrb[0].mxu0
      %v405 = vadd.f32 0.0, %v404
      %v406 = vpop.f32.mrb[0].mxu0
      %407 = vmatprep.mubr.f32.mxu0 0.0
      %408 = vmatmul.mubr.f32.gmra.mrb[0].mxu0 %v280
      %v409 = vpop.f32.mrb[0].mxu0
      %v410 = vadd.f32 0.0, %v409
      %v411 = vpop.f32.mrb[0].mxu0
      %412 = vmatprep.mubr.f32.mxu0 0.0
      %413 = vmatmul.mubr.f32.gmra.mrb[0].mxu0 %v283
      %v414 = vpop.f32.mrb[0].mxu0
      %v415 = vadd.f32 0.0, %v414
      %v416 = vpop.f32.mrb[0].mxu0
      %417 = vmatprep.mubr.f32.mxu0 0.0
      %418 = vmatmul.mubr.f32.gmra.mrb[0].mxu0 %v286
      %v419 = vpop.f32.mrb[0].mxu0
      %v420 = vadd.f32 0.0, %v419
      %v421 = vpop.f32.mrb[0].mxu0
      %422 = vmatprep.mubr.f32.mxu0 0.0
      %423 = vmatmul.mubr.f32.gmra.mrb[0].mxu0 %v289
      %v424 = vpop.f32.mrb[0].mxu0
      %v425 = vadd.f32 0.0, %v424
      %v426 = vpop.f32.mrb[0].mxu0
      %427 = vmatprep.mubr.f32.mxu0 0.0
      %428 = vmatmul.mubr.f32.gmra.mrb[0].mxu0 %v292
      %v429 = vpop.f32.mrb[0].mxu0
      %v430 = vadd.f32 0.0, %v429
      %v431 = vpop.f32.mrb[0].mxu0
      %432 = vmatprep.mubr.f32.mxu0 0.0
      %433 = vmatmul.mubr.f32.gmra.mrb[0].mxu0 %v295
      %v434 = vpop.f32.mrb[0].mxu0
      %v435 = vadd.f32 0.0, %v434
      %v436 = vpop.f32.mrb[0].mxu0
      %437 = vmatprep.mubr.f32.mxu0 0.0
      %438 = vmatmul.mubr.f32.gmra.mrb[0].mxu0 %v298
      %v439 = vpop.f32.mrb[0].mxu0
      %v440 = vadd.f32 0.0, %v439
      %v441 = vpop.f32.mrb[0].mxu0
      %442 = vmatprep.mubr.f32.mxu0 0.0
      %443 = vmatmul.mubr.f32.gmra.mrb[0].mxu0 %v301
      %v444 = vpop.f32.mrb[0].mxu0
      %v445 = vadd.f32 0.0, %v444
      %v446 = vpop.f32.mrb[0].mxu0
      %447 = vdwg.mxu0
      %v448 = vadd.f32 %v154, %v370
      %v449 = vadd.f32 %v159, %v375
      %v450 = vadd.f32 %v164, %v380
      %v451 = vadd.f32 %v169, %v385
      %v452 = vadd.f32 %v174, %v390
      %v453 = vadd.f32 %v179, %v395
      %v454 = vadd.f32 %v184, %v400
      %v455 = vadd.f32 %v189, %v405
      %v456 = vadd.f32 %v194, %v410
      %v457 = vadd.f32 %v199, %v415
      %v458 = vadd.f32 %v204, %v420
      %v459 = vadd.f32 %v209, %v425
      %v460 = vadd.f32 %v214, %v430
      %v461 = vadd.f32 %v219, %v435
      %v462 = vadd.f32 %v224, %v440
      %v463 = vadd.f32 %v229, %v445
      %vm464 = vcmask 261120
      %465 = vst.msk [vmem:[#allocation2] sm:$0xff] %vm464, %v448
      %466 = vst.msk [vmem:[#allocation2 + $0x8] sm:$0xff] %vm464, %v449
      %467 = vst.msk [vmem:[#allocation2 + $0x10] sm:$0xff] %vm464, %v450
      %468 = vst.msk [vmem:[#allocation2 + $0x18] sm:$0xff] %vm464, %v451
      %469 = vst.msk [vmem:[#allocation2 + $0x20] sm:$0xff] %vm464, %v452
      %470 = vst.msk [vmem:[#allocation2 + $0x28] sm:$0xff] %vm464, %v453
      %471 = vst.msk [vmem:[#allocation2 + $0x30] sm:$0xff] %vm464, %v454
      %472 = vst.msk [vmem:[#allocation2 + $0x38] sm:$0xff] %vm464, %v455
      %473 = vst.msk [vmem:[#allocation2 + $0x40] sm:$0xff] %vm464, %v456
      %474 = vst.msk [vmem:[#allocation2 + $0x48] sm:$0xff] %vm464, %v457
      %475 = vst.msk [vmem:[#allocation2 + $0x50] sm:$0xff] %vm464, %v458
      %476 = vst.msk [vmem:[#allocation2 + $0x58] sm:$0xff] %vm464, %v459
      %477 = vst.msk [vmem:[#allocation2 + $0x60] sm:$0xff] %vm464, %v460
      %478 = vst.msk [vmem:[#allocation2 + $0x68] sm:$0xff] %vm464, %v461
      %479 = vst.msk [vmem:[#allocation2 + $0x70] sm:$0xff] %vm464, %v462
      %480 = vst.msk [vmem:[#allocation2 + $0x78] sm:$0xff] %vm464, %v463
    $region25: #{bottleneck_forward.5} parent=1 // pred_fallthru
      _
    %p481 = scmp.gt.s32.totalorder 0, 0
    // Predicated region
    $region26: #{bottleneck_forward.5} parent=1 // pred_check
      %p482 = pneg %p481
    $region27: #{bottleneck_forward.5} parent=1 // pred_check_branch
      %484 = sbr.rel (%p482) target = $region29
    $region28: #{bottleneck_forward.5} parent=1 // pred_region
      %v485 = vld [vmem:[#allocation2] sm:$0xff]
      %v486 = vld [vmem:[#allocation2 + $0x8] sm:$0xff]
      %v487 = vld [vmem:[#allocation2 + $0x10] sm:$0xff]
      %v488 = vld [vmem:[#allocation2 + $0x18] sm:$0xff]
      %v489 = vld [vmem:[#allocation2 + $0x20] sm:$0xff]
      %v490 = vld [vmem:[#allocation2 + $0x28] sm:$0xff]
      %v491 = vld [vmem:[#allocation2 + $0x30] sm:$0xff]
      %v492 = vld [vmem:[#allocation2 + $0x38] sm:$0xff]
      %v493 = vld [vmem:[#allocation2 + $0x40] sm:$0xff]
      %v494 = vld [vmem:[#allocation2 + $0x48] sm:$0xff]
      %v495 = vld [vmem:[#allocation2 + $0x50] sm:$0xff]
      %v496 = vld [vmem:[#allocation2 + $0x58] sm:$0xff]
      %v497 = vld [vmem:[#allocation2 + $0x60] sm:$0xff]
      %v498 = vld [vmem:[#allocation2 + $0x68] sm:$0xff]
      %v499 = vld [vmem:[#allocation2 + $0x70] sm:$0xff]
      %v500 = vld [vmem:[#allocation2 + $0x78] sm:$0xff]
      %v501 = vadd.f32 %v485, %v154
      %v502 = vadd.f32 %v486, %v159
      %v503 = vadd.f32 %v487, %v164
      %v504 = vadd.f32 %v488, %v169
      %v505 = vadd.f32 %v489, %v174
      %v506 = vadd.f32 %v490, %v179
      %v507 = vadd.f32 %v491, %v184
      %v508 = vadd.f32 %v492, %v189
      %v509 = vadd.f32 %v493, %v194
      %v510 = vadd.f32 %v494, %v199
      %v511 = vadd.f32 %v495, %v204
      %v512 = vadd.f32 %v496, %v209
      %v513 = vadd.f32 %v497, %v214
      %v514 = vadd.f32 %v498, %v219
      %v515 = vadd.f32 %v499, %v224
      %v516 = vadd.f32 %v500, %v229
      %vm517 = vcmask 261120
      %518 = vst.msk [vmem:[#allocation2] sm:$0xff] %vm517, %v501
      %519 = vst.msk [vmem:[#allocation2 + $0x8] sm:$0xff] %vm517, %v502
      %520 = vst.msk [vmem:[#allocation2 + $0x10] sm:$0xff] %vm517, %v503
      %521 = vst.msk [vmem:[#allocation2 + $0x18] sm:$0xff] %vm517, %v504
      %522 = vst.msk [vmem:[#allocation2 + $0x20] sm:$0xff] %vm517, %v505
      %523 = vst.msk [vmem:[#allocation2 + $0x28] sm:$0xff] %vm517, %v506
      %524 = vst.msk [vmem:[#allocation2 + $0x30] sm:$0xff] %vm517, %v507
      %525 = vst.msk [vmem:[#allocation2 + $0x38] sm:$0xff] %vm517, %v508
      %526 = vst.msk [vmem:[#allocation2 + $0x40] sm:$0xff] %vm517, %v509
      %527 = vst.msk [vmem:[#allocation2 + $0x48] sm:$0xff] %vm517, %v510
      %528 = vst.msk [vmem:[#allocation2 + $0x50] sm:$0xff] %vm517, %v511
      %529 = vst.msk [vmem:[#allocation2 + $0x58] sm:$0xff] %vm517, %v512
      %530 = vst.msk [vmem:[#allocation2 + $0x60] sm:$0xff] %vm517, %v513
      %531 = vst.msk [vmem:[#allocation2 + $0x68] sm:$0xff] %vm517, %v514
      %532 = vst.msk [vmem:[#allocation2 + $0x70] sm:$0xff] %vm517, %v515
      %533 = vst.msk [vmem:[#allocation2 + $0x78] sm:$0xff] %vm517, %v516
    $region29: #{bottleneck_forward.5} parent=1 // pred_fallthru
      _
    // Predicated region
    $region30: #{bottleneck_forward.5} parent=1 // pred_check
      %p534 = pneg %p232
    $region31: #{bottleneck_forward.5} parent=1 // pred_check_branch
      %536 = sbr.rel (%p534) target = $region33
    $region32: #{bottleneck_forward.5} parent=1 // pred_region
      %v537 = vld [vmem:[#allocation2] sm:$0xff]
      %v538 = vld [vmem:[#allocation2 + $0x8] sm:$0xff]
      %v539 = vld [vmem:[#allocation2 + $0x10] sm:$0xff]
      %v540 = vld [vmem:[#allocation2 + $0x18] sm:$0xff]
      %v541 = vld [vmem:[#allocation2 + $0x20] sm:$0xff]
      %v542 = vld [vmem:[#allocation2 + $0x28] sm:$0xff]
      %v543 = vld [vmem:[#allocation2 + $0x30] sm:$0xff]
      %v544 = vld [vmem:[#allocation2 + $0x38] sm:$0xff]
      %v545 = vld [vmem:[#allocation2 + $0x40] sm:$0xff]
      %v546 = vld [vmem:[#allocation2 + $0x48] sm:$0xff]
      %v547 = vld [vmem:[#allocation2 + $0x50] sm:$0xff]
      %v548 = vld [vmem:[#allocation2 + $0x58] sm:$0xff]
      %v549 = vld [vmem:[#allocation2 + $0x60] sm:$0xff]
      %v550 = vld [vmem:[#allocation2 + $0x68] sm:$0xff]
      %v551 = vld [vmem:[#allocation2 + $0x70] sm:$0xff]
      %v552 = vld [vmem:[#allocation2 + $0x78] sm:$0xff]
      %v553 = vld [vmem:[%s2] sm:$0x1]
      %v555 = vlaneseq
      %v556 = vshrl.u32 %v555, 7
      %v557 = vsub.s32 0, %v556
      %v558 = vrot.slane %v553, %v557
      %v560 = vadd.f32 %v537, %v558
      %v561 = vadd.f32 %v538, %v558
      %v562 = vadd.f32 %v539, %v558
      %v563 = vadd.f32 %v540, %v558
      %v564 = vadd.f32 %v541, %v558
      %v565 = vadd.f32 %v542, %v558
      %v566 = vadd.f32 %v543, %v558
      %v567 = vadd.f32 %v544, %v558
      %v568 = vadd.f32 %v545, %v558
      %v569 = vadd.f32 %v546, %v558
      %v570 = vadd.f32 %v547, %v558
      %v571 = vadd.f32 %v548, %v558
      %v572 = vadd.f32 %v549, %v558
      %v573 = vadd.f32 %v550, %v558
      %v574 = vadd.f32 %v551, %v558
      %v575 = vadd.f32 %v552, %v558
      %v576 = vmax.f32 %v560, 0.0
      %v577 = vmax.f32 %v561, 0.0
      %v578 = vmax.f32 %v562, 0.0
      %v579 = vmax.f32 %v563, 0.0
      %v580 = vmax.f32 %v564, 0.0
      %v581 = vmax.f32 %v565, 0.0
      %v582 = vmax.f32 %v566, 0.0
      %v583 = vmax.f32 %v567, 0.0
      %v584 = vmax.f32 %v568, 0.0
      %v585 = vmax.f32 %v569, 0.0
      %v586 = vmax.f32 %v570, 0.0
      %v587 = vmax.f32 %v571, 0.0
      %v588 = vmax.f32 %v572, 0.0
      %v589 = vmax.f32 %v573, 0.0
      %v590 = vmax.f32 %v574, 0.0
      %v591 = vmax.f32 %v575, 0.0
      %vm592 = vcmask 261120
      %593 = vst.msk [vmem:[#allocation3] sm:$0xff] %vm592, %v576
      %594 = vst.msk [vmem:[#allocation3 + $0x8] sm:$0xff] %vm592, %v577
      %595 = vst.msk [vmem:[#allocation3 + $0x10] sm:$0xff] %vm592, %v578
      %596 = vst.msk [vmem:[#allocation3 + $0x18] sm:$0xff] %vm592, %v579
      %597 = vst.msk [vmem:[#allocation3 + $0x20] sm:$0xff] %vm592, %v580
      %598 = vst.msk [vmem:[#allocation3 + $0x28] sm:$0xff] %vm592, %v581
      %599 = vst.msk [vmem:[#allocation3 + $0x30] sm:$0xff] %vm592, %v582
      %600 = vst.msk [vmem:[#allocation3 + $0x38] sm:$0xff] %vm592, %v583
      %601 = vst.msk [vmem:[#allocation3 + $0x40] sm:$0xff] %vm592, %v584
      %602 = vst.msk [vmem:[#allocation3 + $0x48] sm:$0xff] %vm592, %v585
      %603 = vst.msk [vmem:[#allocation3 + $0x50] sm:$0xff] %vm592, %v586
      %604 = vst.msk [vmem:[#allocation3 + $0x58] sm:$0xff] %vm592, %v587
      %605 = vst.msk [vmem:[#allocation3 + $0x60] sm:$0xff] %vm592, %v588
      %606 = vst.msk [vmem:[#allocation3 + $0x68] sm:$0xff] %vm592, %v589
      %607 = vst.msk [vmem:[#allocation3 + $0x70] sm:$0xff] %vm592, %v590
      %608 = vst.msk [vmem:[#allocation3 + $0x78] sm:$0xff] %vm592, %v591
    $region33: #{bottleneck_forward.5} parent=1 // pred_fallthru
      _
    // Predicated region
    $region34: #{bottleneck_forward.5} parent=1 // pred_check
      _
    $region35: #{bottleneck_forward.5} parent=1 // pred_check_branch
      %610 = sbr.rel (0) target = $region37
    $region36: #{bottleneck_forward.5} parent=1 // pred_region
      %s612 = ssub.s32 2048, 2048
      %613 = vsyncadd [#allocation4], %s612
      %s614 = sshll.u32 [#allocation3], 4
      %s615 = int_to_ptr.vmem [resolvable:$true] %s614
      %620 = dma.vmem_to_hbm [thread:$0]  %s615, 2048, %s5, [#allocation4], 128, 128, 8
    $region37: #{bottleneck_forward.5} parent=1 // pred_fallthru
      _
    // Predicated region
    $region38: #{bottleneck_forward.5} parent=1 // pred_check
      _
    $region39: #{bottleneck_forward.5} parent=1 // pred_check_branch
      %622 = sbr.rel (0) target = $region41
    $region40: #{bottleneck_forward.5} parent=1 // pred_region
      %623 = dma.done [#allocation4], 2048
    $region41: #{bottleneck_forward.5} parent=1 // pred_fallthru
      _
    %624 = vsyncpa [#allocation4], 1

// kernel: bottleneck_forward.4
$region0: #{bottleneck_forward.4}
  #allocation0 [shape = 'u32[]', space=smem, size = 0x4, offset = 0x4, fixed_abs, tag = 'smem constant byte address 0x4 - core index']
  #allocation1 [shape = 'u32[144,128]{1,0:T(1,128)}', space=vmem, size = 0x12000, scoped, tag = 'internal scratch']
  %s0 = inlined_call_operand.vmem [shape: f32[2,102,8], index: 0, kind: input, shape index: {}]
  %s1 = inlined_call_operand.vmem [shape: f32[9,8,8], index: 1, kind: input, shape index: {}]
  %s2 = inlined_call_operand.vmem [shape: f32[1,8], index: 2, kind: input, shape index: {}]
  %s3 = inlined_call_operand.vmem [shape: f32[2,80,8], index: 3, kind: output, shape index: {}]
  %s4 = sld [smem:[#allocation0]]
  $region45: #{bottleneck_forward.4} parent=0
    _
  %s6 = ssub.s32 1, %s4
  %s7 = scalar_select 0, %s6, %s4
  loop: start=0, step=1, limit=4
  $region2: #{bottleneck_forward.4} parent=0 // loop_pre_header
    _
  $region3: #{bottleneck_forward.4} parent=0 // loop_header
    %s9 = sphi 0, %s13
    %p10 = scmp.ge.s32.totalorder %s9, 4
    %s19 = sphi 0, %s21
    %s22 = sphi 0, %s19
    %s23 = sphi 0, %s22
    %s39 = sphi 0, %s23
    %s43 = sphi 0, %s43
    %s45 = sphi 0, %s43
    %s46 = sphi 0, %s45
    %s60 = sphi 0, %s46
    %s64 = sphi 0, %s64
    %s66 = sphi 0, %s64
    %s67 = sphi 0, %s66
    %s81 = sphi 0, %s67
    %s87 = sphi 0, %s89
    %s90 = sphi 0, %s87
    %s91 = sphi 0, %s90
    %s107 = sphi 0, %s91
  $region4: #{bottleneck_forward.4} parent=0 // loop_header_branch
    %12 = sbr.rel (%p10) target = $region8
  $region5: #{bottleneck_forward.4} parent=0 // loop_body
    %s14 = ssub.s32 %s9, 1
    %s15 = ssub.s32 %s9, 2
    %s16 = sadd.s32 %s9, 1
    %s17 = ssub.s32 %s9, %s16
    %p18 = scmp.eq.s32.totalorder %s17, 0
    %s20 = sadd.s32 %s19, 1
    %s21 = scalar_select %p18, %s19, %s20
    %p24 = pneg %p18
    %p25 = scmp.eq.s32.totalorder %s9, 1
    %p26 = por %p24, %p25
    %p27 = scmp.ne.s32.totalorder %s19, %s22
    %p28 = scmp.eq.s32.totalorder %s9, 0
    %p29 = por %p27, %p28
    %p30 = scmp.ne.s32.totalorder %s19, %s22
    %p31 = scmp.eq.s32.totalorder %s14, 1
    %p32 = por %p30, %p31
    %p33 = scmp.ne.s32.totalorder %s22, %s23
    %p34 = scmp.eq.s32.totalorder %s14, 0
    %p35 = por %p33, %p34
    %p36 = scmp.ne.s32.totalorder %s22, %s23
    %p37 = scmp.eq.s32.totalorder %s15, 1
    %p38 = por %p36, %p37
    %p40 = scmp.ne.s32.totalorder %s23, %s39
    %p41 = scmp.eq.s32.totalorder %s15, 0
    %p42 = por %p40, %p41
    %s44 = sadd.s32 %s43, 1
    %p47 = scmp.eq.s32.totalorder %s9, 1
    %p48 = scmp.ne.s32.totalorder %s43, %s45
    %p49 = scmp.eq.s32.totalorder %s9, 0
    %p50 = por %p48, %p49
    %p51 = scmp.ne.s32.totalorder %s43, %s45
    %p52 = scmp.eq.s32.totalorder %s14, 1
    %p53 = por %p51, %p52
    %p54 = scmp.ne.s32.totalorder %s45, %s46
    %p55 = scmp.eq.s32.totalorder %s14, 0
    %p56 = por %p54, %p55
    %p57 = scmp.ne.s32.totalorder %s45, %s46
    %p58 = scmp.eq.s32.totalorder %s15, 1
    %p59 = por %p57, %p58
    %p61 = scmp.ne.s32.totalorder %s46, %s60
    %p62 = scmp.eq.s32.totalorder %s15, 0
    %p63 = por %p61, %p62
    %s65 = sadd.s32 %s64, 1
    %p68 = scmp.eq.s32.totalorder %s9, 1
    %p69 = scmp.ne.s32.totalorder %s64, %s66
    %p70 = scmp.eq.s32.totalorder %s9, 0
    %p71 = por %p69, %p70
    %p72 = scmp.ne.s32.totalorder %s64, %s66
    %p73 = scmp.eq.s32.totalorder %s14, 1
    %p74 = por %p72, %p73
    %p75 = scmp.ne.s32.totalorder %s66, %s67
    %p76 = scmp.eq.s32.totalorder %s14, 0
    %p77 = por %p75, %p76
    %p78 = scmp.ne.s32.totalorder %s66, %s67
    %p79 = scmp.eq.s32.totalorder %s15, 1
    %p80 = por %p78, %p79
    %p82 = scmp.ne.s32.totalorder %s67, %s81
    %p83 = scmp.eq.s32.totalorder %s15, 0
    %p84 = por %p82, %p83
    %s85 = ssub.s32 %s9, %s16
    %p86 = scmp.eq.s32.totalorder %s85, 0
    %s88 = sadd.s32 %s87, 1
    %s89 = scalar_select %p86, %s87, %s88
    %p92 = pneg %p86
    %p93 = scmp.eq.s32.totalorder %s9, 1
    %p94 = por %p92, %p93
    %p95 = scmp.ne.s32.totalorder %s87, %s90
    %p96 = scmp.eq.s32.totalorder %s9, 0
    %p97 = por %p95, %p96
    %p98 = scmp.ne.s32.totalorder %s87, %s90
    %p99 = scmp.eq.s32.totalorder %s14, 1
    %p100 = por %p98, %p99
    %p101 = scmp.ne.s32.totalorder %s90, %s91
    %p102 = scmp.eq.s32.totalorder %s14, 0
    %p103 = por %p101, %p102
    %p104 = scmp.ne.s32.totalorder %s90, %s91
    %p105 = scmp.eq.s32.totalorder %s15, 1
    %p106 = por %p104, %p105
    %p108 = scmp.ne.s32.totalorder %s91, %s107
    %p109 = scmp.eq.s32.totalorder %s15, 0
    %p110 = por %p108, %p109
    %p111 = scmp.le.s32.totalorder 1, %s9
    %p112 = scmp.lt.s32.totalorder %s9, 3
    %p113 = pnand %p111, %p112
    %p114 = pneg %p113
    // Predicated region
    $region9: #{bottleneck_forward.4} parent=5 // pred_check
      _
    $region10: #{bottleneck_forward.4} parent=5 // pred_check_branch
      %116 = sbr.rel (%p113) target = $region12
    $region11: #{bottleneck_forward.4} parent=5 // pred_region
      %s117 = ssub.s32 %s9, 1
      // Predicated region
      $region13: #{bottleneck_forward.4} parent=11 // pred_check
        %p118 = pneg %p56
      $region14: #{bottleneck_forward.4} parent=11 // pred_check_branch
        %120 = sbr.rel (%p118) target = $region16
      $region15: #{bottleneck_forward.4} parent=11 // pred_region
        _
      $region16: #{bottleneck_forward.4} parent=11 // pred_fallthru
        _
      // Predicated region
      $region17: #{bottleneck_forward.4} parent=11 // pred_check
        %p121 = pneg %p77
      $region18: #{bottleneck_forward.4} parent=11 // pred_check_branch
        %123 = sbr.rel (%p121) target = $region20
      $region19: #{bottleneck_forward.4} parent=11 // pred_region
        _
      $region20: #{bottleneck_forward.4} parent=11 // pred_fallthru
        _
    $region12: #{bottleneck_forward.4} parent=5 // pred_fallthru
      _
    %p124 = scmp.lt.s32.totalorder %s9, 2
    // Predicated region
    $region21: #{bottleneck_forward.4} parent=5 // pred_check
      %p125 = pneg %p124
    $region22: #{bottleneck_forward.4} parent=5 // pred_check_branch
      %127 = sbr.rel (%p125) target = $region24
    $region23: #{bottleneck_forward.4} parent=5 // pred_region
      // Predicated region
      $region25: #{bottleneck_forward.4} parent=23 // pred_check
        %p128 = pneg %p29
      $region26: #{bottleneck_forward.4} parent=23 // pred_check_branch
        %130 = sbr.rel (%p128) target = $region28
      $region27: #{bottleneck_forward.4} parent=23 // pred_region
        %p131 = scmp.lt.s32.totalorder %s9, 1
        %s132 = scalar_select %p131, %s9, 1
        %s133 = smul.addr %s132, 13
        %s134 = smul.addr %s133, 8
        %s135 = scalar_lea.vmem %s0, %s134
      $region28: #{bottleneck_forward.4} parent=23 // pred_fallthru
        _
    $region24: #{bottleneck_forward.4} parent=5 // pred_fallthru
      _
    %p136 = scmp.le.s32.totalorder 1, %s9
    %p137 = scmp.lt.s32.totalorder %s9, 3
    %p138 = pnand %p136, %p137
    %p139 = pneg %p138
    // Predicated region
    $region29: #{bottleneck_forward.4} parent=5 // pred_check
      _
    $region30: #{bottleneck_forward.4} parent=5 // pred_check_branch
      %141 = sbr.rel (%p138) target = $region32
    $region31: #{bottleneck_forward.4} parent=5 // pred_region
      %s142 = ssub.s32 %s9, 1
      %p143 = scmp.lt.s32.totalorder %s14, 1
      %s144 = scalar_select %p143, %s14, 1
      %s145 = smul.addr %s144, 13
      %s146 = smul.addr %s145, 8
      %s147 = scalar_lea.vmem %s0, %s146
      %p148 = pneg %p35
      %p149 = pneg %p32
      %p150 = pneg %p56
      %p151 = pneg %p53
      %p152 = pneg %p77
      %p153 = pneg %p74
      %p154 = pneg %p103
      %p155 = pneg %p100
      %p156 = scmp.lt.s32.totalorder %s14, 1
      %s157 = scalar_select %p156, %s14, 1
      %s158 = smul.addr %s157, 10
      %s159 = smul.addr %s158, 8
      %s160 = scalar_lea.vmem %s3, %s159
      %p161 = scmp.lt.s32.totalorder %s14, 1
      %s162 = scalar_select %p161, %s14, 1
      %s163 = smul.addr %s162, 13
      %s164 = smul.addr %s163, 8
      %s165 = scalar_lea.vmem %s0, %s164
      %p166 = scmp.lt.s32.totalorder %s14, 1
      %s167 = scalar_select %p166, %s14, 1
      %s168 = smul.addr %s167, 10
      %s169 = smul.addr %s168, 8
      %s170 = scalar_lea.vmem %s3, %s169
      %v171 = vld [vmem:[%s165] sm:$0xff]
      %v172 = vld [vmem:[%s165 + $0x8] sm:$0xff]
      %v173 = vld [vmem:[%s165 + $0x10] sm:$0xff]
      %v174 = vld [vmem:[%s165 + $0x18] sm:$0xff]
      %v175 = vld [vmem:[%s165 + $0x20] sm:$0xff]
      %v176 = vld [vmem:[%s165 + $0x28] sm:$0xff]
      %v177 = vld [vmem:[%s165 + $0x30] sm:$0xff]
      %v178 = vld [vmem:[%s165 + $0x38] sm:$0xff]
      %v179 = vld [vmem:[%s165 + $0x40] sm:$0xff]
      %v180 = vld [vmem:[%s165 + $0x48] sm:$0xff]
      %v181 = vld [vmem:[%s1] sm:$0xff]
      %v182 = vld [vmem:[%s165 + $0x1] sm:$0xff]
      %v183 = vld [vmem:[%s165 + $0x9] sm:$0xff]
      %v184 = vld [vmem:[%s165 + $0x11] sm:$0xff]
      %v185 = vld [vmem:[%s165 + $0x19] sm:$0xff]
      %v186 = vld [vmem:[%s165 + $0x21] sm:$0xff]
      %v187 = vld [vmem:[%s165 + $0x29] sm:$0xff]
      %v188 = vld [vmem:[%s165 + $0x31] sm:$0xff]
      %v189 = vld [vmem:[%s165 + $0x39] sm:$0xff]
      %v190 = vld [vmem:[%s165 + $0x41] sm:$0xff]
      %v191 = vld [vmem:[%s165 + $0x49] sm:$0xff]
      %s192 = scalar_lea.vmem %s1, 8
      %v193 = vld [vmem:[%s192] sm:$0xff]
      %vm194 = vcmask 64512
      %v196 = vsel %vm194, %v182, 0
      %v199 = vsel %vm194, %v183, 0
      %v202 = vsel %vm194, %v184, 0
      %v205 = vsel %vm194, %v185, 0
      %v208 = vsel %vm194, %v186, 0
      %v211 = vsel %vm194, %v187, 0
      %v214 = vsel %vm194, %v188, 0
      %v217 = vsel %vm194, %v189, 0
      %v220 = vsel %vm194, %v190, 0
      %v223 = vsel %vm194, %v191, 0
      %225 = vmatprep.subr.mxu0 0.0
      %226 = vmatpush1.msra.mxu0 %v193
      %227 = vmatprep.subr.mxu0 0.0
      %228 = vmatpush1.msra.mxu0 0.0
      %229 = vmatprep.subr.mxu0 0.0
      %230 = vmatpush1.msra.mxu0 0.0
      %231 = vmatprep.subr.mxu0 0.0
      %232 = vmatpush1.msra.mxu0 0.0
      %233 = vmatprep.subr.mxu0 0.0
      %234 = vmatpush1.msra.mxu0 0.0
      %235 = vmatprep.subr.mxu0 0.0
      %236 = vmatpush1.msra.mxu0 0.0
      %237 = vmatprep.subr.mxu0 0.0
      %238 = vmatpush1.msra.mxu0 0.0
      %239 = vmatprep.subr.mxu0 0.0
      %240 = vmatpush1.msra.mxu0 0.0
      %241 = vmatprep.subr.mxu0 0.0
      %242 = vmatpush1.msra.mxu0 0.0
      %243 = vmatprep.subr.mxu0 0.0
      %244 = vmatpush1.msra.mxu0 0.0
      %245 = vmatprep.subr.mxu0 0.0
      %246 = vmatpush1.msra.mxu0 0.0
      %247 = vmatprep.subr.mxu0 0.0
      %248 = vmatpush1.msra.mxu0 0.0
      %249 = vmatprep.subr.mxu0 0.0
      %250 = vmatpush1.msra.mxu0 0.0
      %251 = vmatprep.subr.mxu0 0.0
      %252 = vmatpush1.msra.mxu0 0.0
      %253 = vmatprep.subr.mxu0 0.0
      %254 = vmatpush1.msra.mxu0 0.0
      %255 = vmatprep.subr.mxu0 0.0
      %256 = vmatpush1.msra.mxu0 0.0
      %257 = vmatprep.subr.mxu0 0.0
      %258 = vmatpush1.msra.mxu0 0.0
      %259 = vmatprep.subr.mxu0 0.0
      %260 = vmatpush1.msra.mxu0 0.0
      %261 = vmatprep.subr.mxu0 0.0
      %262 = vmatpush1.msra.mxu0 0.0
      %263 = vmatprep.subr.mxu0 0.0
      %264 = vmatpush1.msra.mxu0 0.0
      %265 = vmatprep.subr.mxu0 0.0
      %266 = vmatpush1.msra.mxu0 0.0
      %267 = vmatprep.subr.mxu0 0.0
      %268 = vmatpush1.msra.mxu0 0.0
      %269 = vmatprep.subr.mxu0 0.0
      %270 = vmatpush1.msra.mxu0 0.0
      %271 = vmatprep.subr.mxu0 0.0
      %272 = vmatpush1.msra.mxu0 0.0
      %273 = vmatprep.subr.mxu0 0.0
      %274 = vmatpush1.msra.mxu0 0.0
      %275 = vmatprep.subr.mxu0 0.0
      %276 = vmatpush1.msra.mxu0 0.0
      %277 = vmatprep.subr.mxu0 0.0
      %278 = vmatpush1.msra.mxu0 0.0
      %279 = vmatprep.subr.mxu0 0.0
      %280 = vmatpush1.msra.mxu0 0.0
      %281 = vmatprep.subr.mxu0 0.0
      %282 = vmatpush1.msra.mxu0 0.0
      %283 = vmatprep.subr.mxu0 0.0
      %284 = vmatpush1.msra.mxu0 0.0
      %285 = vmatprep.subr.mxu0 0.0
      %286 = vmatpush1.msra.mxu0 0.0
      %287 = vmatprep.subr.mxu0 0.0
      %288 = vmatpush1.msra.mxu0 0.0
      %289 = vmatprep.mubr.f32.mxu0 0.0
      %290 = vmatmul.mubr.f32.gmra.mrb[0].mxu0 %v196
      %v291 = vpop.f32.mrb[0].mxu0
      %v292 = vadd.f32 0.0, %v291
      %v293 = vpop.f32.mrb[0].mxu0
      %294 = vmatprep.mubr.f32.mxu0 0.0
      %295 = vmatmul.mubr.f32.gmra.mrb[0].mxu0 %v199
      %v296 = vpop.f32.mrb[0].mxu0
      %v297 = vadd.f32 0.0, %v296
      %v298 = vpop.f32.mrb[0].mxu0
      %299 = vmatprep.mubr.f32.mxu0 0.0
      %300 = vmatmul.mubr.f32.gmra.mrb[0].mxu0 %v202
      %v301 = vpop.f32.mrb[0].mxu0
      %v302 = vadd.f32 0.0, %v301
      %v303 = vpop.f32.mrb[0].mxu0
      %304 = vmatprep.mubr.f32.mxu0 0.0
      %305 = vmatmul.mubr.f32.gmra.mrb[0].mxu0 %v205
      %v306 = vpop.f32.mrb[0].mxu0
      %v307 = vadd.f32 0.0, %v306
      %v308 = vpop.f32.mrb[0].mxu0
      %309 = vmatprep.mubr.f32.mxu0 0.0
      %310 = vmatmul.mubr.f32.gmra.mrb[0].mxu0 %v208
      %v311 = vpop.f32.mrb[0].mxu0
      %v312 = vadd.f32 0.0, %v311
      %v313 = vpop.f32.mrb[0].mxu0
      %314 = vmatprep.mubr.f32.mxu0 0.0
      %315 = vmatmul.mubr.f32.gmra.mrb[0].mxu0 %v211
      %v316 = vpop.f32.mrb[0].mxu0
      %v317 = vadd.f32 0.0, %v316
      %v318 = vpop.f32.mrb[0].mxu0
      %319 = vmatprep.mubr.f32.mxu0 0.0
      %320 = vmatmul.mubr.f32.gmra.mrb[0].mxu0 %v214
      %v321 = vpop.f32.mrb[0].mxu0
      %v322 = vadd.f32 0.0, %v321
      %v323 = vpop.f32.mrb[0].mxu0
      %324 = vmatprep.mubr.f32.mxu0 0.0
      %325 = vmatmul.mubr.f32.gmra.mrb[0].mxu0 %v217
      %v326 = vpop.f32.mrb[0].mxu0
      %v327 = vadd.f32 0.0, %v326
      %v328 = vpop.f32.mrb[0].mxu0
      %329 = vmatprep.mubr.f32.mxu0 0.0
      %330 = vmatmul.mubr.f32.gmra.mrb[0].mxu0 %v220
      %v331 = vpop.f32.mrb[0].mxu0
      %v332 = vadd.f32 0.0, %v331
      %v333 = vpop.f32.mrb[0].mxu0
      %334 = vmatprep.mubr.f32.mxu0 0.0
      %335 = vmatmul.mubr.f32.gmra.mrb[0].mxu0 %v223
      %v336 = vpop.f32.mrb[0].mxu0
      %v337 = vadd.f32 0.0, %v336
      %v338 = vpop.f32.mrb[0].mxu0
      %339 = vdwg.mxu0
      %v341 = vsel %vm194, %v171, 0
      %v344 = vsel %vm194, %v172, 0
      %v347 = vsel %vm194, %v173, 0
      %v350 = vsel %vm194, %v174, 0
      %v353 = vsel %vm194, %v175, 0
      %v356 = vsel %vm194, %v176, 0
      %v359 = vsel %vm194, %v177, 0
      %v362 = vsel %vm194, %v178, 0
      %v365 = vsel %vm194, %v179, 0
      %v368 = vsel %vm194, %v180, 0
      %370 = vmatprep.subr.mxu0 0.0
      %371 = vmatpush1.msra.mxu0 %v181
      %372 = vmatprep.subr.mxu0 0.0
      %373 = vmatpush1.msra.mxu0 0.0
      %374 = vmatprep.subr.mxu0 0.0
      %375 = vmatpush1.msra.mxu0 0.0
      %376 = vmatprep.subr.mxu0 0.0
      %377 = vmatpush1.msra.mxu0 0.0
      %378 = vmatprep.subr.mxu0 0.0
      %379 = vmatpush1.msra.mxu0 0.0
      %380 = vmatprep.subr.mxu0 0.0
      %381 = vmatpush1.msra.mxu0 0.0
      %382 = vmatprep.subr.mxu0 0.0
      %383 = vmatpush1.msra.mxu0 0.0
      %384 = vmatprep.subr.mxu0 0.0
      %385 = vmatpush1.msra.mxu0 0.0
      %386 = vmatprep.subr.mxu0 0.0
      %387 = vmatpush1.msra.mxu0 0.0
      %388 = vmatprep.subr.mxu0 0.0
      %389 = vmatpush1.msra.mxu0 0.0
      %390 = vmatprep.subr.mxu0 0.0
      %391 = vmatpush1.msra.mxu0 0.0
      %392 = vmatprep.subr.mxu0 0.0
      %393 = vmatpush1.msra.mxu0 0.0
      %394 = vmatprep.subr.mxu0 0.0
      %395 = vmatpush1.msra.mxu0 0.0
      %396 = vmatprep.subr.mxu0 0.0
      %397 = vmatpush1.msra.mxu0 0.0
      %398 = vmatprep.subr.mxu0 0.0
      %399 = vmatpush1.msra.mxu0 0.0
      %400 = vmatprep.subr.mxu0 0.0
      %401 = vmatpush1.msra.mxu0 0.0
      %402 = vmatprep.subr.mxu0 0.0
      %403 = vmatpush1.msra.mxu0 0.0
      %404 = vmatprep.subr.mxu0 0.0
      %405 = vmatpush1.msra.mxu0 0.0
      %406 = vmatprep.subr.mxu0 0.0
      %407 = vmatpush1.msra.mxu0 0.0
      %408 = vmatprep.subr.mxu0 0.0
      %409 = vmatpush1.msra.mxu0 0.0
      %410 = vmatprep.subr.mxu0 0.0
      %411 = vmatpush1.msra.mxu0 0.0
      %412 = vmatprep.subr.mxu0 0.0
      %413 = vmatpush1.msra.mxu0 0.0
      %414 = vmatprep.subr.mxu0 0.0
      %415 = vmatpush1.msra.mxu0 0.0
      %416 = vmatprep.subr.mxu0 0.0
      %417 = vmatpush1.msra.mxu0 0.0
      %418 = vmatprep.subr.mxu0 0.0
      %419 = vmatpush1.msra.mxu0 0.0
      %420 = vmatprep.subr.mxu0 0.0
      %421 = vmatpush1.msra.mxu0 0.0
      %422 = vmatprep.subr.mxu0 0.0
      %423 = vmatpush1.msra.mxu0 0.0
      %424 = vmatprep.subr.mxu0 0.0
      %425 = vmatpush1.msra.mxu0 0.0
      %426 = vmatprep.subr.mxu0 0.0
      %427 = vmatpush1.msra.mxu0 0.0
      %428 = vmatprep.subr.mxu0 0.0
      %429 = vmatpush1.msra.mxu0 0.0
      %430 = vmatprep.subr.mxu0 0.0
      %431 = vmatpush1.msra.mxu0 0.0
      %432 = vmatprep.subr.mxu0 0.0
      %433 = vmatpush1.msra.mxu0 0.0
      %434 = vmatprep.mubr.f32.mxu0 0.0
      %435 = vmatmul.mubr.f32.gmra.mrb[0].mxu0 %v341
      %v436 = vpop.f32.mrb[0].mxu0
      %v437 = vadd.f32 %v292, %v436
      %v438 = vpop.f32.mrb[0].mxu0
      %439 = vmatprep.mubr.f32.mxu0 0.0
      %440 = vmatmul.mubr.f32.gmra.mrb[0].mxu0 %v344
      %v441 = vpop.f32.mrb[0].mxu0
      %v442 = vadd.f32 %v297, %v441
      %v443 = vpop.f32.mrb[0].mxu0
      %444 = vmatprep.mubr.f32.mxu0 0.0
      %445 = vmatmul.mubr.f32.gmra.mrb[0].mxu0 %v347
      %v446 = vpop.f32.mrb[0].mxu0
      %v447 = vadd.f32 %v302, %v446
      %v448 = vpop.f32.mrb[0].mxu0
      %449 = vmatprep.mubr.f32.mxu0 0.0
      %450 = vmatmul.mubr.f32.gmra.mrb[0].mxu0 %v350
      %v451 = vpop.f32.mrb[0].mxu0
      %v452 = vadd.f32 %v307, %v451
      %v453 = vpop.f32.mrb[0].mxu0
      %454 = vmatprep.mubr.f32.mxu0 0.0
      %455 = vmatmul.mubr.f32.gmra.mrb[0].mxu0 %v353
      %v456 = vpop.f32.mrb[0].mxu0
      %v457 = vadd.f32 %v312, %v456
      %v458 = vpop.f32.mrb[0].mxu0
      %459 = vmatprep.mubr.f32.mxu0 0.0
      %460 = vmatmul.mubr.f32.gmra.mrb[0].mxu0 %v356
      %v461 = vpop.f32.mrb[0].mxu0
      %v462 = vadd.f32 %v317, %v461
      %v463 = vpop.f32.mrb[0].mxu0
      %464 = vmatprep.mubr.f32.mxu0 0.0
      %465 = vmatmul.mubr.f32.gmra.mrb[0].mxu0 %v359
      %v466 = vpop.f32.mrb[0].mxu0
      %v467 = vadd.f32 %v322, %v466
      %v468 = vpop.f32.mrb[0].mxu0
      %469 = vmatprep.mubr.f32.mxu0 0.0
      %470 = vmatmul.mubr.f32.gmra.mrb[0].mxu0 %v362
      %v471 = vpop.f32.mrb[0].mxu0
      %v472 = vadd.f32 %v327, %v471
      %v473 = vpop.f32.mrb[0].mxu0
      %474 = vmatprep.mubr.f32.mxu0 0.0
      %475 = vmatmul.mubr.f32.gmra.mrb[0].mxu0 %v365
      %v476 = vpop.f32.mrb[0].mxu0
      %v477 = vadd.f32 %v332, %v476
      %v478 = vpop.f32.mrb[0].mxu0
      %479 = vmatprep.mubr.f32.mxu0 0.0
      %480 = vmatmul.mubr.f32.gmra.mrb[0].mxu0 %v368
      %v481 = vpop.f32.mrb[0].mxu0
      %v482 = vadd.f32 %v337, %v481
      %v483 = vpop.f32.mrb[0].mxu0
      %484 = vdwg.mxu0
      %v485 = vld [vmem:[%s165 + $0x2] sm:$0xff]
      %v486 = vld [vmem:[%s165 + $0xa] sm:$0xff]
      %v487 = vld [vmem:[%s165 + $0x12] sm:$0xff]
      %v488 = vld [vmem:[%s165 + $0x1a] sm:$0xff]
      %v489 = vld [vmem:[%s165 + $0x22] sm:$0xff]
      %v490 = vld [vmem:[%s165 + $0x2a] sm:$0xff]
      %v491 = vld [vmem:[%s165 + $0x32] sm:$0xff]
      %v492 = vld [vmem:[%s165 + $0x3a] sm:$0xff]
      %v493 = vld [vmem:[%s165 + $0x42] sm:$0xff]
      %v494 = vld [vmem:[%s165 + $0x4a] sm:$0xff]
      %s495 = scalar_lea.vmem %s1, 16
      %v496 = vld [vmem:[%s495] sm:$0xff]
      %v498 = vsel %vm194, %v485, 0
      %v501 = vsel %vm194, %v486, 0
      %v504 = vsel %vm194, %v487, 0
      %v507 = vsel %vm194, %v488, 0
      %v510 = vsel %vm194, %v489, 0
      %v513 = vsel %vm194, %v490, 0
      %v516 = vsel %vm194, %v491, 0
      %v519 = vsel %vm194, %v492, 0
      %v522 = vsel %vm194, %v493, 0
      %v525 = vsel %vm194, %v494, 0
      %527 = vmatprep.subr.mxu0 0.0
      %528 = vmatpush1.msra.mxu0 %v496
      %529 = vmatprep.subr.mxu0 0.0
      %530 = vmatpush1.msra.mxu0 0.0
      %531 = vmatprep.subr.mxu0 0.0
      %532 = vmatpush1.msra.mxu0 0.0
      %533 = vmatprep.subr.mxu0 0.0
      %534 = vmatpush1.msra.mxu0 0.0
      %535 = vmatprep.subr.mxu0 0.0
      %536 = vmatpush1.msra.mxu0 0.0
      %537 = vmatprep.subr.mxu0 0.0
      %538 = vmatpush1.msra.mxu0 0.0
      %539 = vmatprep.subr.mxu0 0.0
      %540 = vmatpush1.msra.mxu0 0.0
      %541 = vmatprep.subr.mxu0 0.0
      %542 = vmatpush1.msra.mxu0 0.0
      %543 = vmatprep.subr.mxu0 0.0
      %544 = vmatpush1.msra.mxu0 0.0
      %545 = vmatprep.subr.mxu0 0.0
      %546 = vmatpush1.msra.mxu0 0.0
      %547 = vmatprep.subr.mxu0 0.0
      %548 = vmatpush1.msra.mxu0 0.0
      %549 = vmatprep.subr.mxu0 0.0
      %550 = vmatpush1.msra.mxu0 0.0
      %551 = vmatprep.subr.mxu0 0.0
      %552 = vmatpush1.msra.mxu0 0.0
      %553 = vmatprep.subr.mxu0 0.0
      %554 = vmatpush1.msra.mxu0 0.0
      %555 = vmatprep.subr.mxu0 0.0
      %556 = vmatpush1.msra.mxu0 0.0
      %557 = vmatprep.subr.mxu0 0.0
      %558 = vmatpush1.msra.mxu0 0.0
      %559 = vmatprep.subr.mxu0 0.0
      %560 = vmatpush1.msra.mxu0 0.0
      %561 = vmatprep.subr.mxu0 0.0
      %562 = vmatpush1.msra.mxu0 0.0
      %563 = vmatprep.subr.mxu0 0.0
      %564 = vmatpush1.msra.mxu0 0.0
      %565 = vmatprep.subr.mxu0 0.0
      %566 = vmatpush1.msra.mxu0 0.0
      %567 = vmatprep.subr.mxu0 0.0
      %568 = vmatpush1.msra.mxu0 0.0
      %569 = vmatprep.subr.mxu0 0.0
      %570 = vmatpush1.msra.mxu0 0.0
      %571 = vmatprep.subr.mxu0 0.0
      %572 = vmatpush1.msra.mxu0 0.0
      %573 = vmatprep.subr.mxu0 0.0
      %574 = vmatpush1.msra.mxu0 0.0
      %575 = vmatprep.subr.mxu0 0.0
      %576 = vmatpush1.msra.mxu0 0.0
      %577 = vmatprep.subr.mxu0 0.0
      %578 = vmatpush1.msra.mxu0 0.0
      %579 = vmatprep.subr.mxu0 0.0
      %580 = vmatpush1.msra.mxu0 0.0
      %581 = vmatprep.subr.mxu0 0.0
      %582 = vmatpush1.msra.mxu0 0.0
      %583 = vmatprep.subr.mxu0 0.0
      %584 = vmatpush1.msra.mxu0 0.0
      %585 = vmatprep.subr.mxu0 0.0
      %586 = vmatpush1.msra.mxu0 0.0
      %587 = vmatprep.subr.mxu0 0.0
      %588 = vmatpush1.msra.mxu0 0.0
      %589 = vmatprep.subr.mxu0 0.0
      %590 = vmatpush1.msra.mxu0 0.0
      %591 = vmatprep.mubr.f32.mxu0 0.0
      %592 = vmatmul.mubr.f32.gmra.mrb[0].mxu0 %v498
      %v593 = vpop.f32.mrb[0].mxu0
      %v594 = vadd.f32 0.0, %v593
      %v595 = vpop.f32.mrb[0].mxu0
      %596 = vmatprep.mubr.f32.mxu0 0.0
      %597 = vmatmul.mubr.f32.gmra.mrb[0].mxu0 %v501
      %v598 = vpop.f32.mrb[0].mxu0
      %v599 = vadd.f32 0.0, %v598
      %v600 = vpop.f32.mrb[0].mxu0
      %601 = vmatprep.mubr.f32.mxu0 0.0
      %602 = vmatmul.mubr.f32.gmra.mrb[0].mxu0 %v504
      %v603 = vpop.f32.mrb[0].mxu0
      %v604 = vadd.f32 0.0, %v603
      %v605 = vpop.f32.mrb[0].mxu0
      %606 = vmatprep.mubr.f32.mxu0 0.0
      %607 = vmatmul.mubr.f32.gmra.mrb[0].mxu0 %v507
      %v608 = vpop.f32.mrb[0].mxu0
      %v609 = vadd.f32 0.0, %v608
      %v610 = vpop.f32.mrb[0].mxu0
      %611 = vmatprep.mubr.f32.mxu0 0.0
      %612 = vmatmul.mubr.f32.gmra.mrb[0].mxu0 %v510
      %v613 = vpop.f32.mrb[0].mxu0
      %v614 = vadd.f32 0.0, %v613
      %v615 = vpop.f32.mrb[0].mxu0
      %616 = vmatprep.mubr.f32.mxu0 0.0
      %617 = vmatmul.mubr.f32.gmra.mrb[0].mxu0 %v513
      %v618 = vpop.f32.mrb[0].mxu0
      %v619 = vadd.f32 0.0, %v618
      %v620 = vpop.f32.mrb[0].mxu0
      %621 = vmatprep.mubr.f32.mxu0 0.0
      %622 = vmatmul.mubr.f32.gmra.mrb[0].mxu0 %v516
      %v623 = vpop.f32.mrb[0].mxu0
      %v624 = vadd.f32 0.0, %v623
      %v625 = vpop.f32.mrb[0].mxu0
      %626 = vmatprep.mubr.f32.mxu0 0.0
      %627 = vmatmul.mubr.f32.gmra.mrb[0].mxu0 %v519
      %v628 = vpop.f32.mrb[0].mxu0
      %v629 = vadd.f32 0.0, %v628
      %v630 = vpop.f32.mrb[0].mxu0
      %631 = vmatprep.mubr.f32.mxu0 0.0
      %632 = vmatmul.mubr.f32.gmra.mrb[0].mxu0 %v522
      %v633 = vpop.f32.mrb[0].mxu0
      %v634 = vadd.f32 0.0, %v633
      %v635 = vpop.f32.mrb[0].mxu0
      %636 = vmatprep.mubr.f32.mxu0 0.0
      %637 = vmatmul.mubr.f32.gmra.mrb[0].mxu0 %v525
      %v638 = vpop.f32.mrb[0].mxu0
      %v639 = vadd.f32 0.0, %v638
      %v640 = vpop.f32.mrb[0].mxu0
      %641 = vdwg.mxu0
      %v642 = vadd.f32 %v437, %v594
      %v643 = vadd.f32 %v442, %v599
      %v644 = vadd.f32 %v447, %v604
      %v645 = vadd.f32 %v452, %v609
      %v646 = vadd.f32 %v457, %v614
      %v647 = vadd.f32 %v462, %v619
      %v648 = vadd.f32 %v467, %v624
      %v649 = vadd.f32 %v472, %v629
      %v650 = vadd.f32 %v477, %v634
      %v651 = vadd.f32 %v482, %v639
      %v652 = vld [vmem:[%s165 + $0xa] sm:$0xff]
      %v653 = vld [vmem:[%s165 + $0x12] sm:$0xff]
      %v654 = vld [vmem:[%s165 + $0x1a] sm:$0xff]
      %v655 = vld [vmem:[%s165 + $0x22] sm:$0xff]
      %v656 = vld [vmem:[%s165 + $0x2a] sm:$0xff]
      %v657 = vld [vmem:[%s165 + $0x32] sm:$0xff]
      %v658 = vld [vmem:[%s165 + $0x3a] sm:$0xff]
      %v659 = vld [vmem:[%s165 + $0x42] sm:$0xff]
      %v660 = vld [vmem:[%s165 + $0x4a] sm:$0xff]
      %v661 = vld [vmem:[%s165 + $0x52] sm:$0xff]
      %s662 = scalar_lea.vmem %s1, 24
      %v663 = vld [vmem:[%s662] sm:$0xff]
      %v665 = vsel %vm194, %v652, 0
      %v668 = vsel %vm194, %v653, 0
      %v671 = vsel %vm194, %v654, 0
      %v674 = vsel %vm194, %v655, 0
      %v677 = vsel %vm194, %v656, 0
      %v680 = vsel %vm194, %v657, 0
      %v683 = vsel %vm194, %v658, 0
      %v686 = vsel %vm194, %v659, 0
      %v689 = vsel %vm194, %v660, 0
      %v692 = vsel %vm194, %v661, 0
      %694 = vmatprep.subr.mxu0 0.0
      %695 = vmatpush1.msra.mxu0 %v663
      %696 = vmatprep.subr.mxu0 0.0
      %697 = vmatpush1.msra.mxu0 0.0
      %698 = vmatprep.subr.mxu0 0.0
      %699 = vmatpush1.msra.mxu0 0.0
      %700 = vmatprep.subr.mxu0 0.0
      %701 = vmatpush1.msra.mxu0 0.0
      %702 = vmatprep.subr.mxu0 0.0
      %703 = vmatpush1.msra.mxu0 0.0
      %704 = vmatprep.subr.mxu0 0.0
      %705 = vmatpush1.msra.mxu0 0.0
      %706 = vmatprep.subr.mxu0 0.0
      %707 = vmatpush1.msra.mxu0 0.0
      %708 = vmatprep.subr.mxu0 0.0
      %709 = vmatpush1.msra.mxu0 0.0
      %710 = vmatprep.subr.mxu0 0.0
      %711 = vmatpush1.msra.mxu0 0.0
      %712 = vmatprep.subr.mxu0 0.0
      %713 = vmatpush1.msra.mxu0 0.0
      %714 = vmatprep.subr.mxu0 0.0
      %715 = vmatpush1.msra.mxu0 0.0
      %716 = vmatprep.subr.mxu0 0.0
      %717 = vmatpush1.msra.mxu0 0.0
      %718 = vmatprep.subr.mxu0 0.0
      %719 = vmatpush1.msra.mxu0 0.0
      %720 = vmatprep.subr.mxu0 0.0
      %721 = vmatpush1.msra.mxu0 0.0
      %722 = vmatprep.subr.mxu0 0.0
      %723 = vmatpush1.msra.mxu0 0.0
      %724 = vmatprep.subr.mxu0 0.0
      %725 = vmatpush1.msra.mxu0 0.0
      %726 = vmatprep.subr.mxu0 0.0
      %727 = vmatpush1.msra.mxu0 0.0
      %728 = vmatprep.subr.mxu0 0.0
      %729 = vmatpush1.msra.mxu0 0.0
      %730 = vmatprep.subr.mxu0 0.0
      %731 = vmatpush1.msra.mxu0 0.0
      %732 = vmatprep.subr.mxu0 0.0
      %733 = vmatpush1.msra.mxu0 0.0
      %734 = vmatprep.subr.mxu0 0.0
      %735 = vmatpush1.msra.mxu0 0.0
      %736 = vmatprep.subr.mxu0 0.0
      %737 = vmatpush1.msra.mxu0 0.0
      %738 = vmatprep.subr.mxu0 0.0
      %739 = vmatpush1.msra.mxu0 0.0
      %740 = vmatprep.subr.mxu0 0.0
      %741 = vmatpush1.msra.mxu0 0.0
      %742 = vmatprep.subr.mxu0 0.0
      %743 = vmatpush1.msra.mxu0 0.0
      %744 = vmatprep.subr.mxu0 0.0
      %745 = vmatpush1.msra.mxu0 0.0
      %746 = vmatprep.subr.mxu0 0.0
      %747 = vmatpush1.msra.mxu0 0.0
      %748 = vmatprep.subr.mxu0 0.0
      %749 = vmatpush1.msra.mxu0 0.0
      %750 = vmatprep.subr.mxu0 0.0
      %751 = vmatpush1.msra.mxu0 0.0
      %752 = vmatprep.subr.mxu0 0.0
      %753 = vmatpush1.msra.mxu0 0.0
      %754 = vmatprep.subr.mxu0 0.0
      %755 = vmatpush1.msra.mxu0 0.0
      %756 = vmatprep.subr.mxu0 0.0
      %757 = vmatpush1.msra.mxu0 0.0
      %758 = vmatprep.mubr.f32.mxu0 0.0
      %759 = vmatmul.mubr.f32.gmra.mrb[0].mxu0 %v665
      %v760 = vpop.f32.mrb[0].mxu0
      %v761 = vadd.f32 0.0, %v760
      %v762 = vpop.f32.mrb[0].mxu0
      %763 = vmatprep.mubr.f32.mxu0 0.0
      %764 = vmatmul.mubr.f32.gmra.mrb[0].mxu0 %v668
      %v765 = vpop.f32.mrb[0].mxu0
      %v766 = vadd.f32 0.0, %v765
      %v767 = vpop.f32.mrb[0].mxu0
      %768 = vmatprep.mubr.f32.mxu0 0.0
      %769 = vmatmul.mubr.f32.gmra.mrb[0].mxu0 %v671
      %v770 = vpop.f32.mrb[0].mxu0
      %v771 = vadd.f32 0.0, %v770
      %v772 = vpop.f32.mrb[0].mxu0
      %773 = vmatprep.mubr.f32.mxu0 0.0
      %774 = vmatmul.mubr.f32.gmra.mrb[0].mxu0 %v674
      %v775 = vpop.f32.mrb[0].mxu0
      %v776 = vadd.f32 0.0, %v775
      %v777 = vpop.f32.mrb[0].mxu0
      %778 = vmatprep.mubr.f32.mxu0 0.0
      %779 = vmatmul.mubr.f32.gmra.mrb[0].mxu0 %v677
      %v780 = vpop.f32.mrb[0].mxu0
      %v781 = vadd.f32 0.0, %v780
      %v782 = vpop.f32.mrb[0].mxu0
      %783 = vmatprep.mubr.f32.mxu0 0.0
      %784 = vmatmul.mubr.f32.gmra.mrb[0].mxu0 %v680
      %v785 = vpop.f32.mrb[0].mxu0
      %v786 = vadd.f32 0.0, %v785
      %v787 = vpop.f32.mrb[0].mxu0
      %788 = vmatprep.mubr.f32.mxu0 0.0
      %789 = vmatmul.mubr.f32.gmra.mrb[0].mxu0 %v683
      %v790 = vpop.f32.mrb[0].mxu0
      %v791 = vadd.f32 0.0, %v790
      %v792 = vpop.f32.mrb[0].mxu0
      %793 = vmatprep.mubr.f32.mxu0 0.0
      %794 = vmatmul.mubr.f32.gmra.mrb[0].mxu0 %v686
      %v795 = vpop.f32.mrb[0].mxu0
      %v796 = vadd.f32 0.0, %v795
      %v797 = vpop.f32.mrb[0].mxu0
      %798 = vmatprep.mubr.f32.mxu0 0.0
      %799 = vmatmul.mubr.f32.gmra.mrb[0].mxu0 %v689
      %v800 = vpop.f32.mrb[0].mxu0
      %v801 = vadd.f32 0.0, %v800
      %v802 = vpop.f32.mrb[0].mxu0
      %803 = vmatprep.mubr.f32.mxu0 0.0
      %804 = vmatmul.mubr.f32.gmra.mrb[0].mxu0 %v692
      %v805 = vpop.f32.mrb[0].mxu0
      %v806 = vadd.f32 0.0, %v805
      %v807 = vpop.f32.mrb[0].mxu0
      %808 = vdwg.mxu0
      %v809 = vadd.f32 %v642, %v761
      %v810 = vadd.f32 %v643, %v766
      %v811 = vadd.f32 %v644, %v771
      %v812 = vadd.f32 %v645, %v776
      %v813 = vadd.f32 %v646, %v781
      %v814 = vadd.f32 %v647, %v786
      %v815 = vadd.f32 %v648, %v791
      %v816 = vadd.f32 %v649, %v796
      %v817 = vadd.f32 %v650, %v801
      %v818 = vadd.f32 %v651, %v806
      %v819 = vld [vmem:[%s165 + $0xb] sm:$0xff]
      %v820 = vld [vmem:[%s165 + $0x13] sm:$0xff]
      %v821 = vld [vmem:[%s165 + $0x1b] sm:$0xff]
      %v822 = vld [vmem:[%s165 + $0x23] sm:$0xff]
      %v823 = vld [vmem:[%s165 + $0x2b] sm:$0xff]
      %v824 = vld [vmem:[%s165 + $0x33] sm:$0xff]
      %v825 = vld [vmem:[%s165 + $0x3b] sm:$0xff]
      %v826 = vld [vmem:[%s165 + $0x43] sm:$0xff]
      %v827 = vld [vmem:[%s165 + $0x4b] sm:$0xff]
      %v828 = vld [vmem:[%s165 + $0x53] sm:$0xff]
      %s829 = scalar_lea.vmem %s1, 32
      %v830 = vld [vmem:[%s829] sm:$0xff]
      %v832 = vsel %vm194, %v819, 0
      %v835 = vsel %vm194, %v820, 0
      %v838 = vsel %vm194, %v821, 0
      %v841 = vsel %vm194, %v822, 0
      %v844 = vsel %vm194, %v823, 0
      %v847 = vsel %vm194, %v824, 0
      %v850 = vsel %vm194, %v825, 0
      %v853 = vsel %vm194, %v826, 0
      %v856 = vsel %vm194, %v827, 0
      %v859 = vsel %vm194, %v828, 0
      %861 = vmatprep.subr.mxu0 0.0
      %862 = vmatpush1.msra.mxu0 %v830
      %863 = vmatprep.subr.mxu0 0.0
      %864 = vmatpush1.msra.mxu0 0.0
      %865 = vmatprep.subr.mxu0 0.0
      %866 = vmatpush1.msra.mxu0 0.0
      %867 = vmatprep.subr.mxu0 0.0
      %868 = vmatpush1.msra.mxu0 0.0
      %869 = vmatprep.subr.mxu0 0.0
      %870 = vmatpush1.msra.mxu0 0.0
      %871 = vmatprep.subr.mxu0 0.0
      %872 = vmatpush1.msra.mxu0 0.0
      %873 = vmatprep.subr.mxu0 0.0
      %874 = vmatpush1.msra.mxu0 0.0
      %875 = vmatprep.subr.mxu0 0.0
      %876 = vmatpush1.msra.mxu0 0.0
      %877 = vmatprep.subr.mxu0 0.0
      %878 = vmatpush1.msra.mxu0 0.0
      %879 = vmatprep.subr.mxu0 0.0
      %880 = vmatpush1.msra.mxu0 0.0
      %881 = vmatprep.subr.mxu0 0.0
      %882 = vmatpush1.msra.mxu0 0.0
      %883 = vmatprep.subr.mxu0 0.0
      %884 = vmatpush1.msra.mxu0 0.0
      %885 = vmatprep.subr.mxu0 0.0
      %886 = vmatpush1.msra.mxu0 0.0
      %887 = vmatprep.subr.mxu0 0.0
      %888 = vmatpush1.msra.mxu0 0.0
      %889 = vmatprep.subr.mxu0 0.0
      %890 = vmatpush1.msra.mxu0 0.0
      %891 = vmatprep.subr.mxu0 0.0
      %892 = vmatpush1.msra.mxu0 0.0
      %893 = vmatprep.subr.mxu0 0.0
      %894 = vmatpush1.msra.mxu0 0.0
      %895 = vmatprep.subr.mxu0 0.0
      %896 = vmatpush1.msra.mxu0 0.0
      %897 = vmatprep.subr.mxu0 0.0
      %898 = vmatpush1.msra.mxu0 0.0
      %899 = vmatprep.subr.mxu0 0.0
      %900 = vmatpush1.msra.mxu0 0.0
      %901 = vmatprep.subr.mxu0 0.0
      %902 = vmatpush1.msra.mxu0 0.0
      %903 = vmatprep.subr.mxu0 0.0
      %904 = vmatpush1.msra.mxu0 0.0
      %905 = vmatprep.subr.mxu0 0.0
      %906 = vmatpush1.msra.mxu0 0.0
      %907 = vmatprep.subr.mxu0 0.0
      %908 = vmatpush1.msra.mxu0 0.0
      %909 = vmatprep.subr.mxu0 0.0
      %910 = vmatpush1.msra.mxu0 0.0
      %911 = vmatprep.subr.mxu0 0.0
      %912 = vmatpush1.msra.mxu0 0.0
      %913 = vmatprep.subr.mxu0 0.0
      %914 = vmatpush1.msra.mxu0 0.0
      %915 = vmatprep.subr.mxu0 0.0
      %916 = vmatpush1.msra.mxu0 0.0
      %917 = vmatprep.subr.mxu0 0.0
      %918 = vmatpush1.msra.mxu0 0.0
      %919 = vmatprep.subr.mxu0 0.0
      %920 = vmatpush1.msra.mxu0 0.0
      %921 = vmatprep.subr.mxu0 0.0
      %922 = vmatpush1.msra.mxu0 0.0
      %923 = vmatprep.subr.mxu0 0.0
      %924 = vmatpush1.msra.mxu0 0.0
      %925 = vmatprep.mubr.f32.mxu0 0.0
      %926 = vmatmul.mubr.f32.gmra.mrb[0].mxu0 %v832
      %v927 = vpop.f32.mrb[0].mxu0
      %v928 = vadd.f32 0.0, %v927
      %v929 = vpop.f32.mrb[0].mxu0
      %930 = vmatprep.mubr.f32.mxu0 0.0
      %931 = vmatmul.mubr.f32.gmra.mrb[0].mxu0 %v835
      %v932 = vpop.f32.mrb[0].mxu0
      %v933 = vadd.f32 0.0, %v932
      %v934 = vpop.f32.mrb[0].mxu0
      %935 = vmatprep.mubr.f32.mxu0 0.0
      %936 = vmatmul.mubr.f32.gmra.mrb[0].mxu0 %v838
      %v937 = vpop.f32.mrb[0].mxu0
      %v938 = vadd.f32 0.0, %v937
      %v939 = vpop.f32.mrb[0].mxu0
      %940 = vmatprep.mubr.f32.mxu0 0.0
      %941 = vmatmul.mubr.f32.gmra.mrb[0].mxu0 %v841
      %v942 = vpop.f32.mrb[0].mxu0
      %v943 = vadd.f32 0.0, %v942
      %v944 = vpop.f32.mrb[0].mxu0
      %945 = vmatprep.mubr.f32.mxu0 0.0
      %946 = vmatmul.mubr.f32.gmra.mrb[0].mxu0 %v844
      %v947 = vpop.f32.mrb[0].mxu0
      %v948 = vadd.f32 0.0, %v947
      %v949 = vpop.f32.mrb[0].mxu0
      %950 = vmatprep.mubr.f32.mxu0 0.0
      %951 = vmatmul.mubr.f32.gmra.mrb[0].mxu0 %v847
      %v952 = vpop.f32.mrb[0].mxu0
      %v953 = vadd.f32 0.0, %v952
      %v954 = vpop.f32.mrb[0].mxu0
      %955 = vmatprep.mubr.f32.mxu0 0.0
      %956 = vmatmul.mubr.f32.gmra.mrb[0].mxu0 %v850
      %v957 = vpop.f32.mrb[0].mxu0
      %v958 = vadd.f32 0.0, %v957
      %v959 = vpop.f32.mrb[0].mxu0
      %960 = vmatprep.mubr.f32.mxu0 0.0
      %961 = vmatmul.mubr.f32.gmra.mrb[0].mxu0 %v853
      %v962 = vpop.f32.mrb[0].mxu0
      %v963 = vadd.f32 0.0, %v962
      %v964 = vpop.f32.mrb[0].mxu0
      %965 = vmatprep.mubr.f32.mxu0 0.0
      %966 = vmatmul.mubr.f32.gmra.mrb[0].mxu0 %v856
      %v967 = vpop.f32.mrb[0].mxu0
      %v968 = vadd.f32 0.0, %v967
      %v969 = vpop.f32.mrb[0].mxu0
      %970 = vmatprep.mubr.f32.mxu0 0.0
      %971 = vmatmul.mubr.f32.gmra.mrb[0].mxu0 %v859
      %v972 = vpop.f32.mrb[0].mxu0
      %v973 = vadd.f32 0.0, %v972
      %v974 = vpop.f32.mrb[0].mxu0
      %975 = vdwg.mxu0
      %v976 = vadd.f32 %v809, %v928
      %v977 = vadd.f32 %v810, %v933
      %v978 = vadd.f32 %v811, %v938
      %v979 = vadd.f32 %v812, %v943
      %v980 = vadd.f32 %v813, %v948
      %v981 = vadd.f32 %v814, %v953
      %v982 = vadd.f32 %v815, %v958
      %v983 = vadd.f32 %v816, %v963
      %v984 = vadd.f32 %v817, %v968
      %v985 = vadd.f32 %v818, %v973
      %v986 = vld [vmem:[%s165 + $0xc] sm:$0xff]
      %v987 = vld [vmem:[%s165 + $0x14] sm:$0xff]
      %v988 = vld [vmem:[%s165 + $0x1c] sm:$0xff]
      %v989 = vld [vmem:[%s165 + $0x24] sm:$0xff]
      %v990 = vld [vmem:[%s165 + $0x2c] sm:$0xff]
      %v991 = vld [vmem:[%s165 + $0x34] sm:$0xff]
      %v992 = vld [vmem:[%s165 + $0x3c] sm:$0xff]
      %v993 = vld [vmem:[%s165 + $0x44] sm:$0xff]
      %v994 = vld [vmem:[%s165 + $0x4c] sm:$0xff]
      %v995 = vld [vmem:[%s165 + $0x54] sm:$0xff]
      %s996 = scalar_lea.vmem %s1, 40
      %v997 = vld [vmem:[%s996] sm:$0xff]
      %v999 = vsel %vm194, %v986, 0
      %v1002 = vsel %vm194, %v987, 0
      %v1005 = vsel %vm194, %v988, 0
      %v1008 = vsel %vm194, %v989, 0
      %v1011 = vsel %vm194, %v990, 0
      %v1014 = vsel %vm194, %v991, 0
      %v1017 = vsel %vm194, %v992, 0
      %v1020 = vsel %vm194, %v993, 0
      %v1023 = vsel %vm194, %v994, 0
      %v1026 = vsel %vm194, %v995, 0
      %1028 = vmatprep.subr.mxu0 0.0
      %1029 = vmatpush1.msra.mxu0 %v997
      %1030 = vmatprep.subr.mxu0 0.0
      %1031 = vmatpush1.msra.mxu0 0.0
      %1032 = vmatprep.subr.mxu0 0.0
      %1033 = vmatpush1.msra.mxu0 0.0
      %1034 = vmatprep.subr.mxu0 0.0
      %1035 = vmatpush1.msra.mxu0 0.0
      %1036 = vmatprep.subr.mxu0 0.0
      %1037 = vmatpush1.msra.mxu0 0.0
      %1038 = vmatprep.subr.mxu0 0.0
      %1039 = vmatpush1.msra.mxu0 0.0
      %1040 = vmatprep.subr.mxu0 0.0
      %1041 = vmatpush1.msra.mxu0 0.0
      %1042 = vmatprep.subr.mxu0 0.0
      %1043 = vmatpush1.msra.mxu0 0.0
      %1044 = vmatprep.subr.mxu0 0.0
      %1045 = vmatpush1.msra.mxu0 0.0
      %1046 = vmatprep.subr.mxu0 0.0
      %1047 = vmatpush1.msra.mxu0 0.0
      %1048 = vmatprep.subr.mxu0 0.0
      %1049 = vmatpush1.msra.mxu0 0.0
      %1050 = vmatprep.subr.mxu0 0.0
      %1051 = vmatpush1.msra.mxu0 0.0
      %1052 = vmatprep.subr.mxu0 0.0
      %1053 = vmatpush1.msra.mxu0 0.0
      %1054 = vmatprep.subr.mxu0 0.0
      %1055 = vmatpush1.msra.mxu0 0.0
      %1056 = vmatprep.subr.mxu0 0.0
      %1057 = vmatpush1.msra.mxu0 0.0
      %1058 = vmatprep.subr.mxu0 0.0
      %1059 = vmatpush1.msra.mxu0 0.0
      %1060 = vmatprep.subr.mxu0 0.0
      %1061 = vmatpush1.msra.mxu0 0.0
      %1062 = vmatprep.subr.mxu0 0.0
      %1063 = vmatpush1.msra.mxu0 0.0
      %1064 = vmatprep.subr.mxu0 0.0
      %1065 = vmatpush1.msra.mxu0 0.0
      %1066 = vmatprep.subr.mxu0 0.0
      %1067 = vmatpush1.msra.mxu0 0.0
      %1068 = vmatprep.subr.mxu0 0.0
      %1069 = vmatpush1.msra.mxu0 0.0
      %1070 = vmatprep.subr.mxu0 0.0
      %1071 = vmatpush1.msra.mxu0 0.0
      %1072 = vmatprep.subr.mxu0 0.0
      %1073 = vmatpush1.msra.mxu0 0.0
      %1074 = vmatprep.subr.mxu0 0.0
      %1075 = vmatpush1.msra.mxu0 0.0
      %1076 = vmatprep.subr.mxu0 0.0
      %1077 = vmatpush1.msra.mxu0 0.0
      %1078 = vmatprep.subr.mxu0 0.0
      %1079 = vmatpush1.msra.mxu0 0.0
      %1080 = vmatprep.subr.mxu0 0.0
      %1081 = vmatpush1.msra.mxu0 0.0
      %1082 = vmatprep.subr.mxu0 0.0
      %1083 = vmatpush1.msra.mxu0 0.0
      %1084 = vmatprep.subr.mxu0 0.0
      %1085 = vmatpush1.msra.mxu0 0.0
      %1086 = vmatprep.subr.mxu0 0.0
      %1087 = vmatpush1.msra.mxu0 0.0
      %1088 = vmatprep.subr.mxu0 0.0
      %1089 = vmatpush1.msra.mxu0 0.0
      %1090 = vmatprep.subr.mxu0 0.0
      %1091 = vmatpush1.msra.mxu0 0.0
      %1092 = vmatprep.mubr.f32.mxu0 0.0
      %1093 = vmatmul.mubr.f32.gmra.mrb[0].mxu0 %v999
      %v1094 = vpop.f32.mrb[0].mxu0
      %v1095 = vadd.f32 0.0, %v1094
      %v1096 = vpop.f32.mrb[0].mxu0
      %1097 = vmatprep.mubr.f32.mxu0 0.0
      %1098 = vmatmul.mubr.f32.gmra.mrb[0].mxu0 %v1002
      %v1099 = vpop.f32.mrb[0].mxu0
      %v1100 = vadd.f32 0.0, %v1099
      %v1101 = vpop.f32.mrb[0].mxu0
      %1102 = vmatprep.mubr.f32.mxu0 0.0
      %1103 = vmatmul.mubr.f32.gmra.mrb[0].mxu0 %v1005
      %v1104 = vpop.f32.mrb[0].mxu0
      %v1105 = vadd.f32 0.0, %v1104
      %v1106 = vpop.f32.mrb[0].mxu0
      %1107 = vmatprep.mubr.f32.mxu0 0.0
      %1108 = vmatmul.mubr.f32.gmra.mrb[0].mxu0 %v1008
      %v1109 = vpop.f32.mrb[0].mxu0
      %v1110 = vadd.f32 0.0, %v1109
      %v1111 = vpop.f32.mrb[0].mxu0
      %1112 = vmatprep.mubr.f32.mxu0 0.0
      %1113 = vmatmul.mubr.f32.gmra.mrb[0].mxu0 %v1011
      %v1114 = vpop.f32.mrb[0].mxu0
      %v1115 = vadd.f32 0.0, %v1114
      %v1116 = vpop.f32.mrb[0].mxu0
      %1117 = vmatprep.mubr.f32.mxu0 0.0
      %1118 = vmatmul.mubr.f32.gmra.mrb[0].mxu0 %v1014
      %v1119 = vpop.f32.mrb[0].mxu0
      %v1120 = vadd.f32 0.0, %v1119
      %v1121 = vpop.f32.mrb[0].mxu0
      %1122 = vmatprep.mubr.f32.mxu0 0.0
      %1123 = vmatmul.mubr.f32.gmra.mrb[0].mxu0 %v1017
      %v1124 = vpop.f32.mrb[0].mxu0
      %v1125 = vadd.f32 0.0, %v1124
      %v1126 = vpop.f32.mrb[0].mxu0
      %1127 = vmatprep.mubr.f32.mxu0 0.0
      %1128 = vmatmul.mubr.f32.gmra.mrb[0].mxu0 %v1020
      %v1129 = vpop.f32.mrb[0].mxu0
      %v1130 = vadd.f32 0.0, %v1129
      %v1131 = vpop.f32.mrb[0].mxu0
      %1132 = vmatprep.mubr.f32.mxu0 0.0
      %1133 = vmatmul.mubr.f32.gmra.mrb[0].mxu0 %v1023
      %v1134 = vpop.f32.mrb[0].mxu0
      %v1135 = vadd.f32 0.0, %v1134
      %v1136 = vpop.f32.mrb[0].mxu0
      %1137 = vmatprep.mubr.f32.mxu0 0.0
      %1138 = vmatmul.mubr.f32.gmra.mrb[0].mxu0 %v1026
      %v1139 = vpop.f32.mrb[0].mxu0
      %v1140 = vadd.f32 0.0, %v1139
      %v1141 = vpop.f32.mrb[0].mxu0
      %1142 = vdwg.mxu0
      %v1143 = vadd.f32 %v976, %v1095
      %v1144 = vadd.f32 %v977, %v1100
      %v1145 = vadd.f32 %v978, %v1105
      %v1146 = vadd.f32 %v979, %v1110
      %v1147 = vadd.f32 %v980, %v1115
      %v1148 = vadd.f32 %v981, %v1120
      %v1149 = vadd.f32 %v982, %v1125
      %v1150 = vadd.f32 %v983, %v1130
      %v1151 = vadd.f32 %v984, %v1135
      %v1152 = vadd.f32 %v985, %v1140
      %v1153 = vld [vmem:[%s165 + $0x14] sm:$0xff]
      %v1154 = vld [vmem:[%s165 + $0x1c] sm:$0xff]
      %v1155 = vld [vmem:[%s165 + $0x24] sm:$0xff]
      %v1156 = vld [vmem:[%s165 + $0x2c] sm:$0xff]
      %v1157 = vld [vmem:[%s165 + $0x34] sm:$0xff]
      %v1158 = vld [vmem:[%s165 + $0x3c] sm:$0xff]
      %v1159 = vld [vmem:[%s165 + $0x44] sm:$0xff]
      %v1160 = vld [vmem:[%s165 + $0x4c] sm:$0xff]
      %v1161 = vld [vmem:[%s165 + $0x54] sm:$0xff]
      %v1162 = vld [vmem:[%s165 + $0x5c] sm:$0xff]
      %s1163 = scalar_lea.vmem %s1, 48
      %v1164 = vld [vmem:[%s1163] sm:$0xff]
      %v1166 = vsel %vm194, %v1153, 0
      %v1169 = vsel %vm194, %v1154, 0
      %v1172 = vsel %vm194, %v1155, 0
      %v1175 = vsel %vm194, %v1156, 0
      %v1178 = vsel %vm194, %v1157, 0
      %v1181 = vsel %vm194, %v1158, 0
      %v1184 = vsel %vm194, %v1159, 0
      %v1187 = vsel %vm194, %v1160, 0
      %v1190 = vsel %vm194, %v1161, 0
      %v1193 = vsel %vm194, %v1162, 0
      %1195 = vmatprep.subr.mxu0 0.0
      %1196 = vmatpush1.msra.mxu0 %v1164
      %1197 = vmatprep.subr.mxu0 0.0
      %1198 = vmatpush1.msra.mxu0 0.0
      %1199 = vmatprep.subr.mxu0 0.0
      %1200 = vmatpush1.msra.mxu0 0.0
      %1201 = vmatprep.subr.mxu0 0.0
      %1202 = vmatpush1.msra.mxu0 0.0
      %1203 = vmatprep.subr.mxu0 0.0
      %1204 = vmatpush1.msra.mxu0 0.0
      %1205 = vmatprep.subr.mxu0 0.0
      %1206 = vmatpush1.msra.mxu0 0.0
      %1207 = vmatprep.subr.mxu0 0.0
      %1208 = vmatpush1.msra.mxu0 0.0
      %1209 = vmatprep.subr.mxu0 0.0
      %1210 = vmatpush1.msra.mxu0 0.0
      %1211 = vmatprep.subr.mxu0 0.0
      %1212 = vmatpush1.msra.mxu0 0.0
      %1213 = vmatprep.subr.mxu0 0.0
      %1214 = vmatpush1.msra.mxu0 0.0
      %1215 = vmatprep.subr.mxu0 0.0
      %1216 = vmatpush1.msra.mxu0 0.0
      %1217 = vmatprep.subr.mxu0 0.0
      %1218 = vmatpush1.msra.mxu0 0.0
      %1219 = vmatprep.subr.mxu0 0.0
      %1220 = vmatpush1.msra.mxu0 0.0
      %1221 = vmatprep.subr.mxu0 0.0
      %1222 = vmatpush1.msra.mxu0 0.0
      %1223 = vmatprep.subr.mxu0 0.0
      %1224 = vmatpush1.msra.mxu0 0.0
      %1225 = vmatprep.subr.mxu0 0.0
      %1226 = vmatpush1.msra.mxu0 0.0
      %1227 = vmatprep.subr.mxu0 0.0
      %1228 = vmatpush1.msra.mxu0 0.0
      %1229 = vmatprep.subr.mxu0 0.0
      %1230 = vmatpush1.msra.mxu0 0.0
      %1231 = vmatprep.subr.mxu0 0.0
      %1232 = vmatpush1.msra.mxu0 0.0
      %1233 = vmatprep.subr.mxu0 0.0
      %1234 = vmatpush1.msra.mxu0 0.0
      %1235 = vmatprep.subr.mxu0 0.0
      %1236 = vmatpush1.msra.mxu0 0.0
      %1237 = vmatprep.subr.mxu0 0.0
      %1238 = vmatpush1.msra.mxu0 0.0
      %1239 = vmatprep.subr.mxu0 0.0
      %1240 = vmatpush1.msra.mxu0 0.0
      %1241 = vmatprep.subr.mxu0 0.0
      %1242 = vmatpush1.msra.mxu0 0.0
      %1243 = vmatprep.subr.mxu0 0.0
      %1244 = vmatpush1.msra.mxu0 0.0
      %1245 = vmatprep.subr.mxu0 0.0
      %1246 = vmatpush1.msra.mxu0 0.0
      %1247 = vmatprep.subr.mxu0 0.0
      %1248 = vmatpush1.msra.mxu0 0.0
      %1249 = vmatprep.subr.mxu0 0.0
      %1250 = vmatpush1.msra.mxu0 0.0
      %1251 = vmatprep.subr.mxu0 0.0
      %1252 = vmatpush1.msra.mxu0 0.0
      %1253 = vmatprep.subr.mxu0 0.0
      %1254 = vmatpush1.msra.mxu0 0.0
      %1255 = vmatprep.subr.mxu0 0.0
      %1256 = vmatpush1.msra.mxu0 0.0
      %1257 = vmatprep.subr.mxu0 0.0
      %1258 = vmatpush1.msra.mxu0 0.0
      %1259 = vmatprep.mubr.f32.mxu0 0.0
      %1260 = vmatmul.mubr.f32.gmra.mrb[0].mxu0 %v1166
      %v1261 = vpop.f32.mrb[0].mxu0
      %v1262 = vadd.f32 0.0, %v1261
      %v1263 = vpop.f32.mrb[0].mxu0
      %1264 = vmatprep.mubr.f32.mxu0 0.0
      %1265 = vmatmul.mubr.f32.gmra.mrb[0].mxu0 %v1169
      %v1266 = vpop.f32.mrb[0].mxu0
      %v1267 = vadd.f32 0.0, %v1266
      %v1268 = vpop.f32.mrb[0].mxu0
      %1269 = vmatprep.mubr.f32.mxu0 0.0
      %1270 = vmatmul.mubr.f32.gmra.mrb[0].mxu0 %v1172
      %v1271 = vpop.f32.mrb[0].mxu0
      %v1272 = vadd.f32 0.0, %v1271
      %v1273 = vpop.f32.mrb[0].mxu0
      %1274 = vmatprep.mubr.f32.mxu0 0.0
      %1275 = vmatmul.mubr.f32.gmra.mrb[0].mxu0 %v1175
      %v1276 = vpop.f32.mrb[0].mxu0
      %v1277 = vadd.f32 0.0, %v1276
      %v1278 = vpop.f32.mrb[0].mxu0
      %1279 = vmatprep.mubr.f32.mxu0 0.0
      %1280 = vmatmul.mubr.f32.gmra.mrb[0].mxu0 %v1178
      %v1281 = vpop.f32.mrb[0].mxu0
      %v1282 = vadd.f32 0.0, %v1281
      %v1283 = vpop.f32.mrb[0].mxu0
      %1284 = vmatprep.mubr.f32.mxu0 0.0
      %1285 = vmatmul.mubr.f32.gmra.mrb[0].mxu0 %v1181
      %v1286 = vpop.f32.mrb[0].mxu0
      %v1287 = vadd.f32 0.0, %v1286
      %v1288 = vpop.f32.mrb[0].mxu0
      %1289 = vmatprep.mubr.f32.mxu0 0.0
      %1290 = vmatmul.mubr.f32.gmra.mrb[0].mxu0 %v1184
      %v1291 = vpop.f32.mrb[0].mxu0
      %v1292 = vadd.f32 0.0, %v1291
      %v1293 = vpop.f32.mrb[0].mxu0
      %1294 = vmatprep.mubr.f32.mxu0 0.0
      %1295 = vmatmul.mubr.f32.gmra.mrb[0].mxu0 %v1187
      %v1296 = vpop.f32.mrb[0].mxu0
      %v1297 = vadd.f32 0.0, %v1296
      %v1298 = vpop.f32.mrb[0].mxu0
      %1299 = vmatprep.mubr.f32.mxu0 0.0
      %1300 = vmatmul.mubr.f32.gmra.mrb[0].mxu0 %v1190
      %v1301 = vpop.f32.mrb[0].mxu0
      %v1302 = vadd.f32 0.0, %v1301
      %v1303 = vpop.f32.mrb[0].mxu0
      %1304 = vmatprep.mubr.f32.mxu0 0.0
      %1305 = vmatmul.mubr.f32.gmra.mrb[0].mxu0 %v1193
      %v1306 = vpop.f32.mrb[0].mxu0
      %v1307 = vadd.f32 0.0, %v1306
      %v1308 = vpop.f32.mrb[0].mxu0
      %1309 = vdwg.mxu0
      %v1310 = vadd.f32 %v1143, %v1262
      %v1311 = vadd.f32 %v1144, %v1267
      %v1312 = vadd.f32 %v1145, %v1272
      %v1313 = vadd.f32 %v1146, %v1277
      %v1314 = vadd.f32 %v1147, %v1282
      %v1315 = vadd.f32 %v1148, %v1287
      %v1316 = vadd.f32 %v1149, %v1292
      %v1317 = vadd.f32 %v1150, %v1297
      %v1318 = vadd.f32 %v1151, %v1302
      %v1319 = vadd.f32 %v1152, %v1307
      %v1320 = vld [vmem:[%s165 + $0x15] sm:$0xff]
      %v1321 = vld [vmem:[%s165 + $0x1d] sm:$0xff]
      %v1322 = vld [vmem:[%s165 + $0x25] sm:$0xff]
      %v1323 = vld [vmem:[%s165 + $0x2d] sm:$0xff]
      %v1324 = vld [vmem:[%s165 + $0x35] sm:$0xff]
      %v1325 = vld [vmem:[%s165 + $0x3d] sm:$0xff]
      %v1326 = vld [vmem:[%s165 + $0x45] sm:$0xff]
      %v1327 = vld [vmem:[%s165 + $0x4d] sm:$0xff]
      %v1328 = vld [vmem:[%s165 + $0x55] sm:$0xff]
      %v1329 = vld [vmem:[%s165 + $0x5d] sm:$0xff]
      %s1330 = scalar_lea.vmem %s1, 56
      %v1331 = vld [vmem:[%s1330] sm:$0xff]
      %v1333 = vsel %vm194, %v1320, 0
      %v1336 = vsel %vm194, %v1321, 0
      %v1339 = vsel %vm194, %v1322, 0
      %v1342 = vsel %vm194, %v1323, 0
      %v1345 = vsel %vm194, %v1324, 0
      %v1348 = vsel %vm194, %v1325, 0
      %v1351 = vsel %vm194, %v1326, 0
      %v1354 = vsel %vm194, %v1327, 0
      %v1357 = vsel %vm194, %v1328, 0
      %v1360 = vsel %vm194, %v1329, 0
      %1362 = vmatprep.subr.mxu0 0.0
      %1363 = vmatpush1.msra.mxu0 %v1331
      %1364 = vmatprep.subr.mxu0 0.0
      %1365 = vmatpush1.msra.mxu0 0.0
      %1366 = vmatprep.subr.mxu0 0.0
      %1367 = vmatpush1.msra.mxu0 0.0
      %1368 = vmatprep.subr.mxu0 0.0
      %1369 = vmatpush1.msra.mxu0 0.0
      %1370 = vmatprep.subr.mxu0 0.0
      %1371 = vmatpush1.msra.mxu0 0.0
      %1372 = vmatprep.subr.mxu0 0.0
      %1373 = vmatpush1.msra.mxu0 0.0
      %1374 = vmatprep.subr.mxu0 0.0
      %1375 = vmatpush1.msra.mxu0 0.0
      %1376 = vmatprep.subr.mxu0 0.0
      %1377 = vmatpush1.msra.mxu0 0.0
      %1378 = vmatprep.subr.mxu0 0.0
      %1379 = vmatpush1.msra.mxu0 0.0
      %1380 = vmatprep.subr.mxu0 0.0
      %1381 = vmatpush1.msra.mxu0 0.0
      %1382 = vmatprep.subr.mxu0 0.0
      %1383 = vmatpush1.msra.mxu0 0.0
      %1384 = vmatprep.subr.mxu0 0.0
      %1385 = vmatpush1.msra.mxu0 0.0
      %1386 = vmatprep.subr.mxu0 0.0
      %1387 = vmatpush1.msra.mxu0 0.0
      %1388 = vmatprep.subr.mxu0 0.0
      %1389 = vmatpush1.msra.mxu0 0.0
      %1390 = vmatprep.subr.mxu0 0.0
      %1391 = vmatpush1.msra.mxu0 0.0
      %1392 = vmatprep.subr.mxu0 0.0
      %1393 = vmatpush1.msra.mxu0 0.0
      %1394 = vmatprep.subr.mxu0 0.0
      %1395 = vmatpush1.msra.mxu0 0.0
      %1396 = vmatprep.subr.mxu0 0.0
      %1397 = vmatpush1.msra.mxu0 0.0
      %1398 = vmatprep.subr.mxu0 0.0
      %1399 = vmatpush1.msra.mxu0 0.0
      %1400 = vmatprep.subr.mxu0 0.0
      %1401 = vmatpush1.msra.mxu0 0.0
      %1402 = vmatprep.subr.mxu0 0.0
      %1403 = vmatpush1.msra.mxu0 0.0
      %1404 = vmatprep.subr.mxu0 0.0
      %1405 = vmatpush1.msra.mxu0 0.0
      %1406 = vmatprep.subr.mxu0 0.0
      %1407 = vmatpush1.msra.mxu0 0.0
      %1408 = vmatprep.subr.mxu0 0.0
      %1409 = vmatpush1.msra.mxu0 0.0
      %1410 = vmatprep.subr.mxu0 0.0
      %1411 = vmatpush1.msra.mxu0 0.0
      %1412 = vmatprep.subr.mxu0 0.0
      %1413 = vmatpush1.msra.mxu0 0.0
      %1414 = vmatprep.subr.mxu0 0.0
      %1415 = vmatpush1.msra.mxu0 0.0
      %1416 = vmatprep.subr.mxu0 0.0
      %1417 = vmatpush1.msra.mxu0 0.0
      %1418 = vmatprep.subr.mxu0 0.0
      %1419 = vmatpush1.msra.mxu0 0.0
      %1420 = vmatprep.subr.mxu0 0.0
      %1421 = vmatpush1.msra.mxu0 0.0
      %1422 = vmatprep.subr.mxu0 0.0
      %1423 = vmatpush1.msra.mxu0 0.0
      %1424 = vmatprep.subr.mxu0 0.0
      %1425 = vmatpush1.msra.mxu0 0.0
      %1426 = vmatprep.mubr.f32.mxu0 0.0
      %1427 = vmatmul.mubr.f32.gmra.mrb[0].mxu0 %v1333
      %v1428 = vpop.f32.mrb[0].mxu0
      %v1429 = vadd.f32 0.0, %v1428
      %v1430 = vpop.f32.mrb[0].mxu0
      %1431 = vmatprep.mubr.f32.mxu0 0.0
      %1432 = vmatmul.mubr.f32.gmra.mrb[0].mxu0 %v1336
      %v1433 = vpop.f32.mrb[0].mxu0
      %v1434 = vadd.f32 0.0, %v1433
      %v1435 = vpop.f32.mrb[0].mxu0
      %1436 = vmatprep.mubr.f32.mxu0 0.0
      %1437 = vmatmul.mubr.f32.gmra.mrb[0].mxu0 %v1339
      %v1438 = vpop.f32.mrb[0].mxu0
      %v1439 = vadd.f32 0.0, %v1438
      %v1440 = vpop.f32.mrb[0].mxu0
      %1441 = vmatprep.mubr.f32.mxu0 0.0
      %1442 = vmatmul.mubr.f32.gmra.mrb[0].mxu0 %v1342
      %v1443 = vpop.f32.mrb[0].mxu0
      %v1444 = vadd.f32 0.0, %v1443
      %v1445 = vpop.f32.mrb[0].mxu0
      %1446 = vmatprep.mubr.f32.mxu0 0.0
      %1447 = vmatmul.mubr.f32.gmra.mrb[0].mxu0 %v1345
      %v1448 = vpop.f32.mrb[0].mxu0
      %v1449 = vadd.f32 0.0, %v1448
      %v1450 = vpop.f32.mrb[0].mxu0
      %1451 = vmatprep.mubr.f32.mxu0 0.0
      %1452 = vmatmul.mubr.f32.gmra.mrb[0].mxu0 %v1348
      %v1453 = vpop.f32.mrb[0].mxu0
      %v1454 = vadd.f32 0.0, %v1453
      %v1455 = vpop.f32.mrb[0].mxu0
      %1456 = vmatprep.mubr.f32.mxu0 0.0
      %1457 = vmatmul.mubr.f32.gmra.mrb[0].mxu0 %v1351
      %v1458 = vpop.f32.mrb[0].mxu0
      %v1459 = vadd.f32 0.0, %v1458
      %v1460 = vpop.f32.mrb[0].mxu0
      %1461 = vmatprep.mubr.f32.mxu0 0.0
      %1462 = vmatmul.mubr.f32.gmra.mrb[0].mxu0 %v1354
      %v1463 = vpop.f32.mrb[0].mxu0
      %v1464 = vadd.f32 0.0, %v1463
      %v1465 = vpop.f32.mrb[0].mxu0
      %1466 = vmatprep.mubr.f32.mxu0 0.0
      %1467 = vmatmul.mubr.f32.gmra.mrb[0].mxu0 %v1357
      %v1468 = vpop.f32.mrb[0].mxu0
      %v1469 = vadd.f32 0.0, %v1468
      %v1470 = vpop.f32.mrb[0].mxu0
      %1471 = vmatprep.mubr.f32.mxu0 0.0
      %1472 = vmatmul.mubr.f32.gmra.mrb[0].mxu0 %v1360
      %v1473 = vpop.f32.mrb[0].mxu0
      %v1474 = vadd.f32 0.0, %v1473
      %v1475 = vpop.f32.mrb[0].mxu0
      %1476 = vdwg.mxu0
      %v1477 = vadd.f32 %v1310, %v1429
      %v1478 = vadd.f32 %v1311, %v1434
      %v1479 = vadd.f32 %v1312, %v1439
      %v1480 = vadd.f32 %v1313, %v1444
      %v1481 = vadd.f32 %v1314, %v1449
      %v1482 = vadd.f32 %v1315, %v1454
      %v1483 = vadd.f32 %v1316, %v1459
      %v1484 = vadd.f32 %v1317, %v1464
      %v1485 = vadd.f32 %v1318, %v1469
      %v1486 = vadd.f32 %v1319, %v1474
      %v1487 = vld [vmem:[%s165 + $0x16] sm:$0xff]
      %v1488 = vld [vmem:[%s165 + $0x1e] sm:$0xff]
      %v1489 = vld [vmem:[%s165 + $0x26] sm:$0xff]
      %v1490 = vld [vmem:[%s165 + $0x2e] sm:$0xff]
      %v1491 = vld [vmem:[%s165 + $0x36] sm:$0xff]
      %v1492 = vld [vmem:[%s165 + $0x3e] sm:$0xff]
      %v1493 = vld [vmem:[%s165 + $0x46] sm:$0xff]
      %v1494 = vld [vmem:[%s165 + $0x4e] sm:$0xff]
      %v1495 = vld [vmem:[%s165 + $0x56] sm:$0xff]
      %v1496 = vld [vmem:[%s165 + $0x5e] sm:$0xff]
      %s1497 = scalar_lea.vmem %s1, 64
      %v1498 = vld [vmem:[%s1497] sm:$0xff]
      %v1500 = vsel %vm194, %v1487, 0
      %v1503 = vsel %vm194, %v1488, 0
      %v1506 = vsel %vm194, %v1489, 0
      %v1509 = vsel %vm194, %v1490, 0
      %v1512 = vsel %vm194, %v1491, 0
      %v1515 = vsel %vm194, %v1492, 0
      %v1518 = vsel %vm194, %v1493, 0
      %v1521 = vsel %vm194, %v1494, 0
      %v1524 = vsel %vm194, %v1495, 0
      %v1527 = vsel %vm194, %v1496, 0
      %1529 = vmatprep.subr.mxu0 0.0
      %1530 = vmatpush1.msra.mxu0 %v1498
      %1531 = vmatprep.subr.mxu0 0.0
      %1532 = vmatpush1.msra.mxu0 0.0
      %1533 = vmatprep.subr.mxu0 0.0
      %1534 = vmatpush1.msra.mxu0 0.0
      %1535 = vmatprep.subr.mxu0 0.0
      %1536 = vmatpush1.msra.mxu0 0.0
      %1537 = vmatprep.subr.mxu0 0.0
      %1538 = vmatpush1.msra.mxu0 0.0
      %1539 = vmatprep.subr.mxu0 0.0
      %1540 = vmatpush1.msra.mxu0 0.0
      %1541 = vmatprep.subr.mxu0 0.0
      %1542 = vmatpush1.msra.mxu0 0.0
      %1543 = vmatprep.subr.mxu0 0.0
      %1544 = vmatpush1.msra.mxu0 0.0
      %1545 = vmatprep.subr.mxu0 0.0
      %1546 = vmatpush1.msra.mxu0 0.0
      %1547 = vmatprep.subr.mxu0 0.0
      %1548 = vmatpush1.msra.mxu0 0.0
      %1549 = vmatprep.subr.mxu0 0.0
      %1550 = vmatpush1.msra.mxu0 0.0
      %1551 = vmatprep.subr.mxu0 0.0
      %1552 = vmatpush1.msra.mxu0 0.0
      %1553 = vmatprep.subr.mxu0 0.0
      %1554 = vmatpush1.msra.mxu0 0.0
      %1555 = vmatprep.subr.mxu0 0.0
      %1556 = vmatpush1.msra.mxu0 0.0
      %1557 = vmatprep.subr.mxu0 0.0
      %1558 = vmatpush1.msra.mxu0 0.0
      %1559 = vmatprep.subr.mxu0 0.0
      %1560 = vmatpush1.msra.mxu0 0.0
      %1561 = vmatprep.subr.mxu0 0.0
      %1562 = vmatpush1.msra.mxu0 0.0
      %1563 = vmatprep.subr.mxu0 0.0
      %1564 = vmatpush1.msra.mxu0 0.0
      %1565 = vmatprep.subr.mxu0 0.0
      %1566 = vmatpush1.msra.mxu0 0.0
      %1567 = vmatprep.subr.mxu0 0.0
      %1568 = vmatpush1.msra.mxu0 0.0
      %1569 = vmatprep.subr.mxu0 0.0
      %1570 = vmatpush1.msra.mxu0 0.0
      %1571 = vmatprep.subr.mxu0 0.0
      %1572 = vmatpush1.msra.mxu0 0.0
      %1573 = vmatprep.subr.mxu0 0.0
      %1574 = vmatpush1.msra.mxu0 0.0
      %1575 = vmatprep.subr.mxu0 0.0
      %1576 = vmatpush1.msra.mxu0 0.0
      %1577 = vmatprep.subr.mxu0 0.0
      %1578 = vmatpush1.msra.mxu0 0.0
      %1579 = vmatprep.subr.mxu0 0.0
      %1580 = vmatpush1.msra.mxu0 0.0
      %1581 = vmatprep.subr.mxu0 0.0
      %1582 = vmatpush1.msra.mxu0 0.0
      %1583 = vmatprep.subr.mxu0 0.0
      %1584 = vmatpush1.msra.mxu0 0.0
      %1585 = vmatprep.subr.mxu0 0.0
      %1586 = vmatpush1.msra.mxu0 0.0
      %1587 = vmatprep.subr.mxu0 0.0
      %1588 = vmatpush1.msra.mxu0 0.0
      %1589 = vmatprep.subr.mxu0 0.0
      %1590 = vmatpush1.msra.mxu0 0.0
      %1591 = vmatprep.subr.mxu0 0.0
      %1592 = vmatpush1.msra.mxu0 0.0
      %1593 = vmatprep.mubr.f32.mxu0 0.0
      %1594 = vmatmul.mubr.f32.gmra.mrb[0].mxu0 %v1500
      %v1595 = vpop.f32.mrb[0].mxu0
      %v1596 = vadd.f32 0.0, %v1595
      %v1597 = vpop.f32.mrb[0].mxu0
      %1598 = vmatprep.mubr.f32.mxu0 0.0
      %1599 = vmatmul.mubr.f32.gmra.mrb[0].mxu0 %v1503
      %v1600 = vpop.f32.mrb[0].mxu0
      %v1601 = vadd.f32 0.0, %v1600
      %v1602 = vpop.f32.mrb[0].mxu0
      %1603 = vmatprep.mubr.f32.mxu0 0.0
      %1604 = vmatmul.mubr.f32.gmra.mrb[0].mxu0 %v1506
      %v1605 = vpop.f32.mrb[0].mxu0
      %v1606 = vadd.f32 0.0, %v1605
      %v1607 = vpop.f32.mrb[0].mxu0
      %1608 = vmatprep.mubr.f32.mxu0 0.0
      %1609 = vmatmul.mubr.f32.gmra.mrb[0].mxu0 %v1509
      %v1610 = vpop.f32.mrb[0].mxu0
      %v1611 = vadd.f32 0.0, %v1610
      %v1612 = vpop.f32.mrb[0].mxu0
      %1613 = vmatprep.mubr.f32.mxu0 0.0
      %1614 = vmatmul.mubr.f32.gmra.mrb[0].mxu0 %v1512
      %v1615 = vpop.f32.mrb[0].mxu0
      %v1616 = vadd.f32 0.0, %v1615
      %v1617 = vpop.f32.mrb[0].mxu0
      %1618 = vmatprep.mubr.f32.mxu0 0.0
      %1619 = vmatmul.mubr.f32.gmra.mrb[0].mxu0 %v1515
      %v1620 = vpop.f32.mrb[0].mxu0
      %v1621 = vadd.f32 0.0, %v1620
      %v1622 = vpop.f32.mrb[0].mxu0
      %1623 = vmatprep.mubr.f32.mxu0 0.0
      %1624 = vmatmul.mubr.f32.gmra.mrb[0].mxu0 %v1518
      %v1625 = vpop.f32.mrb[0].mxu0
      %v1626 = vadd.f32 0.0, %v1625
      %v1627 = vpop.f32.mrb[0].mxu0
      %1628 = vmatprep.mubr.f32.mxu0 0.0
      %1629 = vmatmul.mubr.f32.gmra.mrb[0].mxu0 %v1521
      %v1630 = vpop.f32.mrb[0].mxu0
      %v1631 = vadd.f32 0.0, %v1630
      %v1632 = vpop.f32.mrb[0].mxu0
      %1633 = vmatprep.mubr.f32.mxu0 0.0
      %1634 = vmatmul.mubr.f32.gmra.mrb[0].mxu0 %v1524
      %v1635 = vpop.f32.mrb[0].mxu0
      %v1636 = vadd.f32 0.0, %v1635
      %v1637 = vpop.f32.mrb[0].mxu0
      %1638 = vmatprep.mubr.f32.mxu0 0.0
      %1639 = vmatmul.mubr.f32.gmra.mrb[0].mxu0 %v1527
      %v1640 = vpop.f32.mrb[0].mxu0
      %v1641 = vadd.f32 0.0, %v1640
      %v1642 = vpop.f32.mrb[0].mxu0
      %1643 = vdwg.mxu0
      %v1644 = vadd.f32 %v1477, %v1596
      %v1645 = vadd.f32 %v1478, %v1601
      %v1646 = vadd.f32 %v1479, %v1606
      %v1647 = vadd.f32 %v1480, %v1611
      %v1648 = vadd.f32 %v1481, %v1616
      %v1649 = vadd.f32 %v1482, %v1621
      %v1650 = vadd.f32 %v1483, %v1626
      %v1651 = vadd.f32 %v1484, %v1631
      %v1652 = vadd.f32 %v1485, %v1636
      %v1653 = vadd.f32 %v1486, %v1641
      %v1654 = vld [vmem:[%s2] sm:$0x1]
      %v1656 = vlaneseq
      %v1657 = vshrl.u32 %v1656, 7
      %v1658 = vsub.s32 0, %v1657
      %v1659 = vrot.slane %v1654, %v1658
      %v1661 = vadd.f32 %v1644, %v1659
      %v1662 = vadd.f32 %v1645, %v1659
      %v1663 = vadd.f32 %v1646, %v1659
      %v1664 = vadd.f32 %v1647, %v1659
      %v1665 = vadd.f32 %v1648, %v1659
      %v1666 = vadd.f32 %v1649, %v1659
      %v1667 = vadd.f32 %v1650, %v1659
      %v1668 = vadd.f32 %v1651, %v1659
      %v1669 = vadd.f32 %v1652, %v1659
      %v1670 = vadd.f32 %v1653, %v1659
      %v1671 = vmax.f32 %v1661, 0.0
      %v1672 = vmax.f32 %v1662, 0.0
      %v1673 = vmax.f32 %v1663, 0.0
      %v1674 = vmax.f32 %v1664, 0.0
      %v1675 = vmax.f32 %v1665, 0.0
      %v1676 = vmax.f32 %v1666, 0.0
      %v1677 = vmax.f32 %v1667, 0.0
      %v1678 = vmax.f32 %v1668, 0.0
      %v1679 = vmax.f32 %v1669, 0.0
      %v1680 = vmax.f32 %v1670, 0.0
      %1681 = vst.msk [vmem:[%s170] sm:$0xff] %vm194, %v1671
      %1682 = vst.msk [vmem:[%s170 + $0x8] sm:$0xff] %vm194, %v1672
      %1683 = vst.msk [vmem:[%s170 + $0x10] sm:$0xff] %vm194, %v1673
      %1684 = vst.msk [vmem:[%s170 + $0x18] sm:$0xff] %vm194, %v1674
      %1685 = vst.msk [vmem:[%s170 + $0x20] sm:$0xff] %vm194, %v1675
      %1686 = vst.msk [vmem:[%s170 + $0x28] sm:$0xff] %vm194, %v1676
      %1687 = vst.msk [vmem:[%s170 + $0x30] sm:$0xff] %vm194, %v1677
      %1688 = vst.msk [vmem:[%s170 + $0x38] sm:$0xff] %vm194, %v1678
      %1689 = vst.msk [vmem:[%s170 + $0x40] sm:$0xff] %vm194, %v1679
      %1690 = vst.msk [vmem:[%s170 + $0x48] sm:$0xff] %vm194, %v1680
      %p1691 = scmp.lt.s32.totalorder %s14, 1
      %s1692 = scalar_select %p1691, %s14, 1
      %s1693 = smul.addr %s1692, 10
      %s1694 = smul.addr %s1693, 8
      %s1695 = scalar_lea.vmem %s3, %s1694
      // Predicated region
      $region33: #{bottleneck_forward.4} parent=31 // pred_check
        %p1696 = pneg %p100
      $region34: #{bottleneck_forward.4} parent=31 // pred_check_branch
        %1698 = sbr.rel (%p1696) target = $region36
      $region35: #{bottleneck_forward.4} parent=31 // pred_region
        _
      $region36: #{bottleneck_forward.4} parent=31 // pred_fallthru
        _
    $region32: #{bottleneck_forward.4} parent=5 // pred_fallthru
      _
    %p1699 = scmp.le.s32.totalorder 2, %s9
    // Predicated region
    $region37: #{bottleneck_forward.4} parent=5 // pred_check
      %p1700 = pneg %p1699
    $region38: #{bottleneck_forward.4} parent=5 // pred_check_branch
      %1702 = sbr.rel (%p1700) target = $region40
    $region39: #{bottleneck_forward.4} parent=5 // pred_region
      %s1703 = ssub.s32 %s9, 2
      // Predicated region
      $region41: #{bottleneck_forward.4} parent=39 // pred_check
        %p1704 = pneg %p106
      $region42: #{bottleneck_forward.4} parent=39 // pred_check_branch
        %1706 = sbr.rel (%p1704) target = $region44
      $region43: #{bottleneck_forward.4} parent=39 // pred_region
        %p1707 = scmp.lt.s32.totalorder %s15, 1
        %s1708 = scalar_select %p1707, %s15, 1
        %s1709 = smul.addr %s1708, 10
        %s1710 = smul.addr %s1709, 8
        %s1711 = scalar_lea.vmem %s3, %s1710
      $region44: #{bottleneck_forward.4} parent=39 // pred_fallthru
        _
    $region40: #{bottleneck_forward.4} parent=5 // pred_fallthru
      _
  $region6: #{bottleneck_forward.4} parent=0 // loop_footer
    %s13 = sadd.s32 1, %s9
  $region7: #{bottleneck_forward.4} parent=0 // loop_footer_branch
    %8 = sbr.rel target = $region3
  $region8: #{bottleneck_forward.4} parent=0 // loop_exit
    _

</llo_original>
